<compile_context>
chip_gen: v5e
topology: v5e:2x2
jax: 0.10.0
libtpu: 0.0.40
codegen_flags: <defaults>
</compile_context>

<pallas_src>
import jax
import jax.numpy as jnp
import numpy as np
from jax.experimental import pallas as pl
from jax.experimental.pallas import tpu as pltpu


# ----------------------------------------------------------------------------
# Kernel 1: attention MLP (fc1 -> relu -> fc2 -> softmax) on the pooled input.
# The global-avg-pool runs in XLA so this kernel never loads the activation.
# ----------------------------------------------------------------------------
def _attention_kernel(p_ref, w1_ref, b1_ref, w2_ref, b2_ref, att_ref):
    pooled = p_ref[...]                                            # (B, Cin)
    h = jnp.dot(pooled, w1_ref[...],
                preferred_element_type=jnp.float32) + b1_ref[...]  # (B, K)
    h = jnp.maximum(h, 0.0)
    logits = jnp.dot(h, w2_ref[...],
                     preferred_element_type=jnp.float32) + b2_ref[...]
    m = jnp.max(logits, axis=-1, keepdims=True)
    e = jnp.exp(logits - m)
    att_ref[...] = e / jnp.sum(e, axis=-1, keepdims=True)


# ----------------------------------------------------------------------------
# Helpers
# ----------------------------------------------------------------------------
def _pick_row_tile(h_out, w_out, row_budget):
    """Output rows per tile.  Prefer lane-dense tiles (tHo*W_out % 128 == 0)
    within the row budget, else the smallest lane-dense tile, else the whole
    image (block == full dim, which always satisfies the BlockSpec rules)."""
    divs = [d for d in range(1, h_out + 1) if h_out % d == 0]
    lane_ok = [d for d in divs if (d * w_out) % 128 == 0]
    within = [d for d in lane_ok if d * w_out <= row_budget]
    if within:
        return max(within)
    if lane_ok:
        return min(lane_ok)
    return h_out


def _vmem_limit_bytes():
    """Per-generation VMEM budget (v5e/v6e: 128 MiB phys, v7x: 64 MiB)."""
    try:
        cap = pltpu.get_tpu_info().vmem_capacity_bytes
    except Exception:
        cap = 64 * 1024 * 1024
    return int(max(32 * 1024 * 1024, min(100 * 1024 * 1024, cap * 6 // 10)))


def _make_conv_kernel(kh, kw, stride, dilation, cin, w_out, t_ho):
    rows = t_ho * w_out

    def conv_kernel(x_ref, w_ref, b_ref, o_ref, patch_ref):
        # x_ref:     (1, s*s, Hph, Wph, Cin) bf16  phase-split padded image, batch b
        # w_ref:     (1, tCo, KD)            bf16  per-sample aggregated weights
        # b_ref:     (1, tCo, 1)             f32   per-sample aggregated bias
        # o_ref:     (1, tCo, rows)                output tile (lane-dense rows)
        # patch_ref: (rows, KD)              bf16  VMEM scratch (im2col patch)
        ho = pl.program_id(2)
        row_base = ho * t_ho
        if t_ho % 8 == 0:
            row_base = pl.multiple_of(row_base, 8)

        # ---- build the im2col patch once per tile (contiguous slices only) --
        for i in range(kh):                      # static, unrolled (kh*kw taps)
            off_r = i * dilation
            pi, base_r = off_r % stride, off_r // stride
            for j in range(kw):
                off_c = j * dilation
                pj, base_c = off_c % stride, off_c // stride
                tap = i * kw + j
                x_tap = x_ref[0, pi * stride + pj,
                              pl.ds(row_base + base_r, t_ho),
                              pl.ds(base_c, w_out),
                              :]                              # (tHo, W_out, Cin)
                patch_ref[:, tap * cin:(tap + 1) * cin] = (
                    x_tap.reshape(rows, cin))

        # ---- one MXU matmul: contraction depth KD = kh*kw*Cin ---------------
        # (tCo, KD) x (rows, KD)^T -> (tCo, rows): output rows are lane-dense.
        res = jax.lax.dot_general(
            w_ref[0], patch_ref[...],
            dimension_numbers=(((1,), (1,)), ((), ())),
            preferred_element_type=jnp.float32)               # (tCo, rows)
        o_ref[0] = (res + b_ref[0]).astype(o_ref.dtype)

    return conv_kernel


# ----------------------------------------------------------------------------
# "Module": build once (hoists static weight re-layout), call forward(x) often.
# ----------------------------------------------------------------------------
def make_dynamic_conv2d(weight, bias, fc1_w, fc1_b, fc2_w, fc2_b, *,
                        stride=1, padding=0, dilation=1, groups=1,
                        row_budget=256, compute_dtype=jnp.bfloat16):
    weight = jnp.asarray(weight)
    K, Cout, Cin_g, kh, kw = weight.shape
    if groups != 1:
        raise NotImplementedError("groups > 1 not supported")  # TODO(synk)
    KD = kh * kw * Cin_g

    # Static weight re-layout, done ONCE at module init (not per forward call):
    # (K, Cout, Cin, kh, kw) -> (K, Cout, kh, kw, Cin) -> (K, Cout*KD), so each
    # Cout row is laid out as kd = (i*kw + j)*Cin + c, matching the patch.
    w_flat = weight.transpose(0, 1, 3, 4, 2).reshape(K, Cout * KD)
    bias = jnp.asarray(bias)
    fc1_wT = jnp.asarray(fc1_w).T                 # (Cin, K)
    fc1_b2 = jnp.asarray(fc1_b)[None, :]          # (1, K)
    fc2_wT = jnp.asarray(fc2_w).T                 # (K, K)
    fc2_b2 = jnp.asarray(fc2_b)[None, :]          # (1, K)

    s = stride
    vmem_limit = _vmem_limit_bytes()

    @jax.jit
    def forward(x):
        B, Cin, H, W = x.shape
        assert Cin == Cin_g
        H_out = (H + 2 * padding - dilation * (kh - 1) - 1) // s + 1
        W_out = (W + 2 * padding - dilation * (kw - 1) - 1) // s + 1
        P = H_out * W_out

        # ---- attention head: pool in XLA, tiny MLP+softmax Pallas kernel ----
        pooled = jnp.mean(x, axis=(2, 3))                          # (B, Cin)
        att = pl.pallas_call(
            _attention_kernel,
            out_shape=jax.ShapeDtypeStruct((B, K), jnp.float32),
        )(pooled, fc1_wT, fc1_b2, fc2_wT, fc2_b2)                  # (B, K)

        # ---- hoisted K-way weight aggregation: one MXU matmul in XLA --------
        agg_w = (att @ w_flat).reshape(B, Cout, KD).astype(compute_dtype)
        agg_b = (att @ bias)[:, :, None]                           # (B, Cout, 1)

        # ---- pad + stride-phase split: all in-kernel slicing is contiguous --
        Hp, Wp = H + 2 * padding, W + 2 * padding
        Hp2, Wp2 = -(-Hp // s) * s, -(-Wp // s) * s
        x_nhwc = x.transpose(0, 2, 3, 1).astype(compute_dtype)
        x_pad = jnp.pad(x_nhwc, ((0, 0),
                                 (padding, padding + Hp2 - Hp),
                                 (padding, padding + Wp2 - Wp),
                                 (0, 0)))
        Hph, Wph = Hp2 // s, Wp2 // s
        x_ph = (x_pad.reshape(B, Hph, s, Wph, s, Cin)
                .transpose(0, 2, 4, 1, 3, 5)
                .reshape(B, s * s, Hph, Wph, Cin))     # phase p = pi*s + pj

        # ---- tile sizes ------------------------------------------------------
        tHo = _pick_row_tile(H_out, W_out, row_budget)
        nHo = H_out // tHo
        rows = tHo * W_out
        if Cout % 256 == 0 and Cout >= 256 and rows * 256 * 4 <= 128 * 1024:
            tCo = 256
        elif Cout % 128 == 0 and Cout > 128:
            tCo = 128
        else:
            tCo = Cout
        nCo = Cout // tCo

        kernel = _make_conv_kernel(kh, kw, s, dilation, Cin, W_out, tHo)

        cost = pl.CostEstimate(
            flops=2 * B * P * Cout * KD,
            transcendentals=0,
            bytes_accessed=int(x_ph.size * x_ph.dtype.itemsize
                               + agg_w.size * agg_w.dtype.itemsize
                               + agg_b.size * 4
                               + B * Cout * P * x.dtype.itemsize))

        out_flat = pl.pallas_call(
            kernel,
            out_shape=jax.ShapeDtypeStruct((B, Cout, P), x.dtype),
            grid_spec=pltpu.PrefetchScalarGridSpec(
                num_scalar_prefetch=0,
                # B leads so the per-batch image block stays resident across
                # the inner axes (one DMA per batch element); B >= 2 also gives
                # v7x megacore a shardable leading axis.
                grid=(B, nCo, nHo),
                in_specs=[
                    # whole phase-split padded image of this batch element.
                    pl.BlockSpec((1, s * s, Hph, Wph, Cin),
                                 lambda b, co, ho: (b, 0, 0, 0, 0)),
                    # per-sample aggregated weights, tiled over Cout.
                    pl.BlockSpec((1, tCo, KD), lambda b, co, ho: (b, co, 0)),
                    # per-sample aggregated bias, tiled over Cout.
                    pl.BlockSpec((1, tCo, 1), lambda b, co, ho: (b, co, 0)),
                ],
                # NCHW-flattened output: last dim (rows) is lane-dense.
                out_specs=pl.BlockSpec((1, tCo, rows),
                                       lambda b, co, ho: (b, co, ho)),
                scratch_shapes=[pltpu.VMEM((rows, KD), compute_dtype)],
            ),
            compiler_params=pltpu.CompilerParams(
                dimension_semantics=("parallel", "parallel", "parallel"),
                vmem_limit_bytes=vmem_limit),
            cost_estimate=cost,
        )(x_ph, agg_w, agg_b)

        # (B, Cout, P) -> (B, Cout, H_out, W_out): free reshape, no transpose.
        return out_flat.reshape(B, Cout, H_out, W_out)

    return forward


# ----------------------------------------------------------------------------
# Pure-JAX reference (mirrors the bf16 conv data path for tight comparison)
# ----------------------------------------------------------------------------
def _reference(x, weight, bias, fc1_w, fc1_b, fc2_w, fc2_b,
               stride, padding, dilation, compute_dtype):
    pooled = jnp.mean(x, axis=(2, 3))
    h = jax.nn.relu(pooled @ fc1_w.T + fc1_b)
    att = jax.nn.softmax(h @ fc2_w.T + fc2_b, axis=1)
    agg_w = jnp.einsum('bk,kocij->bocij', att, weight).astype(compute_dtype)
    agg_b = att @ bias
    xc = x.astype(compute_dtype)

    def conv_one(xb, wb, bb):
        o = jax.lax.conv_general_dilated(
            xb[None], wb, window_strides=(stride, stride),
            padding=[(padding, padding), (padding, padding)],
            rhs_dilation=(dilation, dilation),
            dimension_numbers=('NCHW', 'OIHW', 'NCHW'),
            preferred_element_type=jnp.float32)
        return o[0] + bb[:, None, None]

    return jax.vmap(conv_one)(xc, agg_w, agg_b)


# ----------------------------------------------------------------------------
# Self-test
# ----------------------------------------------------------------------------
if __name__ == "__main__":
    def run_case(B, Cin, Cout, H, W, ksize, stride, padding, dilation, K):
        key = jax.random.PRNGKey(0)
        ks = jax.random.split(key, 7)
        x      = jax.random.normal(ks[0], (B, Cin, H, W), jnp.float32)
        weight = jax.random.normal(ks[1], (K, Cout, Cin, ksize, ksize),
                                   jnp.float32) * 0.1
        bias   = jax.random.normal(ks[2], (K, Cout), jnp.float32) * 0.1
        fc1_w  = jax.random.normal(ks[3], (K, Cin), jnp.float32) * 0.1
        fc1_b  = jax.random.normal(ks[4], (K,), jnp.float32) * 0.1
        fc2_w  = jax.random.normal(ks[5], (K, K), jnp.float32) * 0.1
        fc2_b  = jax.random.normal(ks[6], (K,), jnp.float32) * 0.1

        fwd = make_dynamic_conv2d(weight, bias, fc1_w, fc1_b, fc2_w, fc2_b,
                                  stride=stride, padding=padding,
                                  dilation=dilation)
        out = jax.block_until_ready(fwd(x))

        ref = _reference(x, weight, bias, fc1_w, fc1_b, fc2_w, fc2_b,
                         stride, padding, dilation, jnp.bfloat16)
        # bf16 conv data path (mirrored in the reference) + default-precision
        # XLA matmuls in the reference -> loose-ish tolerance.
        np.testing.assert_allclose(np.asarray(out), np.asarray(ref),
                                   rtol=1e-2, atol=1e-2)

    # Case 1: small Cout (full-Cout tile); lane-dense 256-wide output rows.
    run_case(B=2, Cin=8, Cout=16, H=16, W=16, ksize=3,
             stride=1, padding=1, dilation=1, K=4)
    # Case 2: Cout=256 (2 Cout tiles of 128), dilation=2, 4 row tiles.
    run_case(B=2, Cin=8, Cout=256, H=32, W=32, ksize=3,
             stride=1, padding=2, dilation=2, K=4)
    # Case 3: stride=2 via the stride-phase split (contiguous kernel slices).
    run_case(B=2, Cin=8, Cout=16, H=32, W=32, ksize=3,
             stride=2, padding=1, dilation=1, K=4)

    print("KERNEL_OK")
</pallas_src>

<mosaic_0001>
module attributes {stable_mosaic.version = 11 : i64} {
  func.func @_attention_kernel(%arg0: memref<2x8xf32, #tpu.memory_space<vmem>>, %arg1: memref<8x4xf32, #tpu.memory_space<vmem>>, %arg2: memref<1x4xf32, #tpu.memory_space<vmem>>, %arg3: memref<4x4xf32, #tpu.memory_space<vmem>>, %arg4: memref<1x4xf32, #tpu.memory_space<vmem>>, %arg5: memref<2x4xf32, #tpu.memory_space<vmem>>) attributes {dimension_semantics = [], scalar_prefetch = 0 : i64, scratch_operands = 0 : i64, tpu.core_type = #tpu.core_type<tc>} {
    %c0 = arith.constant 0 : index
    %c0_0 = arith.constant 0 : index
    %0 = vector.load %arg0[%c0, %c0_0] : memref<2x8xf32, #tpu.memory_space<vmem>>, vector<2x8xf32>
    %c0_1 = arith.constant 0 : index
    %c0_2 = arith.constant 0 : index
    %1 = vector.load %arg1[%c0_1, %c0_2] : memref<8x4xf32, #tpu.memory_space<vmem>>, vector<8x4xf32>
    %cst = arith.constant dense<0.000000e+00> : vector<2x4xf32>
    %2 = tpu.matmul %0, %1, %cst {dimension_numbers = #tpu.dot_dimension_numbers<[1], [0], [0], [1], [0, 0, 1, 1], [], []>} : vector<2x8xf32>, vector<8x4xf32>, vector<2x4xf32> -> vector<2x4xf32>
    %c0_3 = arith.constant 0 : index
    %c0_4 = arith.constant 0 : index
    %3 = vector.load %arg2[%c0_3, %c0_4] : memref<1x4xf32, #tpu.memory_space<vmem>>, vector<1x4xf32>
    %4 = vector.broadcast %3 : vector<1x4xf32> to vector<2x4xf32>
    %5 = arith.addf %2, %4 : vector<2x4xf32>
    %cst_5 = arith.constant 0.000000e+00 : f32
    %6 = vector.broadcast %cst_5 : f32 to vector<2x4xf32>
    %7 = arith.maximumf %5, %6 : vector<2x4xf32>
    %c0_6 = arith.constant 0 : index
    %c0_7 = arith.constant 0 : index
    %8 = vector.load %arg3[%c0_6, %c0_7] : memref<4x4xf32, #tpu.memory_space<vmem>>, vector<4x4xf32>
    %cst_8 = arith.constant dense<0.000000e+00> : vector<2x4xf32>
    %9 = tpu.matmul %7, %8, %cst_8 {dimension_numbers = #tpu.dot_dimension_numbers<[1], [0], [0], [1], [0, 0, 1, 1], [], []>} : vector<2x4xf32>, vector<4x4xf32>, vector<2x4xf32> -> vector<2x4xf32>
    %c0_9 = arith.constant 0 : index
    %c0_10 = arith.constant 0 : index
    %10 = vector.load %arg4[%c0_9, %c0_10] : memref<1x4xf32, #tpu.memory_space<vmem>>, vector<1x4xf32>
    %11 = vector.broadcast %10 : vector<1x4xf32> to vector<2x4xf32>
    %12 = arith.addf %9, %11 : vector<2x4xf32>
    %cst_11 = arith.constant dense<0xFF800000> : vector<2xf32>
    %13 = vector.multi_reduction <maximumf>, %12, %cst_11 [1] : vector<2x4xf32> to vector<2xf32>
    %14 = vector.shape_cast %13 : vector<2xf32> to vector<2x1xf32>
    %15 = vector.broadcast %14 : vector<2x1xf32> to vector<2x4xf32>
    %16 = arith.subf %12, %15 : vector<2x4xf32>
    %17 = math.exp %16 : vector<2x4xf32>
    %cst_12 = arith.constant dense<0.000000e+00> : vector<2xf32>
    %18 = vector.multi_reduction <add>, %17, %cst_12 [1] : vector<2x4xf32> to vector<2xf32>
    %19 = vector.shape_cast %18 : vector<2xf32> to vector<2x1xf32>
    %20 = vector.broadcast %19 : vector<2x1xf32> to vector<2x4xf32>
    %21 = arith.divf %17, %20 : vector<2x4xf32>
    %c0_13 = arith.constant 0 : index
    %c0_14 = arith.constant 0 : index
    %22 = vector.load %arg5[%c0_13, %c0_14] : memref<2x4xf32, #tpu.memory_space<vmem>>, vector<2x4xf32>
    tpu.vector_store %arg5[%c0_13, %c0_14], %21 {strides = array<i32>} : memref<2x4xf32, #tpu.memory_space<vmem>>, vector<2x4xf32>,
    return
  }
}

module attributes {stable_mosaic.version = 11 : i64} {
  func.func @conv_kernel(%arg0: i32, %arg1: i32, %arg2: i32, %arg3: memref<1x1x18x18x8xbf16, #tpu.memory_space<vmem>>, %arg4: memref<1x16x72xbf16, #tpu.memory_space<vmem>>, %arg5: memref<1x16x1xf32, #tpu.memory_space<vmem>>, %arg6: memref<1x16x256xf32, #tpu.memory_space<vmem>>, %arg7: memref<256x72xbf16, #tpu.memory_space<vmem>>) attributes {dimension_semantics = [#tpu.dimension_semantics<parallel>, #tpu.dimension_semantics<parallel>, #tpu.dimension_semantics<parallel>], iteration_bounds = array<i64: 2, 1, 1>, scalar_prefetch = 0 : i64, scratch_operands = 1 : i64, tpu.core_type = #tpu.core_type<tc>, window_params = [{transform_indices = @transform_0, window_bounds = array<i64: 1, 1, 18, 18, 8>}, {transform_indices = @transform_1, window_bounds = array<i64: 1, 16, 72>}, {transform_indices = @transform_2, window_bounds = array<i64: 1, 16, 1>}, {transform_indices = @transform_3, window_bounds = array<i64: 1, 16, 256>}]} {
    %c16_i32 = arith.constant 16 : i32
    %0 = arith.muli %arg2, %c16_i32 : i32
    %1 = tpu.assume_multiple %0, 8 : i32
    %c0_i32 = arith.constant 0 : i32
    %2 = arith.addi %1, %c0_i32 : i32
    %c0 = arith.constant 0 : index
    %c0_0 = arith.constant 0 : index
    %3 = arith.index_cast %2 : i32 to index
    %c0_1 = arith.constant 0 : index
    %c0_2 = arith.constant 0 : index
    %4 = vector.load %arg3[%c0, %c0_0, %3, %c0_1, %c0_2] : memref<1x1x18x18x8xbf16, #tpu.memory_space<vmem>>, vector<1x1x16x16x8xbf16>
    %5 = vector.shape_cast %4 : vector<1x1x16x16x8xbf16> to vector<16x16x8xbf16>
    %6 = vector.shape_cast %5 : vector<16x16x8xbf16> to vector<256x8xbf16>
    %c0_3 = arith.constant 0 : index
    %c0_4 = arith.constant 0 : index
    %7 = vector.load %arg7[%c0_3, %c0_4] : memref<256x72xbf16, #tpu.memory_space<vmem>>, vector<256x8xbf16>
    tpu.vector_store %arg7[%c0_3, %c0_4], %6 {strides = array<i32>} : memref<256x72xbf16, #tpu.memory_space<vmem>>, vector<256x8xbf16>,
    %c0_i32_5 = arith.constant 0 : i32
    %8 = arith.addi %1, %c0_i32_5 : i32
    %c0_6 = arith.constant 0 : index
    %c0_7 = arith.constant 0 : index
    %9 = arith.index_cast %8 : i32 to index
    %c1 = arith.constant 1 : index
    %c0_8 = arith.constant 0 : index
    %10 = vector.load %arg3[%c0_6, %c0_7, %9, %c1, %c0_8] : memref<1x1x18x18x8xbf16, #tpu.memory_space<vmem>>, vector<1x1x16x16x8xbf16>
    %11 = vector.shape_cast %10 : vector<1x1x16x16x8xbf16> to vector<16x16x8xbf16>
    %12 = vector.shape_cast %11 : vector<16x16x8xbf16> to vector<256x8xbf16>
    %c0_9 = arith.constant 0 : index
    %c8 = arith.constant 8 : index
    %13 = vector.load %arg7[%c0_9, %c8] : memref<256x72xbf16, #tpu.memory_space<vmem>>, vector<256x8xbf16>
    tpu.vector_store %arg7[%c0_9, %c8], %12 {strides = array<i32>} : memref<256x72xbf16, #tpu.memory_space<vmem>>, vector<256x8xbf16>,
    %c0_i32_10 = arith.constant 0 : i32
    %14 = arith.addi %1, %c0_i32_10 : i32
    %c0_11 = arith.constant 0 : index
    %c0_12 = arith.constant 0 : index
    %15 = arith.index_cast %14 : i32 to index
    %c2 = arith.constant 2 : index
    %c0_13 = arith.constant 0 : index
    %16 = vector.load %arg3[%c0_11, %c0_12, %15, %c2, %c0_13] : memref<1x1x18x18x8xbf16, #tpu.memory_space<vmem>>, vector<1x1x16x16x8xbf16>
    %17 = vector.shape_cast %16 : vector<1x1x16x16x8xbf16> to vector<16x16x8xbf16>
    %18 = vector.shape_cast %17 : vector<16x16x8xbf16> to vector<256x8xbf16>
    %c0_14 = arith.constant 0 : index
    %c16 = arith.constant 16 : index
    %19 = vector.load %arg7[%c0_14, %c16] : memref<256x72xbf16, #tpu.memory_space<vmem>>, vector<256x8xbf16>
    tpu.vector_store %arg7[%c0_14, %c16], %18 {strides = array<i32>} : memref<256x72xbf16, #tpu.memory_space<vmem>>, vector<256x8xbf16>,
    %c1_i32 = arith.constant 1 : i32
    %20 = arith.addi %1, %c1_i32 : i32
    %c0_15 = arith.constant 0 : index
    %c0_16 = arith.constant 0 : index
    %21 = arith.index_cast %20 : i32 to index
    %c0_17 = arith.constant 0 : index
    %c0_18 = arith.constant 0 : index
    %22 = vector.load %arg3[%c0_15, %c0_16, %21, %c0_17, %c0_18] : memref<1x1x18x18x8xbf16, #tpu.memory_space<vmem>>, vector<1x1x16x16x8xbf16>
    %23 = vector.shape_cast %22 : vector<1x1x16x16x8xbf16> to vector<16x16x8xbf16>
    %24 = vector.shape_cast %23 : vector<16x16x8xbf16> to vector<256x8xbf16>
    %c0_19 = arith.constant 0 : index
    %c24 = arith.constant 24 : index
    %25 = vector.load %arg7[%c0_19, %c24] : memref<256x72xbf16, #tpu.memory_space<vmem>>, vector<256x8xbf16>
    tpu.vector_store %arg7[%c0_19, %c24], %24 {strides = array<i32>} : memref<256x72xbf16, #tpu.memory_space<vmem>>, vector<256x8xbf16>,
    %c1_i32_20 = arith.constant 1 : i32
    %26 = arith.addi %1, %c1_i32_20 : i32
    %c0_21 = arith.constant 0 : index
    %c0_22 = arith.constant 0 : index
    %27 = arith.index_cast %26 : i32 to index
    %c1_23 = arith.constant 1 : index
    %c0_24 = arith.constant 0 : index
    %28 = vector.load %arg3[%c0_21, %c0_22, %27, %c1_23, %c0_24] : memref<1x1x18x18x8xbf16, #tpu.memory_space<vmem>>, vector<1x1x16x16x8xbf16>
    %29 = vector.shape_cast %28 : vector<1x1x16x16x8xbf16> to vector<16x16x8xbf16>
    %30 = vector.shape_cast %29 : vector<16x16x8xbf16> to vector<256x8xbf16>
    %c0_25 = arith.constant 0 : index
    %c32 = arith.constant 32 : index
    %31 = vector.load %arg7[%c0_25, %c32] : memref<256x72xbf16, #tpu.memory_space<vmem>>, vector<256x8xbf16>
    tpu.vector_store %arg7[%c0_25, %c32], %30 {strides = array<i32>} : memref<256x72xbf16, #tpu.memory_space<vmem>>, vector<256x8xbf16>,
    %c1_i32_26 = arith.constant 1 : i32
    %32 = arith.addi %1, %c1_i32_26 : i32
    %c0_27 = arith.constant 0 : index
    %c0_28 = arith.constant 0 : index
    %33 = arith.index_cast %32 : i32 to index
    %c2_29 = arith.constant 2 : index
    %c0_30 = arith.constant 0 : index
    %34 = vector.load %arg3[%c0_27, %c0_28, %33, %c2_29, %c0_30] : memref<1x1x18x18x8xbf16, #tpu.memory_space<vmem>>, vector<1x1x16x16x8xbf16>
    %35 = vector.shape_cast %34 : vector<1x1x16x16x8xbf16> to vector<16x16x8xbf16>
    %36 = vector.shape_cast %35 : vector<16x16x8xbf16> to vector<256x8xbf16>
    %c0_31 = arith.constant 0 : index
    %c40 = arith.constant 40 : index
    %37 = vector.load %arg7[%c0_31, %c40] : memref<256x72xbf16, #tpu.memory_space<vmem>>, vector<256x8xbf16>
    tpu.vector_store %arg7[%c0_31, %c40], %36 {strides = array<i32>} : memref<256x72xbf16, #tpu.memory_space<vmem>>, vector<256x8xbf16>,
    %c2_i32 = arith.constant 2 : i32
    %38 = arith.addi %1, %c2_i32 : i32
    %c0_32 = arith.constant 0 : index
    %c0_33 = arith.constant 0 : index
    %39 = arith.index_cast %38 : i32 to index
    %c0_34 = arith.constant 0 : index
    %c0_35 = arith.constant 0 : index
    %40 = vector.load %arg3[%c0_32, %c0_33, %39, %c0_34, %c0_35] : memref<1x1x18x18x8xbf16, #tpu.memory_space<vmem>>, vector<1x1x16x16x8xbf16>
    %41 = vector.shape_cast %40 : vector<1x1x16x16x8xbf16> to vector<16x16x8xbf16>
    %42 = vector.shape_cast %41 : vector<16x16x8xbf16> to vector<256x8xbf16>
    %c0_36 = arith.constant 0 : index
    %c48 = arith.constant 48 : index
    %43 = vector.load %arg7[%c0_36, %c48] : memref<256x72xbf16, #tpu.memory_space<vmem>>, vector<256x8xbf16>
    tpu.vector_store %arg7[%c0_36, %c48], %42 {strides = array<i32>} : memref<256x72xbf16, #tpu.memory_space<vmem>>, vector<256x8xbf16>,
    %c2_i32_37 = arith.constant 2 : i32
    %44 = arith.addi %1, %c2_i32_37 : i32
    %c0_38 = arith.constant 0 : index
    %c0_39 = arith.constant 0 : index
    %45 = arith.index_cast %44 : i32 to index
    %c1_40 = arith.constant 1 : index
    %c0_41 = arith.constant 0 : index
    %46 = vector.load %arg3[%c0_38, %c0_39, %45, %c1_40, %c0_41] : memref<1x1x18x18x8xbf16, #tpu.memory_space<vmem>>, vector<1x1x16x16x8xbf16>
    %47 = vector.shape_cast %46 : vector<1x1x16x16x8xbf16> to vector<16x16x8xbf16>
    %48 = vector.shape_cast %47 : vector<16x16x8xbf16> to vector<256x8xbf16>
    %c0_42 = arith.constant 0 : index
    %c56 = arith.constant 56 : index
    %49 = vector.load %arg7[%c0_42, %c56] : memref<256x72xbf16, #tpu.memory_space<vmem>>, vector<256x8xbf16>
    tpu.vector_store %arg7[%c0_42, %c56], %48 {strides = array<i32>} : memref<256x72xbf16, #tpu.memory_space<vmem>>, vector<256x8xbf16>,
    %c2_i32_43 = arith.constant 2 : i32
    %50 = arith.addi %1, %c2_i32_43 : i32
    %c0_44 = arith.constant 0 : index
    %c0_45 = arith.constant 0 : index
    %51 = arith.index_cast %50 : i32 to index
    %c2_46 = arith.constant 2 : index
    %c0_47 = arith.constant 0 : index
    %52 = vector.load %arg3[%c0_44, %c0_45, %51, %c2_46, %c0_47] : memref<1x1x18x18x8xbf16, #tpu.memory_space<vmem>>, vector<1x1x16x16x8xbf16>
    %53 = vector.shape_cast %52 : vector<1x1x16x16x8xbf16> to vector<16x16x8xbf16>
    %54 = vector.shape_cast %53 : vector<16x16x8xbf16> to vector<256x8xbf16>
    %c0_48 = arith.constant 0 : index
    %c64 = arith.constant 64 : index
    %55 = vector.load %arg7[%c0_48, %c64] : memref<256x72xbf16, #tpu.memory_space<vmem>>, vector<256x8xbf16>
    tpu.vector_store %arg7[%c0_48, %c64], %54 {strides = array<i32>} : memref<256x72xbf16, #tpu.memory_space<vmem>>, vector<256x8xbf16>,
    %c0_49 = arith.constant 0 : index
    %c0_50 = arith.constant 0 : index
    %c0_51 = arith.constant 0 : index
    %56 = vector.load %arg4[%c0_49, %c0_50, %c0_51] : memref<1x16x72xbf16, #tpu.memory_space<vmem>>, vector<1x16x72xbf16>
    %57 = vector.shape_cast %56 : vector<1x16x72xbf16> to vector<16x72xbf16>
    %c0_52 = arith.constant 0 : index
    %c0_53 = arith.constant 0 : index
    %58 = vector.load %arg7[%c0_52, %c0_53] : memref<256x72xbf16, #tpu.memory_space<vmem>>, vector<256x72xbf16>
    %cst = arith.constant dense<0.000000e+00> : vector<16x256xf32>
    %59 = tpu.matmul %57, %58, %cst {dimension_numbers = #tpu.dot_dimension_numbers<[1], [1], [0], [0], [0, 0, 1, 0], [], []>} : vector<16x72xbf16>, vector<256x72xbf16>, vector<16x256xf32> -> vector<16x256xf32>
    %c0_54 = arith.constant 0 : index
    %c0_55 = arith.constant 0 : index
    %c0_56 = arith.constant 0 : index
    %60 = vector.load %arg5[%c0_54, %c0_55, %c0_56] : memref<1x16x1xf32, #tpu.memory_space<vmem>>, vector<1x16x1xf32>
    %61 = vector.shape_cast %60 : vector<1x16x1xf32> to vector<16x1xf32>
    %62 = vector.broadcast %61 : vector<16x1xf32> to vector<16x256xf32>
    %63 = arith.addf %59, %62 : vector<16x256xf32>
    %c0_57 = arith.constant 0 : index
    %c0_58 = arith.constant 0 : index
    %c0_59 = arith.constant 0 : index
    %64 = vector.load %arg6[%c0_57, %c0_58, %c0_59] : memref<1x16x256xf32, #tpu.memory_space<vmem>>, vector<1x16x256xf32>
    %65 = vector.shape_cast %64 : vector<1x16x256xf32> to vector<16x256xf32>
    %66 = vector.shape_cast %63 : vector<16x256xf32> to vector<1x16x256xf32>
    tpu.vector_store %arg6[%c0_57, %c0_58, %c0_59], %66 {strides = array<i32>} : memref<1x16x256xf32, #tpu.memory_space<vmem>>, vector<1x16x256xf32>,
    return
  }
  func.func @transform_0(%arg0: i32, %arg1: i32, %arg2: i32) -> (i32, i32, i32, i32, i32) {
    %c0_i32 = arith.constant 0 : i32
    %c0_i32_0 = arith.constant 0 : i32
    %c0_i32_1 = arith.constant 0 : i32
    %c0_i32_2 = arith.constant 0 : i32
    %c0_i32_3 = arith.constant 0 : i32
    return %arg0, %c0_i32, %c0_i32_0, %c0_i32_1, %c0_i32_2 : i32, i32, i32, i32, i32
  }
  func.func @transform_1(%arg0: i32, %arg1: i32, %arg2: i32) -> (i32, i32, i32) {
    %c0_i32 = arith.constant 0 : i32
    %c0_i32_0 = arith.constant 0 : i32
    return %arg0, %arg1, %c0_i32 : i32, i32, i32
  }
  func.func @transform_2(%arg0: i32, %arg1: i32, %arg2: i32) -> (i32, i32, i32) {
    %c0_i32 = arith.constant 0 : i32
    %c0_i32_0 = arith.constant 0 : i32
    return %arg0, %arg1, %c0_i32 : i32, i32, i32
  }
  func.func @transform_3(%arg0: i32, %arg1: i32, %arg2: i32) -> (i32, i32, i32) {
    %c0_i32 = arith.constant 0 : i32
    return %arg0, %arg1, %arg2 : i32, i32, i32
  }
}

</mosaic_0001>

<llo_original>
// kernel: forward.2
$region0: #{forward.2}
  #allocation0 [shape = 'u32[]', space=smem, size = 0x4, offset = 0x4, fixed_abs, tag = 'smem constant byte address 0x4 - core index']
  #allocation1 [shape = 'u32[72,128]{1,0:T(1,128)}', space=vmem, size = 0x9000, scoped, tag = 'internal scratch']
  %s0 = inlined_call_operand.vmem [shape: f32[2,8], index: 0, kind: input, shape index: {}]
  %s1 = inlined_call_operand.vmem [shape: f32[8,4], index: 1, kind: input, shape index: {}]
  %s2 = inlined_call_operand.vmem [shape: f32[1,4], index: 2, kind: input, shape index: {}]
  %s3 = inlined_call_operand.vmem [shape: f32[4,4], index: 3, kind: input, shape index: {}]
  %s4 = inlined_call_operand.vmem [shape: f32[1,4], index: 4, kind: input, shape index: {}]
  %s5 = inlined_call_operand.vmem [shape: f32[2,4], index: 5, kind: output, shape index: {}]
  %s6 = sld [smem:[#allocation0]]
  $region30: #{forward.2} parent=0
    _
  %s8 = ssub.s32 1, %s6
  %s9 = scalar_select 0, %s8, %s6
  // Predicated region
  $region2: #{forward.2} parent=0 // pred_check
    _
  $region3: #{forward.2} parent=0 // pred_check_branch
    %11 = sbr.rel (0) target = $region5
  $region4: #{forward.2} parent=0 // pred_region
    _
  $region5: #{forward.2} parent=0 // pred_fallthru
    _
  // Predicated region
  $region6: #{forward.2} parent=0 // pred_check
    _
  $region7: #{forward.2} parent=0 // pred_check_branch
    %13 = sbr.rel (0) target = $region9
  $region8: #{forward.2} parent=0 // pred_region
    _
  $region9: #{forward.2} parent=0 // pred_fallthru
    _
  // Predicated region
  $region10: #{forward.2} parent=0 // pred_check
    _
  $region11: #{forward.2} parent=0 // pred_check_branch
    %15 = sbr.rel (0) target = $region13
  $region12: #{forward.2} parent=0 // pred_region
    _
  $region13: #{forward.2} parent=0 // pred_fallthru
    _
  // Predicated region
  $region14: #{forward.2} parent=0 // pred_check
    _
  $region15: #{forward.2} parent=0 // pred_check_branch
    %17 = sbr.rel (0) target = $region17
  $region16: #{forward.2} parent=0 // pred_region
    _
  $region17: #{forward.2} parent=0 // pred_fallthru
    _
  // Predicated region
  $region18: #{forward.2} parent=0 // pred_check
    _
  $region19: #{forward.2} parent=0 // pred_check_branch
    %19 = sbr.rel (0) target = $region21
  $region20: #{forward.2} parent=0 // pred_region
    _
  $region21: #{forward.2} parent=0 // pred_fallthru
    _
  %v20 = vld [vmem:[%s0] sm:$0x3]
  %v21 = vld [vmem:[%s1] sm:$0xff]
  %v22 = vld [vmem:[%s2] sm:$0x1]
  %v24 = vperm.slane %v22, 0
  %vm26 = vcmask 64512
  %v28 = vsel %vm26, %v20, 0
  %30 = vmatpush.msra.mxu0 0.0
  %31 = vmatpush.msra.mxu0 0.0
  %32 = vmatpush.msra.mxu0 0.0
  %33 = vmatpush.msra.mxu0 0.0
  %34 = vmatpush.msra.mxu0 0.0
  %35 = vmatpush.msra.mxu0 0.0
  %36 = vmatpush.msra.mxu0 0.0
  %37 = vmatpush.msra.mxu0 0.0
  %38 = vmatpush.msra.mxu0 0.0
  %39 = vmatpush.msra.mxu0 0.0
  %40 = vmatpush.msra.mxu0 0.0
  %41 = vmatpush.msra.mxu0 0.0
  %42 = vmatpush.msra.mxu0 0.0
  %43 = vmatpush.msra.mxu0 0.0
  %44 = vmatpush.msra.mxu0 0.0
  %45 = vmatpush.msra.mxu0 %v21
  %46 = vmatmul.f32.gmra.mxu0 %v28
  %v47 = vpop.f32.mrf.mxu0
  %v48 = vadd.f32 %v24, %v47
  %49 = vdwg.mxu0
  %v50 = vmax.f32 %v48, 0.0
  %v51 = vld [vmem:[%s3] sm:$0xf]
  %v52 = vld [vmem:[%s4] sm:$0x1]
  %v54 = vperm.slane %v52, 0
  %vm56 = vcmask 31744
  %v58 = vsel %vm56, %v50, 0
  %vm60 = vcmask 1043456
  %v62 = vsel %vm60, %v51, 0
  %64 = vmatpush.msra.mxu0 0.0
  %65 = vmatpush.msra.mxu0 0.0
  %66 = vmatpush.msra.mxu0 0.0
  %67 = vmatpush.msra.mxu0 0.0
  %68 = vmatpush.msra.mxu0 0.0
  %69 = vmatpush.msra.mxu0 0.0
  %70 = vmatpush.msra.mxu0 0.0
  %71 = vmatpush.msra.mxu0 0.0
  %72 = vmatpush.msra.mxu0 0.0
  %73 = vmatpush.msra.mxu0 0.0
  %74 = vmatpush.msra.mxu0 0.0
  %75 = vmatpush.msra.mxu0 0.0
  %76 = vmatpush.msra.mxu0 0.0
  %77 = vmatpush.msra.mxu0 0.0
  %78 = vmatpush.msra.mxu0 0.0
  %79 = vmatpush.msra.mxu0 %v62
  %80 = vmatmul.f32.gmra.mxu0 %v58
  %v81 = vpop.f32.mrf.mxu0
  %v82 = vadd.f32 %v54, %v81
  %83 = vdwg.mxu0
  %vm84 = vcmask 25600
  %v85 = vsel %vm84, %v82, -inf
  %86 = vmax.xlane.f32.xlu0 %v85
  %v87 = vpop.xlane.xlu0 %86
  %v88 = vsub.f32 %v82, %v87
  %v89 = vmul.f32 %v88, 1.442695
  %v90 = vpow.pop %v89
  %v91 = vsel %vm84, %v90, 0.0
  %92 = vadd.xlane.f32.xlu0 %v91
  %v93 = vpop.xlane.xlu0 %92
  %v94 = vrcp.pop %v93
  %v95 = vmul.f32 %v93, %v94
  %v96 = vsub.f32 1.0, %v95
  %v97 = vmul.f32 %v94, %v96
  %v98 = vadd.f32 %v94, %v97
  %vm99 = vweird.f32 %v93
  %vm100 = vweird.f32 %v94
  %vm101 = vmor %vm99, %vm100
  %v102 = vsel %vm101, %v94, %v98
  %v103 = vand.u32 2147483647, %v93
  %vm104 = vcmp.eq.f32.partialorder %v103, 8.507059e+37
  %v105 = vand.u32 %v93, 2147483648
  %v106 = vor.u32 1.1754944e-38, %v105
  %v107 = vsel %vm104, %v106, %v102
  %v108 = vmul.f32 %v90, %v107
  %109 = vst.msk [vmem:[%s5] sm:$0x3] %vm84, %v108
  // Predicated region
  $region22: #{forward.2} parent=0 // pred_check
    _
  $region23: #{forward.2} parent=0 // pred_check_branch
    %111 = sbr.rel (0) target = $region25
  $region24: #{forward.2} parent=0 // pred_region
    _
  $region25: #{forward.2} parent=0 // pred_fallthru
    _
  // Predicated region
  $region26: #{forward.2} parent=0 // pred_check
    _
  $region27: #{forward.2} parent=0 // pred_check_branch
    %113 = sbr.rel (0) target = $region29
  $region28: #{forward.2} parent=0 // pred_region
    _
  $region29: #{forward.2} parent=0 // pred_fallthru
    _

// kernel: forward.3
$region0: #{forward.3}
  #allocation0 [shape = 'u32[]', space=smem, size = 0x4, offset = 0x4, fixed_abs, tag = 'smem constant byte address 0x4 - core index']
  #allocation1 [shape = 'u32[72,128]{1,0:T(1,128)}', space=vmem, size = 0x9000, scoped, tag = 'internal scratch']
  #allocation2 [shape = 'bf16[256,72]{1,0:T(8,128)(2,1)}', space=vmem, size = 0x10000, scoped, tag = 'scratch operand']
  %s0 = inlined_call_operand.vmem [shape: bf16[2,1,18,18,8], index: 0, kind: input, shape index: {}]
  %s1 = inlined_call_operand.vmem [shape: bf16[2,16,72], index: 1, kind: input, shape index: {}]
  %s2 = inlined_call_operand.vmem [shape: f32[2,16,1], index: 2, kind: input, shape index: {}]
  %s3 = inlined_call_operand.vmem [shape: f32[2,16,256], index: 3, kind: output, shape index: {}]
  %s4 = sld [smem:[#allocation0]]
  $region45: #{forward.3} parent=0
    _
  %s6 = ssub.s32 1, %s4
  %s7 = scalar_select 0, %s6, %s4
  loop: start=0, step=1, limit=4
  $region2: #{forward.3} parent=0 // loop_pre_header
    _
  $region3: #{forward.3} parent=0 // loop_header
    %s9 = sphi 0, %s13
    %p10 = scmp.ge.s32.totalorder %s9, 4
    %s16 = sphi 0, %s35
    %s17 = sphi 0, %s31
    %s18 = sphi 0, %s27
    %s19 = sphi 0, %s16
    %s20 = sphi 0, %s17
    %s21 = sphi 0, %s18
    %s22 = sphi 0, %s19
    %s23 = sphi 0, %s20
    %s24 = sphi 0, %s21
    %s38 = sphi 0, %s40
    %s41 = sphi 0, %s38
    %s42 = sphi 0, %s41
    %s58 = sphi 0, %s42
    %s66 = sphi 0, %s68
    %s69 = sphi 0, %s66
    %s70 = sphi 0, %s69
    %s86 = sphi 0, %s70
    %s94 = sphi 0, %s96
    %s97 = sphi 0, %s94
    %s98 = sphi 0, %s97
    %s114 = sphi 0, %s98
    %s124 = sphi 0, %s126
    %s127 = sphi 0, %s124
    %s128 = sphi 0, %s127
    %s144 = sphi 0, %s128
  $region4: #{forward.3} parent=0 // loop_header_branch
    %12 = sbr.rel (%p10) target = $region8
  $region5: #{forward.3} parent=0 // loop_body
    %s14 = ssub.s32 %s9, 1
    %s15 = ssub.s32 %s9, 2
    %s25 = sadd.s32 1, %s18
    %p26 = scmp.ge.s32.totalorder %s25, 1
    %s27 = scalar_select %p26, 0, %s25
    %s28 = sadd.s32 1, %s17
    %s29 = scalar_select %p26, %s28, %s17
    %p30 = scmp.ge.s32.totalorder %s29, 1
    %s31 = scalar_select %p30, 0, %s29
    %s32 = sadd.s32 1, %s16
    %s33 = scalar_select %p30, %s32, %s16
    %p34 = scmp.ge.s32.totalorder %s33, 2
    %s35 = scalar_select %p34, 0, %s33
    %s36 = ssub.s32 %s16, %s35
    %p37 = scmp.eq.s32.totalorder %s36, 0
    %s39 = sadd.s32 %s38, 1
    %s40 = scalar_select %p37, %s38, %s39
    %p43 = pneg %p37
    %p44 = scmp.eq.s32.totalorder %s9, 1
    %p45 = por %p43, %p44
    %p46 = scmp.ne.s32.totalorder %s38, %s41
    %p47 = scmp.eq.s32.totalorder %s9, 0
    %p48 = por %p46, %p47
    %p49 = scmp.ne.s32.totalorder %s38, %s41
    %p50 = scmp.eq.s32.totalorder %s14, 1
    %p51 = por %p49, %p50
    %p52 = scmp.ne.s32.totalorder %s41, %s42
    %p53 = scmp.eq.s32.totalorder %s14, 0
    %p54 = por %p52, %p53
    %p55 = scmp.ne.s32.totalorder %s41, %s42
    %p56 = scmp.eq.s32.totalorder %s15, 1
    %p57 = por %p55, %p56
    %p59 = scmp.ne.s32.totalorder %s42, %s58
    %p60 = scmp.eq.s32.totalorder %s15, 0
    %p61 = por %p59, %p60
    %s62 = ssub.s32 %s16, %s35
    %s63 = ssub.s32 %s17, %s31
    %s64 = sor.u32 %s62, %s63
    %p65 = scmp.eq.s32.totalorder %s64, 0
    %s67 = sadd.s32 %s66, 1
    %s68 = scalar_select %p65, %s66, %s67
    %p71 = pneg %p65
    %p72 = scmp.eq.s32.totalorder %s9, 1
    %p73 = por %p71, %p72
    %p74 = scmp.ne.s32.totalorder %s66, %s69
    %p75 = scmp.eq.s32.totalorder %s9, 0
    %p76 = por %p74, %p75
    %p77 = scmp.ne.s32.totalorder %s66, %s69
    %p78 = scmp.eq.s32.totalorder %s14, 1
    %p79 = por %p77, %p78
    %p80 = scmp.ne.s32.totalorder %s69, %s70
    %p81 = scmp.eq.s32.totalorder %s14, 0
    %p82 = por %p80, %p81
    %p83 = scmp.ne.s32.totalorder %s69, %s70
    %p84 = scmp.eq.s32.totalorder %s15, 1
    %p85 = por %p83, %p84
    %p87 = scmp.ne.s32.totalorder %s70, %s86
    %p88 = scmp.eq.s32.totalorder %s15, 0
    %p89 = por %p87, %p88
    %s90 = ssub.s32 %s16, %s35
    %s91 = ssub.s32 %s17, %s31
    %s92 = sor.u32 %s90, %s91
    %p93 = scmp.eq.s32.totalorder %s92, 0
    %s95 = sadd.s32 %s94, 1
    %s96 = scalar_select %p93, %s94, %s95
    %p99 = pneg %p93
    %p100 = scmp.eq.s32.totalorder %s9, 1
    %p101 = por %p99, %p100
    %p102 = scmp.ne.s32.totalorder %s94, %s97
    %p103 = scmp.eq.s32.totalorder %s9, 0
    %p104 = por %p102, %p103
    %p105 = scmp.ne.s32.totalorder %s94, %s97
    %p106 = scmp.eq.s32.totalorder %s14, 1
    %p107 = por %p105, %p106
    %p108 = scmp.ne.s32.totalorder %s97, %s98
    %p109 = scmp.eq.s32.totalorder %s14, 0
    %p110 = por %p108, %p109
    %p111 = scmp.ne.s32.totalorder %s97, %s98
    %p112 = scmp.eq.s32.totalorder %s15, 1
    %p113 = por %p111, %p112
    %p115 = scmp.ne.s32.totalorder %s98, %s114
    %p116 = scmp.eq.s32.totalorder %s15, 0
    %p117 = por %p115, %p116
    %s118 = ssub.s32 %s16, %s35
    %s119 = ssub.s32 %s17, %s31
    %s120 = sor.u32 %s118, %s119
    %s121 = ssub.s32 %s18, %s27
    %s122 = sor.u32 %s120, %s121
    %p123 = scmp.eq.s32.totalorder %s122, 0
    %s125 = sadd.s32 %s124, 1
    %s126 = scalar_select %p123, %s124, %s125
    %p129 = pneg %p123
    %p130 = scmp.eq.s32.totalorder %s9, 1
    %p131 = por %p129, %p130
    %p132 = scmp.ne.s32.totalorder %s124, %s127
    %p133 = scmp.eq.s32.totalorder %s9, 0
    %p134 = por %p132, %p133
    %p135 = scmp.ne.s32.totalorder %s124, %s127
    %p136 = scmp.eq.s32.totalorder %s14, 1
    %p137 = por %p135, %p136
    %p138 = scmp.ne.s32.totalorder %s127, %s128
    %p139 = scmp.eq.s32.totalorder %s14, 0
    %p140 = por %p138, %p139
    %p141 = scmp.ne.s32.totalorder %s127, %s128
    %p142 = scmp.eq.s32.totalorder %s15, 1
    %p143 = por %p141, %p142
    %p145 = scmp.ne.s32.totalorder %s128, %s144
    %p146 = scmp.eq.s32.totalorder %s15, 0
    %p147 = por %p145, %p146
    %p148 = scmp.le.s32.totalorder 1, %s9
    %p149 = scmp.lt.s32.totalorder %s9, 3
    %p150 = pnand %p148, %p149
    %p151 = pneg %p150
    // Predicated region
    $region9: #{forward.3} parent=5 // pred_check
      _
    $region10: #{forward.3} parent=5 // pred_check_branch
      %153 = sbr.rel (%p150) target = $region12
    $region11: #{forward.3} parent=5 // pred_region
      %s154 = ssub.s32 %s9, 1
    $region12: #{forward.3} parent=5 // pred_fallthru
      _
    %p155 = scmp.lt.s32.totalorder %s9, 2
    // Predicated region
    $region13: #{forward.3} parent=5 // pred_check
      %p156 = pneg %p155
    $region14: #{forward.3} parent=5 // pred_check_branch
      %158 = sbr.rel (%p156) target = $region16
    $region15: #{forward.3} parent=5 // pred_region
      // Predicated region
      $region17: #{forward.3} parent=15 // pred_check
        %p159 = pneg %p48
      $region18: #{forward.3} parent=15 // pred_check_branch
        %161 = sbr.rel (%p159) target = $region20
      $region19: #{forward.3} parent=15 // pred_region
        %p162 = scmp.lt.s32.totalorder %s16, 1
        %s163 = scalar_select %p162, %s16, 1
        %s164 = smul.addr %s163, 54
        %s165 = smul.addr %s164, 4
        %s166 = scalar_lea.vmem %s0, %s165
      $region20: #{forward.3} parent=15 // pred_fallthru
        _
      // Predicated region
      $region21: #{forward.3} parent=15 // pred_check
        %p167 = pneg %p76
      $region22: #{forward.3} parent=15 // pred_check_branch
        %169 = sbr.rel (%p167) target = $region24
      $region23: #{forward.3} parent=15 // pred_region
        %s170 = smul.u32 2, %s17
        %p171 = scmp.lt.s32.totalorder %s16, 1
        %s172 = scalar_select %p171, %s16, 1
        %p173 = scmp.lt.s32.totalorder %s170, 1
        %s174 = scalar_select %p173, %s170, 1
        %s175 = smul.addr %s172, 2
        %s176 = sadd.s32 %s174, %s175
        %s177 = smul.addr %s176, 4
        %s178 = scalar_lea.vmem %s1, %s177
        %s179 = smul.u32 2, %s17
      $region24: #{forward.3} parent=15 // pred_fallthru
        _
      // Predicated region
      $region25: #{forward.3} parent=15 // pred_check
        %p180 = pneg %p104
      $region26: #{forward.3} parent=15 // pred_check_branch
        %182 = sbr.rel (%p180) target = $region28
      $region27: #{forward.3} parent=15 // pred_region
        %s183 = smul.u32 2, %s17
        %p184 = scmp.lt.s32.totalorder %s16, 1
        %s185 = scalar_select %p184, %s16, 1
        %p186 = scmp.lt.s32.totalorder %s183, 1
        %s187 = scalar_select %p186, %s183, 1
        %s188 = smul.addr %s185, 2
        %s189 = sadd.s32 %s187, %s188
        %s190 = smul.addr %s189, 8
        %s191 = scalar_lea.vmem %s2, %s190
        %s192 = smul.u32 2, %s17
      $region28: #{forward.3} parent=15 // pred_fallthru
        _
    $region16: #{forward.3} parent=5 // pred_fallthru
      _
    %p193 = scmp.le.s32.totalorder 1, %s9
    %p194 = scmp.lt.s32.totalorder %s9, 3
    %p195 = pnand %p193, %p194
    %p196 = pneg %p195
    // Predicated region
    $region29: #{forward.3} parent=5 // pred_check
      _
    $region30: #{forward.3} parent=5 // pred_check_branch
      %198 = sbr.rel (%p195) target = $region32
    $region31: #{forward.3} parent=5 // pred_region
      %s199 = ssub.s32 %s9, 1
      %p200 = scmp.lt.s32.totalorder %s19, 1
      %s201 = scalar_select %p200, %s19, 1
      %s202 = smul.addr %s201, 54
      %s203 = smul.addr %s202, 4
      %s204 = scalar_lea.vmem %s0, %s203
      %p205 = pneg %p54
      %p206 = pneg %p51
      %s207 = smul.u32 2, %s20
      %p208 = scmp.lt.s32.totalorder %s19, 1
      %s209 = scalar_select %p208, %s19, 1
      %p210 = scmp.lt.s32.totalorder %s207, 1
      %s211 = scalar_select %p210, %s207, 1
      %s212 = smul.addr %s209, 2
      %s213 = sadd.s32 %s211, %s212
      %s214 = smul.addr %s213, 4
      %s215 = scalar_lea.vmem %s1, %s214
      %p216 = pneg %p82
      %p217 = pneg %p79
      %s218 = smul.u32 2, %s20
      %p219 = scmp.lt.s32.totalorder %s19, 1
      %s220 = scalar_select %p219, %s19, 1
      %p221 = scmp.lt.s32.totalorder %s218, 1
      %s222 = scalar_select %p221, %s218, 1
      %s223 = smul.addr %s220, 2
      %s224 = sadd.s32 %s222, %s223
      %s225 = smul.addr %s224, 8
      %s226 = scalar_lea.vmem %s2, %s225
      %p227 = pneg %p110
      %p228 = pneg %p107
      %p229 = pneg %p140
      %p230 = pneg %p137
      %s231 = smul.u32 2, %s20
      %s232 = smul.u32 2, %s21
      %p233 = scmp.lt.s32.totalorder %s19, 1
      %s234 = scalar_select %p233, %s19, 1
      %p235 = scmp.lt.s32.totalorder %s231, 1
      %s236 = scalar_select %p235, %s231, 1
      %p237 = scmp.lt.s32.totalorder %s232, 1
      %s238 = scalar_select %p237, %s232, 1
      %s239 = smul.addr %s236, 2
      %s240 = sadd.s32 %s238, %s239
      %s241 = smul.addr %s234, 4
      %s242 = sadd.s32 %s240, %s241
      %s243 = smul.addr %s242, 8
      %s244 = scalar_lea.vmem %s3, %s243
      %p245 = scmp.lt.s32.totalorder %s19, 1
      %s246 = scalar_select %p245, %s19, 1
      %s247 = smul.addr %s246, 54
      %s248 = smul.addr %s247, 4
      %s249 = scalar_lea.vmem %s0, %s248
      %s250 = smul.u32 2, %s20
      %p251 = scmp.lt.s32.totalorder %s19, 1
      %s252 = scalar_select %p251, %s19, 1
      %p253 = scmp.lt.s32.totalorder %s250, 1
      %s254 = scalar_select %p253, %s250, 1
      %s255 = smul.addr %s252, 2
      %s256 = sadd.s32 %s254, %s255
      %s257 = smul.addr %s256, 4
      %s258 = scalar_lea.vmem %s1, %s257
      %s259 = smul.u32 2, %s20
      %s260 = smul.u32 2, %s20
      %p261 = scmp.lt.s32.totalorder %s19, 1
      %s262 = scalar_select %p261, %s19, 1
      %p263 = scmp.lt.s32.totalorder %s260, 1
      %s264 = scalar_select %p263, %s260, 1
      %s265 = smul.addr %s262, 2
      %s266 = sadd.s32 %s264, %s265
      %s267 = smul.addr %s266, 8
      %s268 = scalar_lea.vmem %s2, %s267
      %s269 = smul.u32 2, %s20
      %s270 = smul.u32 2, %s20
      %s271 = smul.u32 2, %s21
      %p272 = scmp.lt.s32.totalorder %s19, 1
      %s273 = scalar_select %p272, %s19, 1
      %p274 = scmp.lt.s32.totalorder %s270, 1
      %s275 = scalar_select %p274, %s270, 1
      %p276 = scmp.lt.s32.totalorder %s271, 1
      %s277 = scalar_select %p276, %s271, 1
      %s278 = smul.addr %s275, 2
      %s279 = sadd.s32 %s277, %s278
      %s280 = smul.addr %s273, 4
      %s281 = sadd.s32 %s279, %s280
      %s282 = smul.addr %s281, 8
      %s283 = scalar_lea.vmem %s3, %s282
      %s284 = smul.u32 2, %s20
      %s285 = smul.u32 2, %s21
      %s286 = smul.u32 %s21, 16
      %s287 = smul.u32 %s286, 3
      %s288 = smul.addr %s287, 4
      %s289 = scalar_lea.vmem %s249, %s288
      %v290 = vld [vmem:[%s289] sm:$0xf]
      %v291 = vld [vmem:[%s289 + $0x4] sm:$0xf]
      %v292 = vld [vmem:[%s289 + $0xc] sm:$0xf]
      %v293 = vld [vmem:[%s289 + $0x10] sm:$0xf]
      %v294 = vld [vmem:[%s289 + $0x18] sm:$0xf]
      %v295 = vld [vmem:[%s289 + $0x1c] sm:$0xf]
      %v296 = vld [vmem:[%s289 + $0x24] sm:$0xf]
      %v297 = vld [vmem:[%s289 + $0x28] sm:$0xf]
      %v298 = vld [vmem:[%s289 + $0x30] sm:$0xf]
      %v299 = vld [vmem:[%s289 + $0x34] sm:$0xf]
      %v300 = vld [vmem:[%s289 + $0x3c] sm:$0xf]
      %v301 = vld [vmem:[%s289 + $0x40] sm:$0xf]
      %v302 = vld [vmem:[%s289 + $0x48] sm:$0xf]
      %v303 = vld [vmem:[%s289 + $0x4c] sm:$0xf]
      %v304 = vld [vmem:[%s289 + $0x54] sm:$0xf]
      %v305 = vld [vmem:[%s289 + $0x58] sm:$0xf]
      %v306 = vld [vmem:[%s289 + $0x60] sm:$0xf]
      %v307 = vld [vmem:[%s289 + $0x64] sm:$0xf]
      %v308 = vld [vmem:[%s289 + $0x6c] sm:$0xf]
      %v309 = vld [vmem:[%s289 + $0x70] sm:$0xf]
      %v310 = vld [vmem:[%s289 + $0x78] sm:$0xf]
      %v311 = vld [vmem:[%s289 + $0x7c] sm:$0xf]
      %v312 = vld [vmem:[%s289 + $0x84] sm:$0xf]
      %v313 = vld [vmem:[%s289 + $0x88] sm:$0xf]
      %v314 = vld [vmem:[%s289 + $0x90] sm:$0xf]
      %v315 = vld [vmem:[%s289 + $0x94] sm:$0xf]
      %v316 = vld [vmem:[%s289 + $0x9c] sm:$0xf]
      %v317 = vld [vmem:[%s289 + $0xa0] sm:$0xf]
      %v318 = vld [vmem:[%s289 + $0xa8] sm:$0xf]
      %v319 = vld [vmem:[%s289 + $0xac] sm:$0xf]
      %v320 = vld [vmem:[%s289 + $0xb4] sm:$0xf]
      %v321 = vld [vmem:[%s289 + $0xb8] sm:$0xf]
      %vm322 = vcmask 60416
      %323 = vst.msk [vmem:[#allocation2] sm:$0xf] %vm322, %v290
      %324 = vst.msk [vmem:[#allocation2 + $0x4] sm:$0xf] %vm322, %v291
      %325 = vst.msk [vmem:[#allocation2 + $0x8] sm:$0xf] %vm322, %v292
      %326 = vst.msk [vmem:[#allocation2 + $0xc] sm:$0xf] %vm322, %v293
      %327 = vst.msk [vmem:[#allocation2 + $0x10] sm:$0xf] %vm322, %v294
      %328 = vst.msk [vmem:[#allocation2 + $0x14] sm:$0xf] %vm322, %v295
      %329 = vst.msk [vmem:[#allocation2 + $0x18] sm:$0xf] %vm322, %v296
      %330 = vst.msk [vmem:[#allocation2 + $0x1c] sm:$0xf] %vm322, %v297
      %331 = vst.msk [vmem:[#allocation2 + $0x20] sm:$0xf] %vm322, %v298
      %332 = vst.msk [vmem:[#allocation2 + $0x24] sm:$0xf] %vm322, %v299
      %333 = vst.msk [vmem:[#allocation2 + $0x28] sm:$0xf] %vm322, %v300
      %334 = vst.msk [vmem:[#allocation2 + $0x2c] sm:$0xf] %vm322, %v301
      %335 = vst.msk [vmem:[#allocation2 + $0x30] sm:$0xf] %vm322, %v302
      %336 = vst.msk [vmem:[#allocation2 + $0x34] sm:$0xf] %vm322, %v303
      %337 = vst.msk [vmem:[#allocation2 + $0x38] sm:$0xf] %vm322, %v304
      %338 = vst.msk [vmem:[#allocation2 + $0x3c] sm:$0xf] %vm322, %v305
      %339 = vst.msk [vmem:[#allocation2 + $0x40] sm:$0xf] %vm322, %v306
      %340 = vst.msk [vmem:[#allocation2 + $0x44] sm:$0xf] %vm322, %v307
      %341 = vst.msk [vmem:[#allocation2 + $0x48] sm:$0xf] %vm322, %v308
      %342 = vst.msk [vmem:[#allocation2 + $0x4c] sm:$0xf] %vm322, %v309
      %343 = vst.msk [vmem:[#allocation2 + $0x50] sm:$0xf] %vm322, %v310
      %344 = vst.msk [vmem:[#allocation2 + $0x54] sm:$0xf] %vm322, %v311
      %345 = vst.msk [vmem:[#allocation2 + $0x58] sm:$0xf] %vm322, %v312
      %346 = vst.msk [vmem:[#allocation2 + $0x5c] sm:$0xf] %vm322, %v313
      %347 = vst.msk [vmem:[#allocation2 + $0x60] sm:$0xf] %vm322, %v314
      %348 = vst.msk [vmem:[#allocation2 + $0x64] sm:$0xf] %vm322, %v315
      %349 = vst.msk [vmem:[#allocation2 + $0x68] sm:$0xf] %vm322, %v316
      %350 = vst.msk [vmem:[#allocation2 + $0x6c] sm:$0xf] %vm322, %v317
      %351 = vst.msk [vmem:[#allocation2 + $0x70] sm:$0xf] %vm322, %v318
      %352 = vst.msk [vmem:[#allocation2 + $0x74] sm:$0xf] %vm322, %v319
      %353 = vst.msk [vmem:[#allocation2 + $0x78] sm:$0xf] %vm322, %v320
      %354 = vst.msk [vmem:[#allocation2 + $0x7c] sm:$0xf] %vm322, %v321
      %v355 = vld [vmem:[%s289] sm:$0xf]
      %v356 = vld [vmem:[%s289 + $0x4] sm:$0xf]
      %v357 = vld [vmem:[%s289 + $0x8] sm:$0x1]
      %v358 = vld [vmem:[%s289 + $0xc] sm:$0xf]
      %v359 = vld [vmem:[%s289 + $0x10] sm:$0xf]
      %v360 = vld [vmem:[%s289 + $0x14] sm:$0x1]
      %v361 = vld [vmem:[%s289 + $0x18] sm:$0xf]
      %v362 = vld [vmem:[%s289 + $0x1c] sm:$0xf]
      %v363 = vld [vmem:[%s289 + $0x20] sm:$0x1]
      %v364 = vld [vmem:[%s289 + $0x24] sm:$0xf]
      %v365 = vld [vmem:[%s289 + $0x28] sm:$0xf]
      %v366 = vld [vmem:[%s289 + $0x2c] sm:$0x1]
      %v367 = vld [vmem:[%s289 + $0x30] sm:$0xf]
      %v368 = vld [vmem:[%s289 + $0x34] sm:$0xf]
      %v369 = vld [vmem:[%s289 + $0x38] sm:$0x1]
      %v370 = vld [vmem:[%s289 + $0x3c] sm:$0xf]
      %v371 = vld [vmem:[%s289 + $0x40] sm:$0xf]
      %v372 = vld [vmem:[%s289 + $0x44] sm:$0x1]
      %v373 = vld [vmem:[%s289 + $0x48] sm:$0xf]
      %v374 = vld [vmem:[%s289 + $0x4c] sm:$0xf]
      %v375 = vld [vmem:[%s289 + $0x50] sm:$0x1]
      %v376 = vld [vmem:[%s289 + $0x54] sm:$0xf]
      %v377 = vld [vmem:[%s289 + $0x58] sm:$0xf]
      %v378 = vld [vmem:[%s289 + $0x5c] sm:$0x1]
      %v379 = vld [vmem:[%s289 + $0x60] sm:$0xf]
      %v380 = vld [vmem:[%s289 + $0x64] sm:$0xf]
      %v381 = vld [vmem:[%s289 + $0x68] sm:$0x1]
      %v382 = vld [vmem:[%s289 + $0x6c] sm:$0xf]
      %v383 = vld [vmem:[%s289 + $0x70] sm:$0xf]
      %v384 = vld [vmem:[%s289 + $0x74] sm:$0x1]
      %v385 = vld [vmem:[%s289 + $0x78] sm:$0xf]
      %v386 = vld [vmem:[%s289 + $0x7c] sm:$0xf]
      %v387 = vld [vmem:[%s289 + $0x80] sm:$0x1]
      %v388 = vld [vmem:[%s289 + $0x84] sm:$0xf]
      %v389 = vld [vmem:[%s289 + $0x88] sm:$0xf]
      %v390 = vld [vmem:[%s289 + $0x8c] sm:$0x1]
      %v391 = vld [vmem:[%s289 + $0x90] sm:$0xf]
      %v392 = vld [vmem:[%s289 + $0x94] sm:$0xf]
      %v393 = vld [vmem:[%s289 + $0x98] sm:$0x1]
      %v394 = vld [vmem:[%s289 + $0x9c] sm:$0xf]
      %v395 = vld [vmem:[%s289 + $0xa0] sm:$0xf]
      %v396 = vld [vmem:[%s289 + $0xa4] sm:$0x1]
      %v397 = vld [vmem:[%s289 + $0xa8] sm:$0xf]
      %v398 = vld [vmem:[%s289 + $0xac] sm:$0xf]
      %v399 = vld [vmem:[%s289 + $0xb0] sm:$0x1]
      %v400 = vld [vmem:[%s289 + $0xb4] sm:$0xf]
      %v401 = vld [vmem:[%s289 + $0xb8] sm:$0xf]
      %v402 = vld [vmem:[%s289 + $0xbc] sm:$0x1]
      %vm403 = vsmask.f32 3328
      %vm404 = vsmask.f32 7440
      %vm405 = vmor %vm403, %vm404
      %v407 = vshrl.u32 %v355, 16
      %v409 = vrot.slane %v407, 4
      %v410 = vshll.u32 %v355, 16
      %v412 = vrot.slane %v410, 5
      %v413 = vor.u32 %v409, %v412
      %v414 = vrot.slane %v413, 4
      %v416 = vshll.u32 %v356, 16
      %v418 = vrot.slane %v416, 5
      %v419 = vsel %vm405, %v414, %v418
      %v420 = vshrl.u32 %v356, 16
      %v422 = vrot.slane %v420, 4
      %v423 = vor.u32 %v422, %v418
      %v424 = vrot.slane %v423, 4
      %v426 = vshll.u32 %v357, 16
      %v428 = vrot.slane %v426, 5
      %v429 = vsel %vm405, %v424, %v428
      %v431 = vshrl.u32 %v358, 16
      %v433 = vrot.slane %v431, 4
      %v434 = vshll.u32 %v358, 16
      %v436 = vrot.slane %v434, 5
      %v437 = vor.u32 %v433, %v436
      %v438 = vrot.slane %v437, 4
      %v440 = vshll.u32 %v359, 16
      %v442 = vrot.slane %v440, 5
      %v443 = vsel %vm405, %v438, %v442
      %v444 = vshrl.u32 %v359, 16
      %v446 = vrot.slane %v444, 4
      %v447 = vor.u32 %v446, %v442
      %v448 = vrot.slane %v447, 4
      %v450 = vshll.u32 %v360, 16
      %v452 = vrot.slane %v450, 5
      %v453 = vsel %vm405, %v448, %v452
      %v455 = vshrl.u32 %v361, 16
      %v457 = vrot.slane %v455, 4
      %v458 = vshll.u32 %v361, 16
      %v460 = vrot.slane %v458, 5
      %v461 = vor.u32 %v457, %v460
      %v462 = vrot.slane %v461, 4
      %v464 = vshll.u32 %v362, 16
      %v466 = vrot.slane %v464, 5
      %v467 = vsel %vm405, %v462, %v466
      %v468 = vshrl.u32 %v362, 16
      %v470 = vrot.slane %v468, 4
      %v471 = vor.u32 %v470, %v466
      %v472 = vrot.slane %v471, 4
      %v474 = vshll.u32 %v363, 16
      %v476 = vrot.slane %v474, 5
      %v477 = vsel %vm405, %v472, %v476
      %v479 = vshrl.u32 %v364, 16
      %v481 = vrot.slane %v479, 4
      %v482 = vshll.u32 %v364, 16
      %v484 = vrot.slane %v482, 5
      %v485 = vor.u32 %v481, %v484
      %v486 = vrot.slane %v485, 4
      %v488 = vshll.u32 %v365, 16
      %v490 = vrot.slane %v488, 5
      %v491 = vsel %vm405, %v486, %v490
      %v492 = vshrl.u32 %v365, 16
      %v494 = vrot.slane %v492, 4
      %v495 = vor.u32 %v494, %v490
      %v496 = vrot.slane %v495, 4
      %v498 = vshll.u32 %v366, 16
      %v500 = vrot.slane %v498, 5
      %v501 = vsel %vm405, %v496, %v500
      %v503 = vshrl.u32 %v367, 16
      %v505 = vrot.slane %v503, 4
      %v506 = vshll.u32 %v367, 16
      %v508 = vrot.slane %v506, 5
      %v509 = vor.u32 %v505, %v508
      %v510 = vrot.slane %v509, 4
      %v512 = vshll.u32 %v368, 16
      %v514 = vrot.slane %v512, 5
      %v515 = vsel %vm405, %v510, %v514
      %v516 = vshrl.u32 %v368, 16
      %v518 = vrot.slane %v516, 4
      %v519 = vor.u32 %v518, %v514
      %v520 = vrot.slane %v519, 4
      %v522 = vshll.u32 %v369, 16
      %v524 = vrot.slane %v522, 5
      %v525 = vsel %vm405, %v520, %v524
      %v527 = vshrl.u32 %v370, 16
      %v529 = vrot.slane %v527, 4
      %v530 = vshll.u32 %v370, 16
      %v532 = vrot.slane %v530, 5
      %v533 = vor.u32 %v529, %v532
      %v534 = vrot.slane %v533, 4
      %v536 = vshll.u32 %v371, 16
      %v538 = vrot.slane %v536, 5
      %v539 = vsel %vm405, %v534, %v538
      %v540 = vshrl.u32 %v371, 16
      %v542 = vrot.slane %v540, 4
      %v543 = vor.u32 %v542, %v538
      %v544 = vrot.slane %v543, 4
      %v546 = vshll.u32 %v372, 16
      %v548 = vrot.slane %v546, 5
      %v549 = vsel %vm405, %v544, %v548
      %v551 = vshrl.u32 %v373, 16
      %v553 = vrot.slane %v551, 4
      %v554 = vshll.u32 %v373, 16
      %v556 = vrot.slane %v554, 5
      %v557 = vor.u32 %v553, %v556
      %v558 = vrot.slane %v557, 4
      %v560 = vshll.u32 %v374, 16
      %v562 = vrot.slane %v560, 5
      %v563 = vsel %vm405, %v558, %v562
      %v564 = vshrl.u32 %v374, 16
      %v566 = vrot.slane %v564, 4
      %v567 = vor.u32 %v566, %v562
      %v568 = vrot.slane %v567, 4
      %v570 = vshll.u32 %v375, 16
      %v572 = vrot.slane %v570, 5
      %v573 = vsel %vm405, %v568, %v572
      %v575 = vshrl.u32 %v376, 16
      %v577 = vrot.slane %v575, 4
      %v578 = vshll.u32 %v376, 16
      %v580 = vrot.slane %v578, 5
      %v581 = vor.u32 %v577, %v580
      %v582 = vrot.slane %v581, 4
      %v584 = vshll.u32 %v377, 16
      %v586 = vrot.slane %v584, 5
      %v587 = vsel %vm405, %v582, %v586
      %v588 = vshrl.u32 %v377, 16
      %v590 = vrot.slane %v588, 4
      %v591 = vor.u32 %v590, %v586
      %v592 = vrot.slane %v591, 4
      %v594 = vshll.u32 %v378, 16
      %v596 = vrot.slane %v594, 5
      %v597 = vsel %vm405, %v592, %v596
      %v599 = vshrl.u32 %v379, 16
      %v601 = vrot.slane %v599, 4
      %v602 = vshll.u32 %v379, 16
      %v604 = vrot.slane %v602, 5
      %v605 = vor.u32 %v601, %v604
      %v606 = vrot.slane %v605, 4
      %v608 = vshll.u32 %v380, 16
      %v610 = vrot.slane %v608, 5
      %v611 = vsel %vm405, %v606, %v610
      %v612 = vshrl.u32 %v380, 16
      %v614 = vrot.slane %v612, 4
      %v615 = vor.u32 %v614, %v610
      %v616 = vrot.slane %v615, 4
      %v618 = vshll.u32 %v381, 16
      %v620 = vrot.slane %v618, 5
      %v621 = vsel %vm405, %v616, %v620
      %v623 = vshrl.u32 %v382, 16
      %v625 = vrot.slane %v623, 4
      %v626 = vshll.u32 %v382, 16
      %v628 = vrot.slane %v626, 5
      %v629 = vor.u32 %v625, %v628
      %v630 = vrot.slane %v629, 4
      %v632 = vshll.u32 %v383, 16
      %v634 = vrot.slane %v632, 5
      %v635 = vsel %vm405, %v630, %v634
      %v636 = vshrl.u32 %v383, 16
      %v638 = vrot.slane %v636, 4
      %v639 = vor.u32 %v638, %v634
      %v640 = vrot.slane %v639, 4
      %v642 = vshll.u32 %v384, 16
      %v644 = vrot.slane %v642, 5
      %v645 = vsel %vm405, %v640, %v644
      %v647 = vshrl.u32 %v385, 16
      %v649 = vrot.slane %v647, 4
      %v650 = vshll.u32 %v385, 16
      %v652 = vrot.slane %v650, 5
      %v653 = vor.u32 %v649, %v652
      %v654 = vrot.slane %v653, 4
      %v656 = vshll.u32 %v386, 16
      %v658 = vrot.slane %v656, 5
      %v659 = vsel %vm405, %v654, %v658
      %v660 = vshrl.u32 %v386, 16
      %v662 = vrot.slane %v660, 4
      %v663 = vor.u32 %v662, %v658
      %v664 = vrot.slane %v663, 4
      %v666 = vshll.u32 %v387, 16
      %v668 = vrot.slane %v666, 5
      %v669 = vsel %vm405, %v664, %v668
      %v671 = vshrl.u32 %v388, 16
      %v673 = vrot.slane %v671, 4
      %v674 = vshll.u32 %v388, 16
      %v676 = vrot.slane %v674, 5
      %v677 = vor.u32 %v673, %v676
      %v678 = vrot.slane %v677, 4
      %v680 = vshll.u32 %v389, 16
      %v682 = vrot.slane %v680, 5
      %v683 = vsel %vm405, %v678, %v682
      %v684 = vshrl.u32 %v389, 16
      %v686 = vrot.slane %v684, 4
      %v687 = vor.u32 %v686, %v682
      %v688 = vrot.slane %v687, 4
      %v690 = vshll.u32 %v390, 16
      %v692 = vrot.slane %v690, 5
      %v693 = vsel %vm405, %v688, %v692
      %v695 = vshrl.u32 %v391, 16
      %v697 = vrot.slane %v695, 4
      %v698 = vshll.u32 %v391, 16
      %v700 = vrot.slane %v698, 5
      %v701 = vor.u32 %v697, %v700
      %v702 = vrot.slane %v701, 4
      %v704 = vshll.u32 %v392, 16
      %v706 = vrot.slane %v704, 5
      %v707 = vsel %vm405, %v702, %v706
      %v708 = vshrl.u32 %v392, 16
      %v710 = vrot.slane %v708, 4
      %v711 = vor.u32 %v710, %v706
      %v712 = vrot.slane %v711, 4
      %v714 = vshll.u32 %v393, 16
      %v716 = vrot.slane %v714, 5
      %v717 = vsel %vm405, %v712, %v716
      %v719 = vshrl.u32 %v394, 16
      %v721 = vrot.slane %v719, 4
      %v722 = vshll.u32 %v394, 16
      %v724 = vrot.slane %v722, 5
      %v725 = vor.u32 %v721, %v724
      %v726 = vrot.slane %v725, 4
      %v728 = vshll.u32 %v395, 16
      %v730 = vrot.slane %v728, 5
      %v731 = vsel %vm405, %v726, %v730
      %v732 = vshrl.u32 %v395, 16
      %v734 = vrot.slane %v732, 4
      %v735 = vor.u32 %v734, %v730
      %v736 = vrot.slane %v735, 4
      %v738 = vshll.u32 %v396, 16
      %v740 = vrot.slane %v738, 5
      %v741 = vsel %vm405, %v736, %v740
      %v743 = vshrl.u32 %v397, 16
      %v745 = vrot.slane %v743, 4
      %v746 = vshll.u32 %v397, 16
      %v748 = vrot.slane %v746, 5
      %v749 = vor.u32 %v745, %v748
      %v750 = vrot.slane %v749, 4
      %v752 = vshll.u32 %v398, 16
      %v754 = vrot.slane %v752, 5
      %v755 = vsel %vm405, %v750, %v754
      %v756 = vshrl.u32 %v398, 16
      %v758 = vrot.slane %v756, 4
      %v759 = vor.u32 %v758, %v754
      %v760 = vrot.slane %v759, 4
      %v762 = vshll.u32 %v399, 16
      %v764 = vrot.slane %v762, 5
      %v765 = vsel %vm405, %v760, %v764
      %v767 = vshrl.u32 %v400, 16
      %v769 = vrot.slane %v767, 4
      %v770 = vshll.u32 %v400, 16
      %v772 = vrot.slane %v770, 5
      %v773 = vor.u32 %v769, %v772
      %v774 = vrot.slane %v773, 4
      %v776 = vshll.u32 %v401, 16
      %v778 = vrot.slane %v776, 5
      %v779 = vsel %vm405, %v774, %v778
      %v780 = vshrl.u32 %v401, 16
      %v782 = vrot.slane %v780, 4
      %v783 = vor.u32 %v782, %v778
      %v784 = vrot.slane %v783, 4
      %v786 = vshll.u32 %v402, 16
      %v788 = vrot.slane %v786, 5
      %v789 = vsel %vm405, %v784, %v788
      %790 = vrot.lane.b32.xlu0 %v419, 8
      %v791 = vpop.permute.xlu0 %790
      %792 = vrot.lane.b32.xlu0 %v429, 8
      %v793 = vpop.permute.xlu0 %792
      %794 = vrot.lane.b32.xlu0 %v443, 8
      %v795 = vpop.permute.xlu0 %794
      %796 = vrot.lane.b32.xlu0 %v453, 8
      %v797 = vpop.permute.xlu0 %796
      %798 = vrot.lane.b32.xlu0 %v467, 8
      %v799 = vpop.permute.xlu0 %798
      %800 = vrot.lane.b32.xlu0 %v477, 8
      %v801 = vpop.permute.xlu0 %800
      %802 = vrot.lane.b32.xlu0 %v491, 8
      %v803 = vpop.permute.xlu0 %802
      %804 = vrot.lane.b32.xlu0 %v501, 8
      %v805 = vpop.permute.xlu0 %804
      %806 = vrot.lane.b32.xlu0 %v515, 8
      %v807 = vpop.permute.xlu0 %806
      %808 = vrot.lane.b32.xlu0 %v525, 8
      %v809 = vpop.permute.xlu0 %808
      %810 = vrot.lane.b32.xlu0 %v539, 8
      %v811 = vpop.permute.xlu0 %810
      %812 = vrot.lane.b32.xlu0 %v549, 8
      %v813 = vpop.permute.xlu0 %812
      %814 = vrot.lane.b32.xlu0 %v563, 8
      %v815 = vpop.permute.xlu0 %814
      %816 = vrot.lane.b32.xlu0 %v573, 8
      %v817 = vpop.permute.xlu0 %816
      %818 = vrot.lane.b32.xlu0 %v587, 8
      %v819 = vpop.permute.xlu0 %818
      %820 = vrot.lane.b32.xlu0 %v597, 8
      %v821 = vpop.permute.xlu0 %820
      %822 = vrot.lane.b32.xlu0 %v611, 8
      %v823 = vpop.permute.xlu0 %822
      %824 = vrot.lane.b32.xlu0 %v621, 8
      %v825 = vpop.permute.xlu0 %824
      %826 = vrot.lane.b32.xlu0 %v635, 8
      %v827 = vpop.permute.xlu0 %826
      %828 = vrot.lane.b32.xlu0 %v645, 8
      %v829 = vpop.permute.xlu0 %828
      %830 = vrot.lane.b32.xlu0 %v659, 8
      %v831 = vpop.permute.xlu0 %830
      %832 = vrot.lane.b32.xlu0 %v669, 8
      %v833 = vpop.permute.xlu0 %832
      %834 = vrot.lane.b32.xlu0 %v683, 8
      %v835 = vpop.permute.xlu0 %834
      %836 = vrot.lane.b32.xlu0 %v693, 8
      %v837 = vpop.permute.xlu0 %836
      %838 = vrot.lane.b32.xlu0 %v707, 8
      %v839 = vpop.permute.xlu0 %838
      %840 = vrot.lane.b32.xlu0 %v717, 8
      %v841 = vpop.permute.xlu0 %840
      %842 = vrot.lane.b32.xlu0 %v731, 8
      %v843 = vpop.permute.xlu0 %842
      %844 = vrot.lane.b32.xlu0 %v741, 8
      %v845 = vpop.permute.xlu0 %844
      %846 = vrot.lane.b32.xlu0 %v755, 8
      %v847 = vpop.permute.xlu0 %846
      %848 = vrot.lane.b32.xlu0 %v765, 8
      %v849 = vpop.permute.xlu0 %848
      %850 = vrot.lane.b32.xlu0 %v779, 8
      %v851 = vpop.permute.xlu0 %850
      %852 = vrot.lane.b32.xlu0 %v789, 8
      %v853 = vpop.permute.xlu0 %852
      %vm886 = vcmask 126016
      %887 = vst.msk [vmem:[#allocation2] sm:$0xf] %vm886, %v791
      %888 = vst.msk [vmem:[#allocation2 + $0x4] sm:$0xf] %vm886, %v793
      %889 = vst.msk [vmem:[#allocation2 + $0x8] sm:$0xf] %vm886, %v795
      %890 = vst.msk [vmem:[#allocation2 + $0xc] sm:$0xf] %vm886, %v797
      %891 = vst.msk [vmem:[#allocation2 + $0x10] sm:$0xf] %vm886, %v799
      %892 = vst.msk [vmem:[#allocation2 + $0x14] sm:$0xf] %vm886, %v801
      %893 = vst.msk [vmem:[#allocation2 + $0x18] sm:$0xf] %vm886, %v803
      %894 = vst.msk [vmem:[#allocation2 + $0x1c] sm:$0xf] %vm886, %v805
      %895 = vst.msk [vmem:[#allocation2 + $0x20] sm:$0xf] %vm886, %v807
      %896 = vst.msk [vmem:[#allocation2 + $0x24] sm:$0xf] %vm886, %v809
      %897 = vst.msk [vmem:[#allocation2 + $0x28] sm:$0xf] %vm886, %v811
      %898 = vst.msk [vmem:[#allocation2 + $0x2c] sm:$0xf] %vm886, %v813
      %899 = vst.msk [vmem:[#allocation2 + $0x30] sm:$0xf] %vm886, %v815
      %900 = vst.msk [vmem:[#allocation2 + $0x34] sm:$0xf] %vm886, %v817
      %901 = vst.msk [vmem:[#allocation2 + $0x38] sm:$0xf] %vm886, %v819
      %902 = vst.msk [vmem:[#allocation2 + $0x3c] sm:$0xf] %vm886, %v821
      %903 = vst.msk [vmem:[#allocation2 + $0x40] sm:$0xf] %vm886, %v823
      %904 = vst.msk [vmem:[#allocation2 + $0x44] sm:$0xf] %vm886, %v825
      %905 = vst.msk [vmem:[#allocation2 + $0x48] sm:$0xf] %vm886, %v827
      %906 = vst.msk [vmem:[#allocation2 + $0x4c] sm:$0xf] %vm886, %v829
      %907 = vst.msk [vmem:[#allocation2 + $0x50] sm:$0xf] %vm886, %v831
      %908 = vst.msk [vmem:[#allocation2 + $0x54] sm:$0xf] %vm886, %v833
      %909 = vst.msk [vmem:[#allocation2 + $0x58] sm:$0xf] %vm886, %v835
      %910 = vst.msk [vmem:[#allocation2 + $0x5c] sm:$0xf] %vm886, %v837
      %911 = vst.msk [vmem:[#allocation2 + $0x60] sm:$0xf] %vm886, %v839
      %912 = vst.msk [vmem:[#allocation2 + $0x64] sm:$0xf] %vm886, %v841
      %913 = vst.msk [vmem:[#allocation2 + $0x68] sm:$0xf] %vm886, %v843
      %914 = vst.msk [vmem:[#allocation2 + $0x6c] sm:$0xf] %vm886, %v845
      %915 = vst.msk [vmem:[#allocation2 + $0x70] sm:$0xf] %vm886, %v847
      %916 = vst.msk [vmem:[#allocation2 + $0x74] sm:$0xf] %vm886, %v849
      %917 = vst.msk [vmem:[#allocation2 + $0x78] sm:$0xf] %vm886, %v851
      %918 = vst.msk [vmem:[#allocation2 + $0x7c] sm:$0xf] %vm886, %v853
      %v919 = vld [vmem:[%s289] sm:$0xe]
      %v920 = vld [vmem:[%s289 + $0x4] sm:$0xf]
      %v921 = vld [vmem:[%s289 + $0x8] sm:$0x1]
      %v922 = vld [vmem:[%s289 + $0xc] sm:$0xe]
      %v923 = vld [vmem:[%s289 + $0x10] sm:$0xf]
      %v924 = vld [vmem:[%s289 + $0x14] sm:$0x1]
      %v925 = vld [vmem:[%s289 + $0x18] sm:$0xe]
      %v926 = vld [vmem:[%s289 + $0x1c] sm:$0xf]
      %v927 = vld [vmem:[%s289 + $0x20] sm:$0x1]
      %v928 = vld [vmem:[%s289 + $0x24] sm:$0xe]
      %v929 = vld [vmem:[%s289 + $0x28] sm:$0xf]
      %v930 = vld [vmem:[%s289 + $0x2c] sm:$0x1]
      %v931 = vld [vmem:[%s289 + $0x30] sm:$0xe]
      %v932 = vld [vmem:[%s289 + $0x34] sm:$0xf]
      %v933 = vld [vmem:[%s289 + $0x38] sm:$0x1]
      %v934 = vld [vmem:[%s289 + $0x3c] sm:$0xe]
      %v935 = vld [vmem:[%s289 + $0x40] sm:$0xf]
      %v936 = vld [vmem:[%s289 + $0x44] sm:$0x1]
      %v937 = vld [vmem:[%s289 + $0x48] sm:$0xe]
      %v938 = vld [vmem:[%s289 + $0x4c] sm:$0xf]
      %v939 = vld [vmem:[%s289 + $0x50] sm:$0x1]
      %v940 = vld [vmem:[%s289 + $0x54] sm:$0xe]
      %v941 = vld [vmem:[%s289 + $0x58] sm:$0xf]
      %v942 = vld [vmem:[%s289 + $0x5c] sm:$0x1]
      %v943 = vld [vmem:[%s289 + $0x60] sm:$0xe]
      %v944 = vld [vmem:[%s289 + $0x64] sm:$0xf]
      %v945 = vld [vmem:[%s289 + $0x68] sm:$0x1]
      %v946 = vld [vmem:[%s289 + $0x6c] sm:$0xe]
      %v947 = vld [vmem:[%s289 + $0x70] sm:$0xf]
      %v948 = vld [vmem:[%s289 + $0x74] sm:$0x1]
      %v949 = vld [vmem:[%s289 + $0x78] sm:$0xe]
      %v950 = vld [vmem:[%s289 + $0x7c] sm:$0xf]
      %v951 = vld [vmem:[%s289 + $0x80] sm:$0x1]
      %v952 = vld [vmem:[%s289 + $0x84] sm:$0xe]
      %v953 = vld [vmem:[%s289 + $0x88] sm:$0xf]
      %v954 = vld [vmem:[%s289 + $0x8c] sm:$0x1]
      %v955 = vld [vmem:[%s289 + $0x90] sm:$0xe]
      %v956 = vld [vmem:[%s289 + $0x94] sm:$0xf]
      %v957 = vld [vmem:[%s289 + $0x98] sm:$0x1]
      %v958 = vld [vmem:[%s289 + $0x9c] sm:$0xe]
      %v959 = vld [vmem:[%s289 + $0xa0] sm:$0xf]
      %v960 = vld [vmem:[%s289 + $0xa4] sm:$0x1]
      %v961 = vld [vmem:[%s289 + $0xa8] sm:$0xe]
      %v962 = vld [vmem:[%s289 + $0xac] sm:$0xf]
      %v963 = vld [vmem:[%s289 + $0xb0] sm:$0x1]
      %v964 = vld [vmem:[%s289 + $0xb4] sm:$0xe]
      %v965 = vld [vmem:[%s289 + $0xb8] sm:$0xf]
      %v966 = vld [vmem:[%s289 + $0xbc] sm:$0x1]
      %vm1015 = vcmask 1042432
      %vm1016 = vcmask 1046532
      %vm1017 = vmor %vm1015, %vm1016
      %v1018 = vrot.slane %v919, 5
      %v1019 = vrot.slane %v1018, 4
      %v1020 = vrot.slane %v920, 5
      %v1021 = vsel %vm1017, %v1019, %v1020
      %v1022 = vrot.slane %v1020, 4
      %v1023 = vrot.slane %v921, 5
      %v1024 = vsel %vm1017, %v1022, %v1023
      %v1025 = vrot.slane %v922, 5
      %v1026 = vrot.slane %v1025, 4
      %v1027 = vrot.slane %v923, 5
      %v1028 = vsel %vm1017, %v1026, %v1027
      %v1029 = vrot.slane %v1027, 4
      %v1030 = vrot.slane %v924, 5
      %v1031 = vsel %vm1017, %v1029, %v1030
      %v1032 = vrot.slane %v925, 5
      %v1033 = vrot.slane %v1032, 4
      %v1034 = vrot.slane %v926, 5
      %v1035 = vsel %vm1017, %v1033, %v1034
      %v1036 = vrot.slane %v1034, 4
      %v1037 = vrot.slane %v927, 5
      %v1038 = vsel %vm1017, %v1036, %v1037
      %v1039 = vrot.slane %v928, 5
      %v1040 = vrot.slane %v1039, 4
      %v1041 = vrot.slane %v929, 5
      %v1042 = vsel %vm1017, %v1040, %v1041
      %v1043 = vrot.slane %v1041, 4
      %v1044 = vrot.slane %v930, 5
      %v1045 = vsel %vm1017, %v1043, %v1044
      %v1046 = vrot.slane %v931, 5
      %v1047 = vrot.slane %v1046, 4
      %v1048 = vrot.slane %v932, 5
      %v1049 = vsel %vm1017, %v1047, %v1048
      %v1050 = vrot.slane %v1048, 4
      %v1051 = vrot.slane %v933, 5
      %v1052 = vsel %vm1017, %v1050, %v1051
      %v1053 = vrot.slane %v934, 5
      %v1054 = vrot.slane %v1053, 4
      %v1055 = vrot.slane %v935, 5
      %v1056 = vsel %vm1017, %v1054, %v1055
      %v1057 = vrot.slane %v1055, 4
      %v1058 = vrot.slane %v936, 5
      %v1059 = vsel %vm1017, %v1057, %v1058
      %v1060 = vrot.slane %v937, 5
      %v1061 = vrot.slane %v1060, 4
      %v1062 = vrot.slane %v938, 5
      %v1063 = vsel %vm1017, %v1061, %v1062
      %v1064 = vrot.slane %v1062, 4
      %v1065 = vrot.slane %v939, 5
      %v1066 = vsel %vm1017, %v1064, %v1065
      %v1067 = vrot.slane %v940, 5
      %v1068 = vrot.slane %v1067, 4
      %v1069 = vrot.slane %v941, 5
      %v1070 = vsel %vm1017, %v1068, %v1069
      %v1071 = vrot.slane %v1069, 4
      %v1072 = vrot.slane %v942, 5
      %v1073 = vsel %vm1017, %v1071, %v1072
      %v1074 = vrot.slane %v943, 5
      %v1075 = vrot.slane %v1074, 4
      %v1076 = vrot.slane %v944, 5
      %v1077 = vsel %vm1017, %v1075, %v1076
      %v1078 = vrot.slane %v1076, 4
      %v1079 = vrot.slane %v945, 5
      %v1080 = vsel %vm1017, %v1078, %v1079
      %v1081 = vrot.slane %v946, 5
      %v1082 = vrot.slane %v1081, 4
      %v1083 = vrot.slane %v947, 5
      %v1084 = vsel %vm1017, %v1082, %v1083
      %v1085 = vrot.slane %v1083, 4
      %v1086 = vrot.slane %v948, 5
      %v1087 = vsel %vm1017, %v1085, %v1086
      %v1088 = vrot.slane %v949, 5
      %v1089 = vrot.slane %v1088, 4
      %v1090 = vrot.slane %v950, 5
      %v1091 = vsel %vm1017, %v1089, %v1090
      %v1092 = vrot.slane %v1090, 4
      %v1093 = vrot.slane %v951, 5
      %v1094 = vsel %vm1017, %v1092, %v1093
      %v1095 = vrot.slane %v952, 5
      %v1096 = vrot.slane %v1095, 4
      %v1097 = vrot.slane %v953, 5
      %v1098 = vsel %vm1017, %v1096, %v1097
      %v1099 = vrot.slane %v1097, 4
      %v1100 = vrot.slane %v954, 5
      %v1101 = vsel %vm1017, %v1099, %v1100
      %v1102 = vrot.slane %v955, 5
      %v1103 = vrot.slane %v1102, 4
      %v1104 = vrot.slane %v956, 5
      %v1105 = vsel %vm1017, %v1103, %v1104
      %v1106 = vrot.slane %v1104, 4
      %v1107 = vrot.slane %v957, 5
      %v1108 = vsel %vm1017, %v1106, %v1107
      %v1109 = vrot.slane %v958, 5
      %v1110 = vrot.slane %v1109, 4
      %v1111 = vrot.slane %v959, 5
      %v1112 = vsel %vm1017, %v1110, %v1111
      %v1113 = vrot.slane %v1111, 4
      %v1114 = vrot.slane %v960, 5
      %v1115 = vsel %vm1017, %v1113, %v1114
      %v1116 = vrot.slane %v961, 5
      %v1117 = vrot.slane %v1116, 4
      %v1118 = vrot.slane %v962, 5
      %v1119 = vsel %vm1017, %v1117, %v1118
      %v1120 = vrot.slane %v1118, 4
      %v1121 = vrot.slane %v963, 5
      %v1122 = vsel %vm1017, %v1120, %v1121
      %v1123 = vrot.slane %v964, 5
      %v1124 = vrot.slane %v1123, 4
      %v1125 = vrot.slane %v965, 5
      %v1126 = vsel %vm1017, %v1124, %v1125
      %v1127 = vrot.slane %v1125, 4
      %v1128 = vrot.slane %v966, 5
      %v1129 = vsel %vm1017, %v1127, %v1128
      %1130 = vrot.lane.b32.xlu0 %v1021, 16
      %v1131 = vpop.permute.xlu0 %1130
      %1132 = vrot.lane.b32.xlu0 %v1024, 16
      %v1133 = vpop.permute.xlu0 %1132
      %1134 = vrot.lane.b32.xlu0 %v1028, 16
      %v1135 = vpop.permute.xlu0 %1134
      %1136 = vrot.lane.b32.xlu0 %v1031, 16
      %v1137 = vpop.permute.xlu0 %1136
      %1138 = vrot.lane.b32.xlu0 %v1035, 16
      %v1139 = vpop.permute.xlu0 %1138
      %1140 = vrot.lane.b32.xlu0 %v1038, 16
      %v1141 = vpop.permute.xlu0 %1140
      %1142 = vrot.lane.b32.xlu0 %v1042, 16
      %v1143 = vpop.permute.xlu0 %1142
      %1144 = vrot.lane.b32.xlu0 %v1045, 16
      %v1145 = vpop.permute.xlu0 %1144
      %1146 = vrot.lane.b32.xlu0 %v1049, 16
      %v1147 = vpop.permute.xlu0 %1146
      %1148 = vrot.lane.b32.xlu0 %v1052, 16
      %v1149 = vpop.permute.xlu0 %1148
      %1150 = vrot.lane.b32.xlu0 %v1056, 16
      %v1151 = vpop.permute.xlu0 %1150
      %1152 = vrot.lane.b32.xlu0 %v1059, 16
      %v1153 = vpop.permute.xlu0 %1152
      %1154 = vrot.lane.b32.xlu0 %v1063, 16
      %v1155 = vpop.permute.xlu0 %1154
      %1156 = vrot.lane.b32.xlu0 %v1066, 16
      %v1157 = vpop.permute.xlu0 %1156
      %1158 = vrot.lane.b32.xlu0 %v1070, 16
      %v1159 = vpop.permute.xlu0 %1158
      %1160 = vrot.lane.b32.xlu0 %v1073, 16
      %v1161 = vpop.permute.xlu0 %1160
      %1162 = vrot.lane.b32.xlu0 %v1077, 16
      %v1163 = vpop.permute.xlu0 %1162
      %1164 = vrot.lane.b32.xlu0 %v1080, 16
      %v1165 = vpop.permute.xlu0 %1164
      %1166 = vrot.lane.b32.xlu0 %v1084, 16
      %v1167 = vpop.permute.xlu0 %1166
      %1168 = vrot.lane.b32.xlu0 %v1087, 16
      %v1169 = vpop.permute.xlu0 %1168
      %1170 = vrot.lane.b32.xlu0 %v1091, 16
      %v1171 = vpop.permute.xlu0 %1170
      %1172 = vrot.lane.b32.xlu0 %v1094, 16
      %v1173 = vpop.permute.xlu0 %1172
      %1174 = vrot.lane.b32.xlu0 %v1098, 16
      %v1175 = vpop.permute.xlu0 %1174
      %1176 = vrot.lane.b32.xlu0 %v1101, 16
      %v1177 = vpop.permute.xlu0 %1176
      %1178 = vrot.lane.b32.xlu0 %v1105, 16
      %v1179 = vpop.permute.xlu0 %1178
      %1180 = vrot.lane.b32.xlu0 %v1108, 16
      %v1181 = vpop.permute.xlu0 %1180
      %1182 = vrot.lane.b32.xlu0 %v1112, 16
      %v1183 = vpop.permute.xlu0 %1182
      %1184 = vrot.lane.b32.xlu0 %v1115, 16
      %v1185 = vpop.permute.xlu0 %1184
      %1186 = vrot.lane.b32.xlu0 %v1119, 16
      %v1187 = vpop.permute.xlu0 %1186
      %1188 = vrot.lane.b32.xlu0 %v1122, 16
      %v1189 = vpop.permute.xlu0 %1188
      %1190 = vrot.lane.b32.xlu0 %v1126, 16
      %v1191 = vpop.permute.xlu0 %1190
      %1192 = vrot.lane.b32.xlu0 %v1129, 16
      %v1193 = vpop.permute.xlu0 %1192
      %vm1226 = vcmask 191616
      %1227 = vst.msk [vmem:[#allocation2] sm:$0xf] %vm1226, %v1131
      %1228 = vst.msk [vmem:[#allocation2 + $0x4] sm:$0xf] %vm1226, %v1133
      %1229 = vst.msk [vmem:[#allocation2 + $0x8] sm:$0xf] %vm1226, %v1135
      %1230 = vst.msk [vmem:[#allocation2 + $0xc] sm:$0xf] %vm1226, %v1137
      %1231 = vst.msk [vmem:[#allocation2 + $0x10] sm:$0xf] %vm1226, %v1139
      %1232 = vst.msk [vmem:[#allocation2 + $0x14] sm:$0xf] %vm1226, %v1141
      %1233 = vst.msk [vmem:[#allocation2 + $0x18] sm:$0xf] %vm1226, %v1143
      %1234 = vst.msk [vmem:[#allocation2 + $0x1c] sm:$0xf] %vm1226, %v1145
      %1235 = vst.msk [vmem:[#allocation2 + $0x20] sm:$0xf] %vm1226, %v1147
      %1236 = vst.msk [vmem:[#allocation2 + $0x24] sm:$0xf] %vm1226, %v1149
      %1237 = vst.msk [vmem:[#allocation2 + $0x28] sm:$0xf] %vm1226, %v1151
      %1238 = vst.msk [vmem:[#allocation2 + $0x2c] sm:$0xf] %vm1226, %v1153
      %1239 = vst.msk [vmem:[#allocation2 + $0x30] sm:$0xf] %vm1226, %v1155
      %1240 = vst.msk [vmem:[#allocation2 + $0x34] sm:$0xf] %vm1226, %v1157
      %1241 = vst.msk [vmem:[#allocation2 + $0x38] sm:$0xf] %vm1226, %v1159
      %1242 = vst.msk [vmem:[#allocation2 + $0x3c] sm:$0xf] %vm1226, %v1161
      %1243 = vst.msk [vmem:[#allocation2 + $0x40] sm:$0xf] %vm1226, %v1163
      %1244 = vst.msk [vmem:[#allocation2 + $0x44] sm:$0xf] %vm1226, %v1165
      %1245 = vst.msk [vmem:[#allocation2 + $0x48] sm:$0xf] %vm1226, %v1167
      %1246 = vst.msk [vmem:[#allocation2 + $0x4c] sm:$0xf] %vm1226, %v1169
      %1247 = vst.msk [vmem:[#allocation2 + $0x50] sm:$0xf] %vm1226, %v1171
      %1248 = vst.msk [vmem:[#allocation2 + $0x54] sm:$0xf] %vm1226, %v1173
      %1249 = vst.msk [vmem:[#allocation2 + $0x58] sm:$0xf] %vm1226, %v1175
      %1250 = vst.msk [vmem:[#allocation2 + $0x5c] sm:$0xf] %vm1226, %v1177
      %1251 = vst.msk [vmem:[#allocation2 + $0x60] sm:$0xf] %vm1226, %v1179
      %1252 = vst.msk [vmem:[#allocation2 + $0x64] sm:$0xf] %vm1226, %v1181
      %1253 = vst.msk [vmem:[#allocation2 + $0x68] sm:$0xf] %vm1226, %v1183
      %1254 = vst.msk [vmem:[#allocation2 + $0x6c] sm:$0xf] %vm1226, %v1185
      %1255 = vst.msk [vmem:[#allocation2 + $0x70] sm:$0xf] %vm1226, %v1187
      %1256 = vst.msk [vmem:[#allocation2 + $0x74] sm:$0xf] %vm1226, %v1189
      %1257 = vst.msk [vmem:[#allocation2 + $0x78] sm:$0xf] %vm1226, %v1191
      %1258 = vst.msk [vmem:[#allocation2 + $0x7c] sm:$0xf] %vm1226, %v1193
      %s1259 = sadd.s32 %s286, 1
      %s1260 = smul.u32 %s1259, 3
      %s1261 = smul.addr %s1260, 4
      %s1262 = scalar_lea.vmem %s249, %s1261
      %v1263 = vld [vmem:[%s1262] sm:$0xf]
      %v1264 = vld [vmem:[%s1262 + $0x4] sm:$0xf]
      %v1265 = vld [vmem:[%s1262 + $0xc] sm:$0xf]
      %v1266 = vld [vmem:[%s1262 + $0x10] sm:$0xf]
      %v1267 = vld [vmem:[%s1262 + $0x18] sm:$0xf]
      %v1268 = vld [vmem:[%s1262 + $0x1c] sm:$0xf]
      %v1269 = vld [vmem:[%s1262 + $0x24] sm:$0xf]
      %v1270 = vld [vmem:[%s1262 + $0x28] sm:$0xf]
      %v1271 = vld [vmem:[%s1262 + $0x30] sm:$0xf]
      %v1272 = vld [vmem:[%s1262 + $0x34] sm:$0xf]
      %v1273 = vld [vmem:[%s1262 + $0x3c] sm:$0xf]
      %v1274 = vld [vmem:[%s1262 + $0x40] sm:$0xf]
      %v1275 = vld [vmem:[%s1262 + $0x48] sm:$0xf]
      %v1276 = vld [vmem:[%s1262 + $0x4c] sm:$0xf]
      %v1277 = vld [vmem:[%s1262 + $0x54] sm:$0xf]
      %v1278 = vld [vmem:[%s1262 + $0x58] sm:$0xf]
      %v1279 = vld [vmem:[%s1262 + $0x60] sm:$0xf]
      %v1280 = vld [vmem:[%s1262 + $0x64] sm:$0xf]
      %v1281 = vld [vmem:[%s1262 + $0x6c] sm:$0xf]
      %v1282 = vld [vmem:[%s1262 + $0x70] sm:$0xf]
      %v1283 = vld [vmem:[%s1262 + $0x78] sm:$0xf]
      %v1284 = vld [vmem:[%s1262 + $0x7c] sm:$0xf]
      %v1285 = vld [vmem:[%s1262 + $0x84] sm:$0xf]
      %v1286 = vld [vmem:[%s1262 + $0x88] sm:$0xf]
      %v1287 = vld [vmem:[%s1262 + $0x90] sm:$0xf]
      %v1288 = vld [vmem:[%s1262 + $0x94] sm:$0xf]
      %v1289 = vld [vmem:[%s1262 + $0x9c] sm:$0xf]
      %v1290 = vld [vmem:[%s1262 + $0xa0] sm:$0xf]
      %v1291 = vld [vmem:[%s1262 + $0xa8] sm:$0xf]
      %v1292 = vld [vmem:[%s1262 + $0xac] sm:$0xf]
      %v1293 = vld [vmem:[%s1262 + $0xb4] sm:$0xf]
      %v1294 = vld [vmem:[%s1262 + $0xb8] sm:$0xf]
      %1327 = vrot.lane.b32.xlu0 %v1263, 24
      %v1328 = vpop.permute.xlu0 %1327
      %1329 = vrot.lane.b32.xlu0 %v1264, 24
      %v1330 = vpop.permute.xlu0 %1329
      %1331 = vrot.lane.b32.xlu0 %v1265, 24
      %v1332 = vpop.permute.xlu0 %1331
      %1333 = vrot.lane.b32.xlu0 %v1266, 24
      %v1334 = vpop.permute.xlu0 %1333
      %1335 = vrot.lane.b32.xlu0 %v1267, 24
      %v1336 = vpop.permute.xlu0 %1335
      %1337 = vrot.lane.b32.xlu0 %v1268, 24
      %v1338 = vpop.permute.xlu0 %1337
      %1339 = vrot.lane.b32.xlu0 %v1269, 24
      %v1340 = vpop.permute.xlu0 %1339
      %1341 = vrot.lane.b32.xlu0 %v1270, 24
      %v1342 = vpop.permute.xlu0 %1341
      %1343 = vrot.lane.b32.xlu0 %v1271, 24
      %v1344 = vpop.permute.xlu0 %1343
      %1345 = vrot.lane.b32.xlu0 %v1272, 24
      %v1346 = vpop.permute.xlu0 %1345
      %1347 = vrot.lane.b32.xlu0 %v1273, 24
      %v1348 = vpop.permute.xlu0 %1347
      %1349 = vrot.lane.b32.xlu0 %v1274, 24
      %v1350 = vpop.permute.xlu0 %1349
      %1351 = vrot.lane.b32.xlu0 %v1275, 24
      %v1352 = vpop.permute.xlu0 %1351
      %1353 = vrot.lane.b32.xlu0 %v1276, 24
      %v1354 = vpop.permute.xlu0 %1353
      %1355 = vrot.lane.b32.xlu0 %v1277, 24
      %v1356 = vpop.permute.xlu0 %1355
      %1357 = vrot.lane.b32.xlu0 %v1278, 24
      %v1358 = vpop.permute.xlu0 %1357
      %1359 = vrot.lane.b32.xlu0 %v1279, 24
      %v1360 = vpop.permute.xlu0 %1359
      %1361 = vrot.lane.b32.xlu0 %v1280, 24
      %v1362 = vpop.permute.xlu0 %1361
      %1363 = vrot.lane.b32.xlu0 %v1281, 24
      %v1364 = vpop.permute.xlu0 %1363
      %1365 = vrot.lane.b32.xlu0 %v1282, 24
      %v1366 = vpop.permute.xlu0 %1365
      %1367 = vrot.lane.b32.xlu0 %v1283, 24
      %v1368 = vpop.permute.xlu0 %1367
      %1369 = vrot.lane.b32.xlu0 %v1284, 24
      %v1370 = vpop.permute.xlu0 %1369
      %1371 = vrot.lane.b32.xlu0 %v1285, 24
      %v1372 = vpop.permute.xlu0 %1371
      %1373 = vrot.lane.b32.xlu0 %v1286, 24
      %v1374 = vpop.permute.xlu0 %1373
      %1375 = vrot.lane.b32.xlu0 %v1287, 24
      %v1376 = vpop.permute.xlu0 %1375
      %1377 = vrot.lane.b32.xlu0 %v1288, 24
      %v1378 = vpop.permute.xlu0 %1377
      %1379 = vrot.lane.b32.xlu0 %v1289, 24
      %v1380 = vpop.permute.xlu0 %1379
      %1381 = vrot.lane.b32.xlu0 %v1290, 24
      %v1382 = vpop.permute.xlu0 %1381
      %1383 = vrot.lane.b32.xlu0 %v1291, 24
      %v1384 = vpop.permute.xlu0 %1383
      %1385 = vrot.lane.b32.xlu0 %v1292, 24
      %v1386 = vpop.permute.xlu0 %1385
      %1387 = vrot.lane.b32.xlu0 %v1293, 24
      %v1388 = vpop.permute.xlu0 %1387
      %1389 = vrot.lane.b32.xlu0 %v1294, 24
      %v1390 = vpop.permute.xlu0 %1389
      %vm1423 = vcmask 257216
      %1424 = vst.msk [vmem:[#allocation2] sm:$0xf] %vm1423, %v1328
      %1425 = vst.msk [vmem:[#allocation2 + $0x4] sm:$0xf] %vm1423, %v1330
      %1426 = vst.msk [vmem:[#allocation2 + $0x8] sm:$0xf] %vm1423, %v1332
      %1427 = vst.msk [vmem:[#allocation2 + $0xc] sm:$0xf] %vm1423, %v1334
      %1428 = vst.msk [vmem:[#allocation2 + $0x10] sm:$0xf] %vm1423, %v1336
      %1429 = vst.msk [vmem:[#allocation2 + $0x14] sm:$0xf] %vm1423, %v1338
      %1430 = vst.msk [vmem:[#allocation2 + $0x18] sm:$0xf] %vm1423, %v1340
      %1431 = vst.msk [vmem:[#allocation2 + $0x1c] sm:$0xf] %vm1423, %v1342
      %1432 = vst.msk [vmem:[#allocation2 + $0x20] sm:$0xf] %vm1423, %v1344
      %1433 = vst.msk [vmem:[#allocation2 + $0x24] sm:$0xf] %vm1423, %v1346
      %1434 = vst.msk [vmem:[#allocation2 + $0x28] sm:$0xf] %vm1423, %v1348
      %1435 = vst.msk [vmem:[#allocation2 + $0x2c] sm:$0xf] %vm1423, %v1350
      %1436 = vst.msk [vmem:[#allocation2 + $0x30] sm:$0xf] %vm1423, %v1352
      %1437 = vst.msk [vmem:[#allocation2 + $0x34] sm:$0xf] %vm1423, %v1354
      %1438 = vst.msk [vmem:[#allocation2 + $0x38] sm:$0xf] %vm1423, %v1356
      %1439 = vst.msk [vmem:[#allocation2 + $0x3c] sm:$0xf] %vm1423, %v1358
      %1440 = vst.msk [vmem:[#allocation2 + $0x40] sm:$0xf] %vm1423, %v1360
      %1441 = vst.msk [vmem:[#allocation2 + $0x44] sm:$0xf] %vm1423, %v1362
      %1442 = vst.msk [vmem:[#allocation2 + $0x48] sm:$0xf] %vm1423, %v1364
      %1443 = vst.msk [vmem:[#allocation2 + $0x4c] sm:$0xf] %vm1423, %v1366
      %1444 = vst.msk [vmem:[#allocation2 + $0x50] sm:$0xf] %vm1423, %v1368
      %1445 = vst.msk [vmem:[#allocation2 + $0x54] sm:$0xf] %vm1423, %v1370
      %1446 = vst.msk [vmem:[#allocation2 + $0x58] sm:$0xf] %vm1423, %v1372
      %1447 = vst.msk [vmem:[#allocation2 + $0x5c] sm:$0xf] %vm1423, %v1374
      %1448 = vst.msk [vmem:[#allocation2 + $0x60] sm:$0xf] %vm1423, %v1376
      %1449 = vst.msk [vmem:[#allocation2 + $0x64] sm:$0xf] %vm1423, %v1378
      %1450 = vst.msk [vmem:[#allocation2 + $0x68] sm:$0xf] %vm1423, %v1380
      %1451 = vst.msk [vmem:[#allocation2 + $0x6c] sm:$0xf] %vm1423, %v1382
      %1452 = vst.msk [vmem:[#allocation2 + $0x70] sm:$0xf] %vm1423, %v1384
      %1453 = vst.msk [vmem:[#allocation2 + $0x74] sm:$0xf] %vm1423, %v1386
      %1454 = vst.msk [vmem:[#allocation2 + $0x78] sm:$0xf] %vm1423, %v1388
      %1455 = vst.msk [vmem:[#allocation2 + $0x7c] sm:$0xf] %vm1423, %v1390
      %v1456 = vld [vmem:[%s1262] sm:$0xf]
      %v1457 = vld [vmem:[%s1262 + $0x4] sm:$0xf]
      %v1458 = vld [vmem:[%s1262 + $0x8] sm:$0x1]
      %v1459 = vld [vmem:[%s1262 + $0xc] sm:$0xf]
      %v1460 = vld [vmem:[%s1262 + $0x10] sm:$0xf]
      %v1461 = vld [vmem:[%s1262 + $0x14] sm:$0x1]
      %v1462 = vld [vmem:[%s1262 + $0x18] sm:$0xf]
      %v1463 = vld [vmem:[%s1262 + $0x1c] sm:$0xf]
      %v1464 = vld [vmem:[%s1262 + $0x20] sm:$0x1]
      %v1465 = vld [vmem:[%s1262 + $0x24] sm:$0xf]
      %v1466 = vld [vmem:[%s1262 + $0x28] sm:$0xf]
      %v1467 = vld [vmem:[%s1262 + $0x2c] sm:$0x1]
      %v1468 = vld [vmem:[%s1262 + $0x30] sm:$0xf]
      %v1469 = vld [vmem:[%s1262 + $0x34] sm:$0xf]
      %v1470 = vld [vmem:[%s1262 + $0x38] sm:$0x1]
      %v1471 = vld [vmem:[%s1262 + $0x3c] sm:$0xf]
      %v1472 = vld [vmem:[%s1262 + $0x40] sm:$0xf]
      %v1473 = vld [vmem:[%s1262 + $0x44] sm:$0x1]
      %v1474 = vld [vmem:[%s1262 + $0x48] sm:$0xf]
      %v1475 = vld [vmem:[%s1262 + $0x4c] sm:$0xf]
      %v1476 = vld [vmem:[%s1262 + $0x50] sm:$0x1]
      %v1477 = vld [vmem:[%s1262 + $0x54] sm:$0xf]
      %v1478 = vld [vmem:[%s1262 + $0x58] sm:$0xf]
      %v1479 = vld [vmem:[%s1262 + $0x5c] sm:$0x1]
      %v1480 = vld [vmem:[%s1262 + $0x60] sm:$0xf]
      %v1481 = vld [vmem:[%s1262 + $0x64] sm:$0xf]
      %v1482 = vld [vmem:[%s1262 + $0x68] sm:$0x1]
      %v1483 = vld [vmem:[%s1262 + $0x6c] sm:$0xf]
      %v1484 = vld [vmem:[%s1262 + $0x70] sm:$0xf]
      %v1485 = vld [vmem:[%s1262 + $0x74] sm:$0x1]
      %v1486 = vld [vmem:[%s1262 + $0x78] sm:$0xf]
      %v1487 = vld [vmem:[%s1262 + $0x7c] sm:$0xf]
      %v1488 = vld [vmem:[%s1262 + $0x80] sm:$0x1]
      %v1489 = vld [vmem:[%s1262 + $0x84] sm:$0xf]
      %v1490 = vld [vmem:[%s1262 + $0x88] sm:$0xf]
      %v1491 = vld [vmem:[%s1262 + $0x8c] sm:$0x1]
      %v1492 = vld [vmem:[%s1262 + $0x90] sm:$0xf]
      %v1493 = vld [vmem:[%s1262 + $0x94] sm:$0xf]
      %v1494 = vld [vmem:[%s1262 + $0x98] sm:$0x1]
      %v1495 = vld [vmem:[%s1262 + $0x9c] sm:$0xf]
      %v1496 = vld [vmem:[%s1262 + $0xa0] sm:$0xf]
      %v1497 = vld [vmem:[%s1262 + $0xa4] sm:$0x1]
      %v1498 = vld [vmem:[%s1262 + $0xa8] sm:$0xf]
      %v1499 = vld [vmem:[%s1262 + $0xac] sm:$0xf]
      %v1500 = vld [vmem:[%s1262 + $0xb0] sm:$0x1]
      %v1501 = vld [vmem:[%s1262 + $0xb4] sm:$0xf]
      %v1502 = vld [vmem:[%s1262 + $0xb8] sm:$0xf]
      %v1503 = vld [vmem:[%s1262 + $0xbc] sm:$0x1]
      %v1505 = vshrl.u32 %v1456, 16
      %v1507 = vrot.slane %v1505, 4
      %v1508 = vshll.u32 %v1456, 16
      %v1510 = vrot.slane %v1508, 5
      %v1511 = vor.u32 %v1507, %v1510
      %v1512 = vrot.slane %v1511, 4
      %v1514 = vshll.u32 %v1457, 16
      %v1516 = vrot.slane %v1514, 5
      %v1517 = vsel %vm405, %v1512, %v1516
      %v1518 = vshrl.u32 %v1457, 16
      %v1520 = vrot.slane %v1518, 4
      %v1521 = vor.u32 %v1520, %v1516
      %v1522 = vrot.slane %v1521, 4
      %v1524 = vshll.u32 %v1458, 16
      %v1526 = vrot.slane %v1524, 5
      %v1527 = vsel %vm405, %v1522, %v1526
      %v1529 = vshrl.u32 %v1459, 16
      %v1531 = vrot.slane %v1529, 4
      %v1532 = vshll.u32 %v1459, 16
      %v1534 = vrot.slane %v1532, 5
      %v1535 = vor.u32 %v1531, %v1534
      %v1536 = vrot.slane %v1535, 4
      %v1538 = vshll.u32 %v1460, 16
      %v1540 = vrot.slane %v1538, 5
      %v1541 = vsel %vm405, %v1536, %v1540
      %v1542 = vshrl.u32 %v1460, 16
      %v1544 = vrot.slane %v1542, 4
      %v1545 = vor.u32 %v1544, %v1540
      %v1546 = vrot.slane %v1545, 4
      %v1548 = vshll.u32 %v1461, 16
      %v1550 = vrot.slane %v1548, 5
      %v1551 = vsel %vm405, %v1546, %v1550
      %v1553 = vshrl.u32 %v1462, 16
      %v1555 = vrot.slane %v1553, 4
      %v1556 = vshll.u32 %v1462, 16
      %v1558 = vrot.slane %v1556, 5
      %v1559 = vor.u32 %v1555, %v1558
      %v1560 = vrot.slane %v1559, 4
      %v1562 = vshll.u32 %v1463, 16
      %v1564 = vrot.slane %v1562, 5
      %v1565 = vsel %vm405, %v1560, %v1564
      %v1566 = vshrl.u32 %v1463, 16
      %v1568 = vrot.slane %v1566, 4
      %v1569 = vor.u32 %v1568, %v1564
      %v1570 = vrot.slane %v1569, 4
      %v1572 = vshll.u32 %v1464, 16
      %v1574 = vrot.slane %v1572, 5
      %v1575 = vsel %vm405, %v1570, %v1574
      %v1577 = vshrl.u32 %v1465, 16
      %v1579 = vrot.slane %v1577, 4
      %v1580 = vshll.u32 %v1465, 16
      %v1582 = vrot.slane %v1580, 5
      %v1583 = vor.u32 %v1579, %v1582
      %v1584 = vrot.slane %v1583, 4
      %v1586 = vshll.u32 %v1466, 16
      %v1588 = vrot.slane %v1586, 5
      %v1589 = vsel %vm405, %v1584, %v1588
      %v1590 = vshrl.u32 %v1466, 16
      %v1592 = vrot.slane %v1590, 4
      %v1593 = vor.u32 %v1592, %v1588
      %v1594 = vrot.slane %v1593, 4
      %v1596 = vshll.u32 %v1467, 16
      %v1598 = vrot.slane %v1596, 5
      %v1599 = vsel %vm405, %v1594, %v1598
      %v1601 = vshrl.u32 %v1468, 16
      %v1603 = vrot.slane %v1601, 4
      %v1604 = vshll.u32 %v1468, 16
      %v1606 = vrot.slane %v1604, 5
      %v1607 = vor.u32 %v1603, %v1606
      %v1608 = vrot.slane %v1607, 4
      %v1610 = vshll.u32 %v1469, 16
      %v1612 = vrot.slane %v1610, 5
      %v1613 = vsel %vm405, %v1608, %v1612
      %v1614 = vshrl.u32 %v1469, 16
      %v1616 = vrot.slane %v1614, 4
      %v1617 = vor.u32 %v1616, %v1612
      %v1618 = vrot.slane %v1617, 4
      %v1620 = vshll.u32 %v1470, 16
      %v1622 = vrot.slane %v1620, 5
      %v1623 = vsel %vm405, %v1618, %v1622
      %v1625 = vshrl.u32 %v1471, 16
      %v1627 = vrot.slane %v1625, 4
      %v1628 = vshll.u32 %v1471, 16
      %v1630 = vrot.slane %v1628, 5
      %v1631 = vor.u32 %v1627, %v1630
      %v1632 = vrot.slane %v1631, 4
      %v1634 = vshll.u32 %v1472, 16
      %v1636 = vrot.slane %v1634, 5
      %v1637 = vsel %vm405, %v1632, %v1636
      %v1638 = vshrl.u32 %v1472, 16
      %v1640 = vrot.slane %v1638, 4
      %v1641 = vor.u32 %v1640, %v1636
      %v1642 = vrot.slane %v1641, 4
      %v1644 = vshll.u32 %v1473, 16
      %v1646 = vrot.slane %v1644, 5
      %v1647 = vsel %vm405, %v1642, %v1646
      %v1649 = vshrl.u32 %v1474, 16
      %v1651 = vrot.slane %v1649, 4
      %v1652 = vshll.u32 %v1474, 16
      %v1654 = vrot.slane %v1652, 5
      %v1655 = vor.u32 %v1651, %v1654
      %v1656 = vrot.slane %v1655, 4
      %v1658 = vshll.u32 %v1475, 16
      %v1660 = vrot.slane %v1658, 5
      %v1661 = vsel %vm405, %v1656, %v1660
      %v1662 = vshrl.u32 %v1475, 16
      %v1664 = vrot.slane %v1662, 4
      %v1665 = vor.u32 %v1664, %v1660
      %v1666 = vrot.slane %v1665, 4
      %v1668 = vshll.u32 %v1476, 16
      %v1670 = vrot.slane %v1668, 5
      %v1671 = vsel %vm405, %v1666, %v1670
      %v1673 = vshrl.u32 %v1477, 16
      %v1675 = vrot.slane %v1673, 4
      %v1676 = vshll.u32 %v1477, 16
      %v1678 = vrot.slane %v1676, 5
      %v1679 = vor.u32 %v1675, %v1678
      %v1680 = vrot.slane %v1679, 4
      %v1682 = vshll.u32 %v1478, 16
      %v1684 = vrot.slane %v1682, 5
      %v1685 = vsel %vm405, %v1680, %v1684
      %v1686 = vshrl.u32 %v1478, 16
      %v1688 = vrot.slane %v1686, 4
      %v1689 = vor.u32 %v1688, %v1684
      %v1690 = vrot.slane %v1689, 4
      %v1692 = vshll.u32 %v1479, 16
      %v1694 = vrot.slane %v1692, 5
      %v1695 = vsel %vm405, %v1690, %v1694
      %v1697 = vshrl.u32 %v1480, 16
      %v1699 = vrot.slane %v1697, 4
      %v1700 = vshll.u32 %v1480, 16
      %v1702 = vrot.slane %v1700, 5
      %v1703 = vor.u32 %v1699, %v1702
      %v1704 = vrot.slane %v1703, 4
      %v1706 = vshll.u32 %v1481, 16
      %v1708 = vrot.slane %v1706, 5
      %v1709 = vsel %vm405, %v1704, %v1708
      %v1710 = vshrl.u32 %v1481, 16
      %v1712 = vrot.slane %v1710, 4
      %v1713 = vor.u32 %v1712, %v1708
      %v1714 = vrot.slane %v1713, 4
      %v1716 = vshll.u32 %v1482, 16
      %v1718 = vrot.slane %v1716, 5
      %v1719 = vsel %vm405, %v1714, %v1718
      %v1721 = vshrl.u32 %v1483, 16
      %v1723 = vrot.slane %v1721, 4
      %v1724 = vshll.u32 %v1483, 16
      %v1726 = vrot.slane %v1724, 5
      %v1727 = vor.u32 %v1723, %v1726
      %v1728 = vrot.slane %v1727, 4
      %v1730 = vshll.u32 %v1484, 16
      %v1732 = vrot.slane %v1730, 5
      %v1733 = vsel %vm405, %v1728, %v1732
      %v1734 = vshrl.u32 %v1484, 16
      %v1736 = vrot.slane %v1734, 4
      %v1737 = vor.u32 %v1736, %v1732
      %v1738 = vrot.slane %v1737, 4
      %v1740 = vshll.u32 %v1485, 16
      %v1742 = vrot.slane %v1740, 5
      %v1743 = vsel %vm405, %v1738, %v1742
      %v1745 = vshrl.u32 %v1486, 16
      %v1747 = vrot.slane %v1745, 4
      %v1748 = vshll.u32 %v1486, 16
      %v1750 = vrot.slane %v1748, 5
      %v1751 = vor.u32 %v1747, %v1750
      %v1752 = vrot.slane %v1751, 4
      %v1754 = vshll.u32 %v1487, 16
      %v1756 = vrot.slane %v1754, 5
      %v1757 = vsel %vm405, %v1752, %v1756
      %v1758 = vshrl.u32 %v1487, 16
      %v1760 = vrot.slane %v1758, 4
      %v1761 = vor.u32 %v1760, %v1756
      %v1762 = vrot.slane %v1761, 4
      %v1764 = vshll.u32 %v1488, 16
      %v1766 = vrot.slane %v1764, 5
      %v1767 = vsel %vm405, %v1762, %v1766
      %v1769 = vshrl.u32 %v1489, 16
      %v1771 = vrot.slane %v1769, 4
      %v1772 = vshll.u32 %v1489, 16
      %v1774 = vrot.slane %v1772, 5
      %v1775 = vor.u32 %v1771, %v1774
      %v1776 = vrot.slane %v1775, 4
      %v1778 = vshll.u32 %v1490, 16
      %v1780 = vrot.slane %v1778, 5
      %v1781 = vsel %vm405, %v1776, %v1780
      %v1782 = vshrl.u32 %v1490, 16
      %v1784 = vrot.slane %v1782, 4
      %v1785 = vor.u32 %v1784, %v1780
      %v1786 = vrot.slane %v1785, 4
      %v1788 = vshll.u32 %v1491, 16
      %v1790 = vrot.slane %v1788, 5
      %v1791 = vsel %vm405, %v1786, %v1790
      %v1793 = vshrl.u32 %v1492, 16
      %v1795 = vrot.slane %v1793, 4
      %v1796 = vshll.u32 %v1492, 16
      %v1798 = vrot.slane %v1796, 5
      %v1799 = vor.u32 %v1795, %v1798
      %v1800 = vrot.slane %v1799, 4
      %v1802 = vshll.u32 %v1493, 16
      %v1804 = vrot.slane %v1802, 5
      %v1805 = vsel %vm405, %v1800, %v1804
      %v1806 = vshrl.u32 %v1493, 16
      %v1808 = vrot.slane %v1806, 4
      %v1809 = vor.u32 %v1808, %v1804
      %v1810 = vrot.slane %v1809, 4
      %v1812 = vshll.u32 %v1494, 16
      %v1814 = vrot.slane %v1812, 5
      %v1815 = vsel %vm405, %v1810, %v1814
      %v1817 = vshrl.u32 %v1495, 16
      %v1819 = vrot.slane %v1817, 4
      %v1820 = vshll.u32 %v1495, 16
      %v1822 = vrot.slane %v1820, 5
      %v1823 = vor.u32 %v1819, %v1822
      %v1824 = vrot.slane %v1823, 4
      %v1826 = vshll.u32 %v1496, 16
      %v1828 = vrot.slane %v1826, 5
      %v1829 = vsel %vm405, %v1824, %v1828
      %v1830 = vshrl.u32 %v1496, 16
      %v1832 = vrot.slane %v1830, 4
      %v1833 = vor.u32 %v1832, %v1828
      %v1834 = vrot.slane %v1833, 4
      %v1836 = vshll.u32 %v1497, 16
      %v1838 = vrot.slane %v1836, 5
      %v1839 = vsel %vm405, %v1834, %v1838
      %v1841 = vshrl.u32 %v1498, 16
      %v1843 = vrot.slane %v1841, 4
      %v1844 = vshll.u32 %v1498, 16
      %v1846 = vrot.slane %v1844, 5
      %v1847 = vor.u32 %v1843, %v1846
      %v1848 = vrot.slane %v1847, 4
      %v1850 = vshll.u32 %v1499, 16
      %v1852 = vrot.slane %v1850, 5
      %v1853 = vsel %vm405, %v1848, %v1852
      %v1854 = vshrl.u32 %v1499, 16
      %v1856 = vrot.slane %v1854, 4
      %v1857 = vor.u32 %v1856, %v1852
      %v1858 = vrot.slane %v1857, 4
      %v1860 = vshll.u32 %v1500, 16
      %v1862 = vrot.slane %v1860, 5
      %v1863 = vsel %vm405, %v1858, %v1862
      %v1865 = vshrl.u32 %v1501, 16
      %v1867 = vrot.slane %v1865, 4
      %v1868 = vshll.u32 %v1501, 16
      %v1870 = vrot.slane %v1868, 5
      %v1871 = vor.u32 %v1867, %v1870
      %v1872 = vrot.slane %v1871, 4
      %v1874 = vshll.u32 %v1502, 16
      %v1876 = vrot.slane %v1874, 5
      %v1877 = vsel %vm405, %v1872, %v1876
      %v1878 = vshrl.u32 %v1502, 16
      %v1880 = vrot.slane %v1878, 4
      %v1881 = vor.u32 %v1880, %v1876
      %v1882 = vrot.slane %v1881, 4
      %v1884 = vshll.u32 %v1503, 16
      %v1886 = vrot.slane %v1884, 5
      %v1887 = vsel %vm405, %v1882, %v1886
      %1888 = vrot.lane.b32.xlu0 %v1517, 32
      %v1889 = vpop.permute.xlu0 %1888
      %1890 = vrot.lane.b32.xlu0 %v1527, 32
      %v1891 = vpop.permute.xlu0 %1890
      %1892 = vrot.lane.b32.xlu0 %v1541, 32
      %v1893 = vpop.permute.xlu0 %1892
      %1894 = vrot.lane.b32.xlu0 %v1551, 32
      %v1895 = vpop.permute.xlu0 %1894
      %1896 = vrot.lane.b32.xlu0 %v1565, 32
      %v1897 = vpop.permute.xlu0 %1896
      %1898 = vrot.lane.b32.xlu0 %v1575, 32
      %v1899 = vpop.permute.xlu0 %1898
      %1900 = vrot.lane.b32.xlu0 %v1589, 32
      %v1901 = vpop.permute.xlu0 %1900
      %1902 = vrot.lane.b32.xlu0 %v1599, 32
      %v1903 = vpop.permute.xlu0 %1902
      %1904 = vrot.lane.b32.xlu0 %v1613, 32
      %v1905 = vpop.permute.xlu0 %1904
      %1906 = vrot.lane.b32.xlu0 %v1623, 32
      %v1907 = vpop.permute.xlu0 %1906
      %1908 = vrot.lane.b32.xlu0 %v1637, 32
      %v1909 = vpop.permute.xlu0 %1908
      %1910 = vrot.lane.b32.xlu0 %v1647, 32
      %v1911 = vpop.permute.xlu0 %1910
      %1912 = vrot.lane.b32.xlu0 %v1661, 32
      %v1913 = vpop.permute.xlu0 %1912
      %1914 = vrot.lane.b32.xlu0 %v1671, 32
      %v1915 = vpop.permute.xlu0 %1914
      %1916 = vrot.lane.b32.xlu0 %v1685, 32
      %v1917 = vpop.permute.xlu0 %1916
      %1918 = vrot.lane.b32.xlu0 %v1695, 32
      %v1919 = vpop.permute.xlu0 %1918
      %1920 = vrot.lane.b32.xlu0 %v1709, 32
      %v1921 = vpop.permute.xlu0 %1920
      %1922 = vrot.lane.b32.xlu0 %v1719, 32
      %v1923 = vpop.permute.xlu0 %1922
      %1924 = vrot.lane.b32.xlu0 %v1733, 32
      %v1925 = vpop.permute.xlu0 %1924
      %1926 = vrot.lane.b32.xlu0 %v1743, 32
      %v1927 = vpop.permute.xlu0 %1926
      %1928 = vrot.lane.b32.xlu0 %v1757, 32
      %v1929 = vpop.permute.xlu0 %1928
      %1930 = vrot.lane.b32.xlu0 %v1767, 32
      %v1931 = vpop.permute.xlu0 %1930
      %1932 = vrot.lane.b32.xlu0 %v1781, 32
      %v1933 = vpop.permute.xlu0 %1932
      %1934 = vrot.lane.b32.xlu0 %v1791, 32
      %v1935 = vpop.permute.xlu0 %1934
      %1936 = vrot.lane.b32.xlu0 %v1805, 32
      %v1937 = vpop.permute.xlu0 %1936
      %1938 = vrot.lane.b32.xlu0 %v1815, 32
      %v1939 = vpop.permute.xlu0 %1938
      %1940 = vrot.lane.b32.xlu0 %v1829, 32
      %v1941 = vpop.permute.xlu0 %1940
      %1942 = vrot.lane.b32.xlu0 %v1839, 32
      %v1943 = vpop.permute.xlu0 %1942
      %1944 = vrot.lane.b32.xlu0 %v1853, 32
      %v1945 = vpop.permute.xlu0 %1944
      %1946 = vrot.lane.b32.xlu0 %v1863, 32
      %v1947 = vpop.permute.xlu0 %1946
      %1948 = vrot.lane.b32.xlu0 %v1877, 32
      %v1949 = vpop.permute.xlu0 %1948
      %1950 = vrot.lane.b32.xlu0 %v1887, 32
      %v1951 = vpop.permute.xlu0 %1950
      %vm1984 = vcmask 322816
      %1985 = vst.msk [vmem:[#allocation2] sm:$0xf] %vm1984, %v1889
      %1986 = vst.msk [vmem:[#allocation2 + $0x4] sm:$0xf] %vm1984, %v1891
      %1987 = vst.msk [vmem:[#allocation2 + $0x8] sm:$0xf] %vm1984, %v1893
      %1988 = vst.msk [vmem:[#allocation2 + $0xc] sm:$0xf] %vm1984, %v1895
      %1989 = vst.msk [vmem:[#allocation2 + $0x10] sm:$0xf] %vm1984, %v1897
      %1990 = vst.msk [vmem:[#allocation2 + $0x14] sm:$0xf] %vm1984, %v1899
      %1991 = vst.msk [vmem:[#allocation2 + $0x18] sm:$0xf] %vm1984, %v1901
      %1992 = vst.msk [vmem:[#allocation2 + $0x1c] sm:$0xf] %vm1984, %v1903
      %1993 = vst.msk [vmem:[#allocation2 + $0x20] sm:$0xf] %vm1984, %v1905
      %1994 = vst.msk [vmem:[#allocation2 + $0x24] sm:$0xf] %vm1984, %v1907
      %1995 = vst.msk [vmem:[#allocation2 + $0x28] sm:$0xf] %vm1984, %v1909
      %1996 = vst.msk [vmem:[#allocation2 + $0x2c] sm:$0xf] %vm1984, %v1911
      %1997 = vst.msk [vmem:[#allocation2 + $0x30] sm:$0xf] %vm1984, %v1913
      %1998 = vst.msk [vmem:[#allocation2 + $0x34] sm:$0xf] %vm1984, %v1915
      %1999 = vst.msk [vmem:[#allocation2 + $0x38] sm:$0xf] %vm1984, %v1917
      %2000 = vst.msk [vmem:[#allocation2 + $0x3c] sm:$0xf] %vm1984, %v1919
      %2001 = vst.msk [vmem:[#allocation2 + $0x40] sm:$0xf] %vm1984, %v1921
      %2002 = vst.msk [vmem:[#allocation2 + $0x44] sm:$0xf] %vm1984, %v1923
      %2003 = vst.msk [vmem:[#allocation2 + $0x48] sm:$0xf] %vm1984, %v1925
      %2004 = vst.msk [vmem:[#allocation2 + $0x4c] sm:$0xf] %vm1984, %v1927
      %2005 = vst.msk [vmem:[#allocation2 + $0x50] sm:$0xf] %vm1984, %v1929
      %2006 = vst.msk [vmem:[#allocation2 + $0x54] sm:$0xf] %vm1984, %v1931
      %2007 = vst.msk [vmem:[#allocation2 + $0x58] sm:$0xf] %vm1984, %v1933
      %2008 = vst.msk [vmem:[#allocation2 + $0x5c] sm:$0xf] %vm1984, %v1935
      %2009 = vst.msk [vmem:[#allocation2 + $0x60] sm:$0xf] %vm1984, %v1937
      %2010 = vst.msk [vmem:[#allocation2 + $0x64] sm:$0xf] %vm1984, %v1939
      %2011 = vst.msk [vmem:[#allocation2 + $0x68] sm:$0xf] %vm1984, %v1941
      %2012 = vst.msk [vmem:[#allocation2 + $0x6c] sm:$0xf] %vm1984, %v1943
      %2013 = vst.msk [vmem:[#allocation2 + $0x70] sm:$0xf] %vm1984, %v1945
      %2014 = vst.msk [vmem:[#allocation2 + $0x74] sm:$0xf] %vm1984, %v1947
      %2015 = vst.msk [vmem:[#allocation2 + $0x78] sm:$0xf] %vm1984, %v1949
      %2016 = vst.msk [vmem:[#allocation2 + $0x7c] sm:$0xf] %vm1984, %v1951
      %v2017 = vld [vmem:[%s1262] sm:$0xe]
      %v2018 = vld [vmem:[%s1262 + $0x4] sm:$0xf]
      %v2019 = vld [vmem:[%s1262 + $0x8] sm:$0x1]
      %v2020 = vld [vmem:[%s1262 + $0xc] sm:$0xe]
      %v2021 = vld [vmem:[%s1262 + $0x10] sm:$0xf]
      %v2022 = vld [vmem:[%s1262 + $0x14] sm:$0x1]
      %v2023 = vld [vmem:[%s1262 + $0x18] sm:$0xe]
      %v2024 = vld [vmem:[%s1262 + $0x1c] sm:$0xf]
      %v2025 = vld [vmem:[%s1262 + $0x20] sm:$0x1]
      %v2026 = vld [vmem:[%s1262 + $0x24] sm:$0xe]
      %v2027 = vld [vmem:[%s1262 + $0x28] sm:$0xf]
      %v2028 = vld [vmem:[%s1262 + $0x2c] sm:$0x1]
      %v2029 = vld [vmem:[%s1262 + $0x30] sm:$0xe]
      %v2030 = vld [vmem:[%s1262 + $0x34] sm:$0xf]
      %v2031 = vld [vmem:[%s1262 + $0x38] sm:$0x1]
      %v2032 = vld [vmem:[%s1262 + $0x3c] sm:$0xe]
      %v2033 = vld [vmem:[%s1262 + $0x40] sm:$0xf]
      %v2034 = vld [vmem:[%s1262 + $0x44] sm:$0x1]
      %v2035 = vld [vmem:[%s1262 + $0x48] sm:$0xe]
      %v2036 = vld [vmem:[%s1262 + $0x4c] sm:$0xf]
      %v2037 = vld [vmem:[%s1262 + $0x50] sm:$0x1]
      %v2038 = vld [vmem:[%s1262 + $0x54] sm:$0xe]
      %v2039 = vld [vmem:[%s1262 + $0x58] sm:$0xf]
      %v2040 = vld [vmem:[%s1262 + $0x5c] sm:$0x1]
      %v2041 = vld [vmem:[%s1262 + $0x60] sm:$0xe]
      %v2042 = vld [vmem:[%s1262 + $0x64] sm:$0xf]
      %v2043 = vld [vmem:[%s1262 + $0x68] sm:$0x1]
      %v2044 = vld [vmem:[%s1262 + $0x6c] sm:$0xe]
      %v2045 = vld [vmem:[%s1262 + $0x70] sm:$0xf]
      %v2046 = vld [vmem:[%s1262 + $0x74] sm:$0x1]
      %v2047 = vld [vmem:[%s1262 + $0x78] sm:$0xe]
      %v2048 = vld [vmem:[%s1262 + $0x7c] sm:$0xf]
      %v2049 = vld [vmem:[%s1262 + $0x80] sm:$0x1]
      %v2050 = vld [vmem:[%s1262 + $0x84] sm:$0xe]
      %v2051 = vld [vmem:[%s1262 + $0x88] sm:$0xf]
      %v2052 = vld [vmem:[%s1262 + $0x8c] sm:$0x1]
      %v2053 = vld [vmem:[%s1262 + $0x90] sm:$0xe]
      %v2054 = vld [vmem:[%s1262 + $0x94] sm:$0xf]
      %v2055 = vld [vmem:[%s1262 + $0x98] sm:$0x1]
      %v2056 = vld [vmem:[%s1262 + $0x9c] sm:$0xe]
      %v2057 = vld [vmem:[%s1262 + $0xa0] sm:$0xf]
      %v2058 = vld [vmem:[%s1262 + $0xa4] sm:$0x1]
      %v2059 = vld [vmem:[%s1262 + $0xa8] sm:$0xe]
      %v2060 = vld [vmem:[%s1262 + $0xac] sm:$0xf]
      %v2061 = vld [vmem:[%s1262 + $0xb0] sm:$0x1]
      %v2062 = vld [vmem:[%s1262 + $0xb4] sm:$0xe]
      %v2063 = vld [vmem:[%s1262 + $0xb8] sm:$0xf]
      %v2064 = vld [vmem:[%s1262 + $0xbc] sm:$0x1]
      %v2113 = vrot.slane %v2017, 5
      %v2114 = vrot.slane %v2113, 4
      %v2115 = vrot.slane %v2018, 5
      %v2116 = vsel %vm1017, %v2114, %v2115
      %v2117 = vrot.slane %v2115, 4
      %v2118 = vrot.slane %v2019, 5
      %v2119 = vsel %vm1017, %v2117, %v2118
      %v2120 = vrot.slane %v2020, 5
      %v2121 = vrot.slane %v2120, 4
      %v2122 = vrot.slane %v2021, 5
      %v2123 = vsel %vm1017, %v2121, %v2122
      %v2124 = vrot.slane %v2122, 4
      %v2125 = vrot.slane %v2022, 5
      %v2126 = vsel %vm1017, %v2124, %v2125
      %v2127 = vrot.slane %v2023, 5
      %v2128 = vrot.slane %v2127, 4
      %v2129 = vrot.slane %v2024, 5
      %v2130 = vsel %vm1017, %v2128, %v2129
      %v2131 = vrot.slane %v2129, 4
      %v2132 = vrot.slane %v2025, 5
      %v2133 = vsel %vm1017, %v2131, %v2132
      %v2134 = vrot.slane %v2026, 5
      %v2135 = vrot.slane %v2134, 4
      %v2136 = vrot.slane %v2027, 5
      %v2137 = vsel %vm1017, %v2135, %v2136
      %v2138 = vrot.slane %v2136, 4
      %v2139 = vrot.slane %v2028, 5
      %v2140 = vsel %vm1017, %v2138, %v2139
      %v2141 = vrot.slane %v2029, 5
      %v2142 = vrot.slane %v2141, 4
      %v2143 = vrot.slane %v2030, 5
      %v2144 = vsel %vm1017, %v2142, %v2143
      %v2145 = vrot.slane %v2143, 4
      %v2146 = vrot.slane %v2031, 5
      %v2147 = vsel %vm1017, %v2145, %v2146
      %v2148 = vrot.slane %v2032, 5
      %v2149 = vrot.slane %v2148, 4
      %v2150 = vrot.slane %v2033, 5
      %v2151 = vsel %vm1017, %v2149, %v2150
      %v2152 = vrot.slane %v2150, 4
      %v2153 = vrot.slane %v2034, 5
      %v2154 = vsel %vm1017, %v2152, %v2153
      %v2155 = vrot.slane %v2035, 5
      %v2156 = vrot.slane %v2155, 4
      %v2157 = vrot.slane %v2036, 5
      %v2158 = vsel %vm1017, %v2156, %v2157
      %v2159 = vrot.slane %v2157, 4
      %v2160 = vrot.slane %v2037, 5
      %v2161 = vsel %vm1017, %v2159, %v2160
      %v2162 = vrot.slane %v2038, 5
      %v2163 = vrot.slane %v2162, 4
      %v2164 = vrot.slane %v2039, 5
      %v2165 = vsel %vm1017, %v2163, %v2164
      %v2166 = vrot.slane %v2164, 4
      %v2167 = vrot.slane %v2040, 5
      %v2168 = vsel %vm1017, %v2166, %v2167
      %v2169 = vrot.slane %v2041, 5
      %v2170 = vrot.slane %v2169, 4
      %v2171 = vrot.slane %v2042, 5
      %v2172 = vsel %vm1017, %v2170, %v2171
      %v2173 = vrot.slane %v2171, 4
      %v2174 = vrot.slane %v2043, 5
      %v2175 = vsel %vm1017, %v2173, %v2174
      %v2176 = vrot.slane %v2044, 5
      %v2177 = vrot.slane %v2176, 4
      %v2178 = vrot.slane %v2045, 5
      %v2179 = vsel %vm1017, %v2177, %v2178
      %v2180 = vrot.slane %v2178, 4
      %v2181 = vrot.slane %v2046, 5
      %v2182 = vsel %vm1017, %v2180, %v2181
      %v2183 = vrot.slane %v2047, 5
      %v2184 = vrot.slane %v2183, 4
      %v2185 = vrot.slane %v2048, 5
      %v2186 = vsel %vm1017, %v2184, %v2185
      %v2187 = vrot.slane %v2185, 4
      %v2188 = vrot.slane %v2049, 5
      %v2189 = vsel %vm1017, %v2187, %v2188
      %v2190 = vrot.slane %v2050, 5
      %v2191 = vrot.slane %v2190, 4
      %v2192 = vrot.slane %v2051, 5
      %v2193 = vsel %vm1017, %v2191, %v2192
      %v2194 = vrot.slane %v2192, 4
      %v2195 = vrot.slane %v2052, 5
      %v2196 = vsel %vm1017, %v2194, %v2195
      %v2197 = vrot.slane %v2053, 5
      %v2198 = vrot.slane %v2197, 4
      %v2199 = vrot.slane %v2054, 5
      %v2200 = vsel %vm1017, %v2198, %v2199
      %v2201 = vrot.slane %v2199, 4
      %v2202 = vrot.slane %v2055, 5
      %v2203 = vsel %vm1017, %v2201, %v2202
      %v2204 = vrot.slane %v2056, 5
      %v2205 = vrot.slane %v2204, 4
      %v2206 = vrot.slane %v2057, 5
      %v2207 = vsel %vm1017, %v2205, %v2206
      %v2208 = vrot.slane %v2206, 4
      %v2209 = vrot.slane %v2058, 5
      %v2210 = vsel %vm1017, %v2208, %v2209
      %v2211 = vrot.slane %v2059, 5
      %v2212 = vrot.slane %v2211, 4
      %v2213 = vrot.slane %v2060, 5
      %v2214 = vsel %vm1017, %v2212, %v2213
      %v2215 = vrot.slane %v2213, 4
      %v2216 = vrot.slane %v2061, 5
      %v2217 = vsel %vm1017, %v2215, %v2216
      %v2218 = vrot.slane %v2062, 5
      %v2219 = vrot.slane %v2218, 4
      %v2220 = vrot.slane %v2063, 5
      %v2221 = vsel %vm1017, %v2219, %v2220
      %v2222 = vrot.slane %v2220, 4
      %v2223 = vrot.slane %v2064, 5
      %v2224 = vsel %vm1017, %v2222, %v2223
      %2225 = vrot.lane.b32.xlu0 %v2116, 40
      %v2226 = vpop.permute.xlu0 %2225
      %2227 = vrot.lane.b32.xlu0 %v2119, 40
      %v2228 = vpop.permute.xlu0 %2227
      %2229 = vrot.lane.b32.xlu0 %v2123, 40
      %v2230 = vpop.permute.xlu0 %2229
      %2231 = vrot.lane.b32.xlu0 %v2126, 40
      %v2232 = vpop.permute.xlu0 %2231
      %2233 = vrot.lane.b32.xlu0 %v2130, 40
      %v2234 = vpop.permute.xlu0 %2233
      %2235 = vrot.lane.b32.xlu0 %v2133, 40
      %v2236 = vpop.permute.xlu0 %2235
      %2237 = vrot.lane.b32.xlu0 %v2137, 40
      %v2238 = vpop.permute.xlu0 %2237
      %2239 = vrot.lane.b32.xlu0 %v2140, 40
      %v2240 = vpop.permute.xlu0 %2239
      %2241 = vrot.lane.b32.xlu0 %v2144, 40
      %v2242 = vpop.permute.xlu0 %2241
      %2243 = vrot.lane.b32.xlu0 %v2147, 40
      %v2244 = vpop.permute.xlu0 %2243
      %2245 = vrot.lane.b32.xlu0 %v2151, 40
      %v2246 = vpop.permute.xlu0 %2245
      %2247 = vrot.lane.b32.xlu0 %v2154, 40
      %v2248 = vpop.permute.xlu0 %2247
      %2249 = vrot.lane.b32.xlu0 %v2158, 40
      %v2250 = vpop.permute.xlu0 %2249
      %2251 = vrot.lane.b32.xlu0 %v2161, 40
      %v2252 = vpop.permute.xlu0 %2251
      %2253 = vrot.lane.b32.xlu0 %v2165, 40
      %v2254 = vpop.permute.xlu0 %2253
      %2255 = vrot.lane.b32.xlu0 %v2168, 40
      %v2256 = vpop.permute.xlu0 %2255
      %2257 = vrot.lane.b32.xlu0 %v2172, 40
      %v2258 = vpop.permute.xlu0 %2257
      %2259 = vrot.lane.b32.xlu0 %v2175, 40
      %v2260 = vpop.permute.xlu0 %2259
      %2261 = vrot.lane.b32.xlu0 %v2179, 40
      %v2262 = vpop.permute.xlu0 %2261
      %2263 = vrot.lane.b32.xlu0 %v2182, 40
      %v2264 = vpop.permute.xlu0 %2263
      %2265 = vrot.lane.b32.xlu0 %v2186, 40
      %v2266 = vpop.permute.xlu0 %2265
      %2267 = vrot.lane.b32.xlu0 %v2189, 40
      %v2268 = vpop.permute.xlu0 %2267
      %2269 = vrot.lane.b32.xlu0 %v2193, 40
      %v2270 = vpop.permute.xlu0 %2269
      %2271 = vrot.lane.b32.xlu0 %v2196, 40
      %v2272 = vpop.permute.xlu0 %2271
      %2273 = vrot.lane.b32.xlu0 %v2200, 40
      %v2274 = vpop.permute.xlu0 %2273
      %2275 = vrot.lane.b32.xlu0 %v2203, 40
      %v2276 = vpop.permute.xlu0 %2275
      %2277 = vrot.lane.b32.xlu0 %v2207, 40
      %v2278 = vpop.permute.xlu0 %2277
      %2279 = vrot.lane.b32.xlu0 %v2210, 40
      %v2280 = vpop.permute.xlu0 %2279
      %2281 = vrot.lane.b32.xlu0 %v2214, 40
      %v2282 = vpop.permute.xlu0 %2281
      %2283 = vrot.lane.b32.xlu0 %v2217, 40
      %v2284 = vpop.permute.xlu0 %2283
      %2285 = vrot.lane.b32.xlu0 %v2221, 40
      %v2286 = vpop.permute.xlu0 %2285
      %2287 = vrot.lane.b32.xlu0 %v2224, 40
      %v2288 = vpop.permute.xlu0 %2287
      %vm2321 = vcmask 388416
      %2322 = vst.msk [vmem:[#allocation2] sm:$0xf] %vm2321, %v2226
      %2323 = vst.msk [vmem:[#allocation2 + $0x4] sm:$0xf] %vm2321, %v2228
      %2324 = vst.msk [vmem:[#allocation2 + $0x8] sm:$0xf] %vm2321, %v2230
      %2325 = vst.msk [vmem:[#allocation2 + $0xc] sm:$0xf] %vm2321, %v2232
      %2326 = vst.msk [vmem:[#allocation2 + $0x10] sm:$0xf] %vm2321, %v2234
      %2327 = vst.msk [vmem:[#allocation2 + $0x14] sm:$0xf] %vm2321, %v2236
      %2328 = vst.msk [vmem:[#allocation2 + $0x18] sm:$0xf] %vm2321, %v2238
      %2329 = vst.msk [vmem:[#allocation2 + $0x1c] sm:$0xf] %vm2321, %v2240
      %2330 = vst.msk [vmem:[#allocation2 + $0x20] sm:$0xf] %vm2321, %v2242
      %2331 = vst.msk [vmem:[#allocation2 + $0x24] sm:$0xf] %vm2321, %v2244
      %2332 = vst.msk [vmem:[#allocation2 + $0x28] sm:$0xf] %vm2321, %v2246
      %2333 = vst.msk [vmem:[#allocation2 + $0x2c] sm:$0xf] %vm2321, %v2248
      %2334 = vst.msk [vmem:[#allocation2 + $0x30] sm:$0xf] %vm2321, %v2250
      %2335 = vst.msk [vmem:[#allocation2 + $0x34] sm:$0xf] %vm2321, %v2252
      %2336 = vst.msk [vmem:[#allocation2 + $0x38] sm:$0xf] %vm2321, %v2254
      %2337 = vst.msk [vmem:[#allocation2 + $0x3c] sm:$0xf] %vm2321, %v2256
      %2338 = vst.msk [vmem:[#allocation2 + $0x40] sm:$0xf] %vm2321, %v2258
      %2339 = vst.msk [vmem:[#allocation2 + $0x44] sm:$0xf] %vm2321, %v2260
      %2340 = vst.msk [vmem:[#allocation2 + $0x48] sm:$0xf] %vm2321, %v2262
      %2341 = vst.msk [vmem:[#allocation2 + $0x4c] sm:$0xf] %vm2321, %v2264
      %2342 = vst.msk [vmem:[#allocation2 + $0x50] sm:$0xf] %vm2321, %v2266
      %2343 = vst.msk [vmem:[#allocation2 + $0x54] sm:$0xf] %vm2321, %v2268
      %2344 = vst.msk [vmem:[#allocation2 + $0x58] sm:$0xf] %vm2321, %v2270
      %2345 = vst.msk [vmem:[#allocation2 + $0x5c] sm:$0xf] %vm2321, %v2272
      %2346 = vst.msk [vmem:[#allocation2 + $0x60] sm:$0xf] %vm2321, %v2274
      %2347 = vst.msk [vmem:[#allocation2 + $0x64] sm:$0xf] %vm2321, %v2276
      %2348 = vst.msk [vmem:[#allocation2 + $0x68] sm:$0xf] %vm2321, %v2278
      %2349 = vst.msk [vmem:[#allocation2 + $0x6c] sm:$0xf] %vm2321, %v2280
      %2350 = vst.msk [vmem:[#allocation2 + $0x70] sm:$0xf] %vm2321, %v2282
      %2351 = vst.msk [vmem:[#allocation2 + $0x74] sm:$0xf] %vm2321, %v2284
      %2352 = vst.msk [vmem:[#allocation2 + $0x78] sm:$0xf] %vm2321, %v2286
      %2353 = vst.msk [vmem:[#allocation2 + $0x7c] sm:$0xf] %vm2321, %v2288
      %s2354 = sadd.s32 %s286, 2
      %s2355 = smul.u32 %s2354, 3
      %s2356 = smul.addr %s2355, 4
      %s2357 = scalar_lea.vmem %s249, %s2356
      %v2358 = vld [vmem:[%s2357] sm:$0xf]
      %v2359 = vld [vmem:[%s2357 + $0x4] sm:$0xf]
      %v2360 = vld [vmem:[%s2357 + $0xc] sm:$0xf]
      %v2361 = vld [vmem:[%s2357 + $0x10] sm:$0xf]
      %v2362 = vld [vmem:[%s2357 + $0x18] sm:$0xf]
      %v2363 = vld [vmem:[%s2357 + $0x1c] sm:$0xf]
      %v2364 = vld [vmem:[%s2357 + $0x24] sm:$0xf]
      %v2365 = vld [vmem:[%s2357 + $0x28] sm:$0xf]
      %v2366 = vld [vmem:[%s2357 + $0x30] sm:$0xf]
      %v2367 = vld [vmem:[%s2357 + $0x34] sm:$0xf]
      %v2368 = vld [vmem:[%s2357 + $0x3c] sm:$0xf]
      %v2369 = vld [vmem:[%s2357 + $0x40] sm:$0xf]
      %v2370 = vld [vmem:[%s2357 + $0x48] sm:$0xf]
      %v2371 = vld [vmem:[%s2357 + $0x4c] sm:$0xf]
      %v2372 = vld [vmem:[%s2357 + $0x54] sm:$0xf]
      %v2373 = vld [vmem:[%s2357 + $0x58] sm:$0xf]
      %v2374 = vld [vmem:[%s2357 + $0x60] sm:$0xf]
      %v2375 = vld [vmem:[%s2357 + $0x64] sm:$0xf]
      %v2376 = vld [vmem:[%s2357 + $0x6c] sm:$0xf]
      %v2377 = vld [vmem:[%s2357 + $0x70] sm:$0xf]
      %v2378 = vld [vmem:[%s2357 + $0x78] sm:$0xf]
      %v2379 = vld [vmem:[%s2357 + $0x7c] sm:$0xf]
      %v2380 = vld [vmem:[%s2357 + $0x84] sm:$0xf]
      %v2381 = vld [vmem:[%s2357 + $0x88] sm:$0xf]
      %v2382 = vld [vmem:[%s2357 + $0x90] sm:$0xf]
      %v2383 = vld [vmem:[%s2357 + $0x94] sm:$0xf]
      %v2384 = vld [vmem:[%s2357 + $0x9c] sm:$0xf]
      %v2385 = vld [vmem:[%s2357 + $0xa0] sm:$0xf]
      %v2386 = vld [vmem:[%s2357 + $0xa8] sm:$0xf]
      %v2387 = vld [vmem:[%s2357 + $0xac] sm:$0xf]
      %v2388 = vld [vmem:[%s2357 + $0xb4] sm:$0xf]
      %v2389 = vld [vmem:[%s2357 + $0xb8] sm:$0xf]
      %2422 = vrot.lane.b32.xlu0 %v2358, 48
      %v2423 = vpop.permute.xlu0 %2422
      %2424 = vrot.lane.b32.xlu0 %v2359, 48
      %v2425 = vpop.permute.xlu0 %2424
      %2426 = vrot.lane.b32.xlu0 %v2360, 48
      %v2427 = vpop.permute.xlu0 %2426
      %2428 = vrot.lane.b32.xlu0 %v2361, 48
      %v2429 = vpop.permute.xlu0 %2428
      %2430 = vrot.lane.b32.xlu0 %v2362, 48
      %v2431 = vpop.permute.xlu0 %2430
      %2432 = vrot.lane.b32.xlu0 %v2363, 48
      %v2433 = vpop.permute.xlu0 %2432
      %2434 = vrot.lane.b32.xlu0 %v2364, 48
      %v2435 = vpop.permute.xlu0 %2434
      %2436 = vrot.lane.b32.xlu0 %v2365, 48
      %v2437 = vpop.permute.xlu0 %2436
      %2438 = vrot.lane.b32.xlu0 %v2366, 48
      %v2439 = vpop.permute.xlu0 %2438
      %2440 = vrot.lane.b32.xlu0 %v2367, 48
      %v2441 = vpop.permute.xlu0 %2440
      %2442 = vrot.lane.b32.xlu0 %v2368, 48
      %v2443 = vpop.permute.xlu0 %2442
      %2444 = vrot.lane.b32.xlu0 %v2369, 48
      %v2445 = vpop.permute.xlu0 %2444
      %2446 = vrot.lane.b32.xlu0 %v2370, 48
      %v2447 = vpop.permute.xlu0 %2446
      %2448 = vrot.lane.b32.xlu0 %v2371, 48
      %v2449 = vpop.permute.xlu0 %2448
      %2450 = vrot.lane.b32.xlu0 %v2372, 48
      %v2451 = vpop.permute.xlu0 %2450
      %2452 = vrot.lane.b32.xlu0 %v2373, 48
      %v2453 = vpop.permute.xlu0 %2452
      %2454 = vrot.lane.b32.xlu0 %v2374, 48
      %v2455 = vpop.permute.xlu0 %2454
      %2456 = vrot.lane.b32.xlu0 %v2375, 48
      %v2457 = vpop.permute.xlu0 %2456
      %2458 = vrot.lane.b32.xlu0 %v2376, 48
      %v2459 = vpop.permute.xlu0 %2458
      %2460 = vrot.lane.b32.xlu0 %v2377, 48
      %v2461 = vpop.permute.xlu0 %2460
      %2462 = vrot.lane.b32.xlu0 %v2378, 48
      %v2463 = vpop.permute.xlu0 %2462
      %2464 = vrot.lane.b32.xlu0 %v2379, 48
      %v2465 = vpop.permute.xlu0 %2464
      %2466 = vrot.lane.b32.xlu0 %v2380, 48
      %v2467 = vpop.permute.xlu0 %2466
      %2468 = vrot.lane.b32.xlu0 %v2381, 48
      %v2469 = vpop.permute.xlu0 %2468
      %2470 = vrot.lane.b32.xlu0 %v2382, 48
      %v2471 = vpop.permute.xlu0 %2470
      %2472 = vrot.lane.b32.xlu0 %v2383, 48
      %v2473 = vpop.permute.xlu0 %2472
      %2474 = vrot.lane.b32.xlu0 %v2384, 48
      %v2475 = vpop.permute.xlu0 %2474
      %2476 = vrot.lane.b32.xlu0 %v2385, 48
      %v2477 = vpop.permute.xlu0 %2476
      %2478 = vrot.lane.b32.xlu0 %v2386, 48
      %v2479 = vpop.permute.xlu0 %2478
      %2480 = vrot.lane.b32.xlu0 %v2387, 48
      %v2481 = vpop.permute.xlu0 %2480
      %2482 = vrot.lane.b32.xlu0 %v2388, 48
      %v2483 = vpop.permute.xlu0 %2482
      %2484 = vrot.lane.b32.xlu0 %v2389, 48
      %v2485 = vpop.permute.xlu0 %2484
      %vm2518 = vcmask 454016
      %2519 = vst.msk [vmem:[#allocation2] sm:$0xf] %vm2518, %v2423
      %2520 = vst.msk [vmem:[#allocation2 + $0x4] sm:$0xf] %vm2518, %v2425
      %2521 = vst.msk [vmem:[#allocation2 + $0x8] sm:$0xf] %vm2518, %v2427
      %2522 = vst.msk [vmem:[#allocation2 + $0xc] sm:$0xf] %vm2518, %v2429
      %2523 = vst.msk [vmem:[#allocation2 + $0x10] sm:$0xf] %vm2518, %v2431
      %2524 = vst.msk [vmem:[#allocation2 + $0x14] sm:$0xf] %vm2518, %v2433
      %2525 = vst.msk [vmem:[#allocation2 + $0x18] sm:$0xf] %vm2518, %v2435
      %2526 = vst.msk [vmem:[#allocation2 + $0x1c] sm:$0xf] %vm2518, %v2437
      %2527 = vst.msk [vmem:[#allocation2 + $0x20] sm:$0xf] %vm2518, %v2439
      %2528 = vst.msk [vmem:[#allocation2 + $0x24] sm:$0xf] %vm2518, %v2441
      %2529 = vst.msk [vmem:[#allocation2 + $0x28] sm:$0xf] %vm2518, %v2443
      %2530 = vst.msk [vmem:[#allocation2 + $0x2c] sm:$0xf] %vm2518, %v2445
      %2531 = vst.msk [vmem:[#allocation2 + $0x30] sm:$0xf] %vm2518, %v2447
      %2532 = vst.msk [vmem:[#allocation2 + $0x34] sm:$0xf] %vm2518, %v2449
      %2533 = vst.msk [vmem:[#allocation2 + $0x38] sm:$0xf] %vm2518, %v2451
      %2534 = vst.msk [vmem:[#allocation2 + $0x3c] sm:$0xf] %vm2518, %v2453
      %2535 = vst.msk [vmem:[#allocation2 + $0x40] sm:$0xf] %vm2518, %v2455
      %2536 = vst.msk [vmem:[#allocation2 + $0x44] sm:$0xf] %vm2518, %v2457
      %2537 = vst.msk [vmem:[#allocation2 + $0x48] sm:$0xf] %vm2518, %v2459
      %2538 = vst.msk [vmem:[#allocation2 + $0x4c] sm:$0xf] %vm2518, %v2461
      %2539 = vst.msk [vmem:[#allocation2 + $0x50] sm:$0xf] %vm2518, %v2463
      %2540 = vst.msk [vmem:[#allocation2 + $0x54] sm:$0xf] %vm2518, %v2465
      %2541 = vst.msk [vmem:[#allocation2 + $0x58] sm:$0xf] %vm2518, %v2467
      %2542 = vst.msk [vmem:[#allocation2 + $0x5c] sm:$0xf] %vm2518, %v2469
      %2543 = vst.msk [vmem:[#allocation2 + $0x60] sm:$0xf] %vm2518, %v2471
      %2544 = vst.msk [vmem:[#allocation2 + $0x64] sm:$0xf] %vm2518, %v2473
      %2545 = vst.msk [vmem:[#allocation2 + $0x68] sm:$0xf] %vm2518, %v2475
      %2546 = vst.msk [vmem:[#allocation2 + $0x6c] sm:$0xf] %vm2518, %v2477
      %2547 = vst.msk [vmem:[#allocation2 + $0x70] sm:$0xf] %vm2518, %v2479
      %2548 = vst.msk [vmem:[#allocation2 + $0x74] sm:$0xf] %vm2518, %v2481
      %2549 = vst.msk [vmem:[#allocation2 + $0x78] sm:$0xf] %vm2518, %v2483
      %2550 = vst.msk [vmem:[#allocation2 + $0x7c] sm:$0xf] %vm2518, %v2485
      %v2551 = vld [vmem:[%s2357] sm:$0xf]
      %v2552 = vld [vmem:[%s2357 + $0x4] sm:$0xf]
      %v2553 = vld [vmem:[%s2357 + $0x8] sm:$0x1]
      %v2554 = vld [vmem:[%s2357 + $0xc] sm:$0xf]
      %v2555 = vld [vmem:[%s2357 + $0x10] sm:$0xf]
      %v2556 = vld [vmem:[%s2357 + $0x14] sm:$0x1]
      %v2557 = vld [vmem:[%s2357 + $0x18] sm:$0xf]
      %v2558 = vld [vmem:[%s2357 + $0x1c] sm:$0xf]
      %v2559 = vld [vmem:[%s2357 + $0x20] sm:$0x1]
      %v2560 = vld [vmem:[%s2357 + $0x24] sm:$0xf]
      %v2561 = vld [vmem:[%s2357 + $0x28] sm:$0xf]
      %v2562 = vld [vmem:[%s2357 + $0x2c] sm:$0x1]
      %v2563 = vld [vmem:[%s2357 + $0x30] sm:$0xf]
      %v2564 = vld [vmem:[%s2357 + $0x34] sm:$0xf]
      %v2565 = vld [vmem:[%s2357 + $0x38] sm:$0x1]
      %v2566 = vld [vmem:[%s2357 + $0x3c] sm:$0xf]
      %v2567 = vld [vmem:[%s2357 + $0x40] sm:$0xf]
      %v2568 = vld [vmem:[%s2357 + $0x44] sm:$0x1]
      %v2569 = vld [vmem:[%s2357 + $0x48] sm:$0xf]
      %v2570 = vld [vmem:[%s2357 + $0x4c] sm:$0xf]
      %v2571 = vld [vmem:[%s2357 + $0x50] sm:$0x1]
      %v2572 = vld [vmem:[%s2357 + $0x54] sm:$0xf]
      %v2573 = vld [vmem:[%s2357 + $0x58] sm:$0xf]
      %v2574 = vld [vmem:[%s2357 + $0x5c] sm:$0x1]
      %v2575 = vld [vmem:[%s2357 + $0x60] sm:$0xf]
      %v2576 = vld [vmem:[%s2357 + $0x64] sm:$0xf]
      %v2577 = vld [vmem:[%s2357 + $0x68] sm:$0x1]
      %v2578 = vld [vmem:[%s2357 + $0x6c] sm:$0xf]
      %v2579 = vld [vmem:[%s2357 + $0x70] sm:$0xf]
      %v2580 = vld [vmem:[%s2357 + $0x74] sm:$0x1]
      %v2581 = vld [vmem:[%s2357 + $0x78] sm:$0xf]
      %v2582 = vld [vmem:[%s2357 + $0x7c] sm:$0xf]
      %v2583 = vld [vmem:[%s2357 + $0x80] sm:$0x1]
      %v2584 = vld [vmem:[%s2357 + $0x84] sm:$0xf]
      %v2585 = vld [vmem:[%s2357 + $0x88] sm:$0xf]
      %v2586 = vld [vmem:[%s2357 + $0x8c] sm:$0x1]
      %v2587 = vld [vmem:[%s2357 + $0x90] sm:$0xf]
      %v2588 = vld [vmem:[%s2357 + $0x94] sm:$0xf]
      %v2589 = vld [vmem:[%s2357 + $0x98] sm:$0x1]
      %v2590 = vld [vmem:[%s2357 + $0x9c] sm:$0xf]
      %v2591 = vld [vmem:[%s2357 + $0xa0] sm:$0xf]
      %v2592 = vld [vmem:[%s2357 + $0xa4] sm:$0x1]
      %v2593 = vld [vmem:[%s2357 + $0xa8] sm:$0xf]
      %v2594 = vld [vmem:[%s2357 + $0xac] sm:$0xf]
      %v2595 = vld [vmem:[%s2357 + $0xb0] sm:$0x1]
      %v2596 = vld [vmem:[%s2357 + $0xb4] sm:$0xf]
      %v2597 = vld [vmem:[%s2357 + $0xb8] sm:$0xf]
      %v2598 = vld [vmem:[%s2357 + $0xbc] sm:$0x1]
      %v2600 = vshrl.u32 %v2551, 16
      %v2602 = vrot.slane %v2600, 4
      %v2603 = vshll.u32 %v2551, 16
      %v2605 = vrot.slane %v2603, 5
      %v2606 = vor.u32 %v2602, %v2605
      %v2607 = vrot.slane %v2606, 4
      %v2609 = vshll.u32 %v2552, 16
      %v2611 = vrot.slane %v2609, 5
      %v2612 = vsel %vm405, %v2607, %v2611
      %v2613 = vshrl.u32 %v2552, 16
      %v2615 = vrot.slane %v2613, 4
      %v2616 = vor.u32 %v2615, %v2611
      %v2617 = vrot.slane %v2616, 4
      %v2619 = vshll.u32 %v2553, 16
      %v2621 = vrot.slane %v2619, 5
      %v2622 = vsel %vm405, %v2617, %v2621
      %v2624 = vshrl.u32 %v2554, 16
      %v2626 = vrot.slane %v2624, 4
      %v2627 = vshll.u32 %v2554, 16
      %v2629 = vrot.slane %v2627, 5
      %v2630 = vor.u32 %v2626, %v2629
      %v2631 = vrot.slane %v2630, 4
      %v2633 = vshll.u32 %v2555, 16
      %v2635 = vrot.slane %v2633, 5
      %v2636 = vsel %vm405, %v2631, %v2635
      %v2637 = vshrl.u32 %v2555, 16
      %v2639 = vrot.slane %v2637, 4
      %v2640 = vor.u32 %v2639, %v2635
      %v2641 = vrot.slane %v2640, 4
      %v2643 = vshll.u32 %v2556, 16
      %v2645 = vrot.slane %v2643, 5
      %v2646 = vsel %vm405, %v2641, %v2645
      %v2648 = vshrl.u32 %v2557, 16
      %v2650 = vrot.slane %v2648, 4
      %v2651 = vshll.u32 %v2557, 16
      %v2653 = vrot.slane %v2651, 5
      %v2654 = vor.u32 %v2650, %v2653
      %v2655 = vrot.slane %v2654, 4
      %v2657 = vshll.u32 %v2558, 16
      %v2659 = vrot.slane %v2657, 5
      %v2660 = vsel %vm405, %v2655, %v2659
      %v2661 = vshrl.u32 %v2558, 16
      %v2663 = vrot.slane %v2661, 4
      %v2664 = vor.u32 %v2663, %v2659
      %v2665 = vrot.slane %v2664, 4
      %v2667 = vshll.u32 %v2559, 16
      %v2669 = vrot.slane %v2667, 5
      %v2670 = vsel %vm405, %v2665, %v2669
      %v2672 = vshrl.u32 %v2560, 16
      %v2674 = vrot.slane %v2672, 4
      %v2675 = vshll.u32 %v2560, 16
      %v2677 = vrot.slane %v2675, 5
      %v2678 = vor.u32 %v2674, %v2677
      %v2679 = vrot.slane %v2678, 4
      %v2681 = vshll.u32 %v2561, 16
      %v2683 = vrot.slane %v2681, 5
      %v2684 = vsel %vm405, %v2679, %v2683
      %v2685 = vshrl.u32 %v2561, 16
      %v2687 = vrot.slane %v2685, 4
      %v2688 = vor.u32 %v2687, %v2683
      %v2689 = vrot.slane %v2688, 4
      %v2691 = vshll.u32 %v2562, 16
      %v2693 = vrot.slane %v2691, 5
      %v2694 = vsel %vm405, %v2689, %v2693
      %v2696 = vshrl.u32 %v2563, 16
      %v2698 = vrot.slane %v2696, 4
      %v2699 = vshll.u32 %v2563, 16
      %v2701 = vrot.slane %v2699, 5
      %v2702 = vor.u32 %v2698, %v2701
      %v2703 = vrot.slane %v2702, 4
      %v2705 = vshll.u32 %v2564, 16
      %v2707 = vrot.slane %v2705, 5
      %v2708 = vsel %vm405, %v2703, %v2707
      %v2709 = vshrl.u32 %v2564, 16
      %v2711 = vrot.slane %v2709, 4
      %v2712 = vor.u32 %v2711, %v2707
      %v2713 = vrot.slane %v2712, 4
      %v2715 = vshll.u32 %v2565, 16
      %v2717 = vrot.slane %v2715, 5
      %v2718 = vsel %vm405, %v2713, %v2717
      %v2720 = vshrl.u32 %v2566, 16
      %v2722 = vrot.slane %v2720, 4
      %v2723 = vshll.u32 %v2566, 16
      %v2725 = vrot.slane %v2723, 5
      %v2726 = vor.u32 %v2722, %v2725
      %v2727 = vrot.slane %v2726, 4
      %v2729 = vshll.u32 %v2567, 16
      %v2731 = vrot.slane %v2729, 5
      %v2732 = vsel %vm405, %v2727, %v2731
      %v2733 = vshrl.u32 %v2567, 16
      %v2735 = vrot.slane %v2733, 4
      %v2736 = vor.u32 %v2735, %v2731
      %v2737 = vrot.slane %v2736, 4
      %v2739 = vshll.u32 %v2568, 16
      %v2741 = vrot.slane %v2739, 5
      %v2742 = vsel %vm405, %v2737, %v2741
      %v2744 = vshrl.u32 %v2569, 16
      %v2746 = vrot.slane %v2744, 4
      %v2747 = vshll.u32 %v2569, 16
      %v2749 = vrot.slane %v2747, 5
      %v2750 = vor.u32 %v2746, %v2749
      %v2751 = vrot.slane %v2750, 4
      %v2753 = vshll.u32 %v2570, 16
      %v2755 = vrot.slane %v2753, 5
      %v2756 = vsel %vm405, %v2751, %v2755
      %v2757 = vshrl.u32 %v2570, 16
      %v2759 = vrot.slane %v2757, 4
      %v2760 = vor.u32 %v2759, %v2755
      %v2761 = vrot.slane %v2760, 4
      %v2763 = vshll.u32 %v2571, 16
      %v2765 = vrot.slane %v2763, 5
      %v2766 = vsel %vm405, %v2761, %v2765
      %v2768 = vshrl.u32 %v2572, 16
      %v2770 = vrot.slane %v2768, 4
      %v2771 = vshll.u32 %v2572, 16
      %v2773 = vrot.slane %v2771, 5
      %v2774 = vor.u32 %v2770, %v2773
      %v2775 = vrot.slane %v2774, 4
      %v2777 = vshll.u32 %v2573, 16
      %v2779 = vrot.slane %v2777, 5
      %v2780 = vsel %vm405, %v2775, %v2779
      %v2781 = vshrl.u32 %v2573, 16
      %v2783 = vrot.slane %v2781, 4
      %v2784 = vor.u32 %v2783, %v2779
      %v2785 = vrot.slane %v2784, 4
      %v2787 = vshll.u32 %v2574, 16
      %v2789 = vrot.slane %v2787, 5
      %v2790 = vsel %vm405, %v2785, %v2789
      %v2792 = vshrl.u32 %v2575, 16
      %v2794 = vrot.slane %v2792, 4
      %v2795 = vshll.u32 %v2575, 16
      %v2797 = vrot.slane %v2795, 5
      %v2798 = vor.u32 %v2794, %v2797
      %v2799 = vrot.slane %v2798, 4
      %v2801 = vshll.u32 %v2576, 16
      %v2803 = vrot.slane %v2801, 5
      %v2804 = vsel %vm405, %v2799, %v2803
      %v2805 = vshrl.u32 %v2576, 16
      %v2807 = vrot.slane %v2805, 4
      %v2808 = vor.u32 %v2807, %v2803
      %v2809 = vrot.slane %v2808, 4
      %v2811 = vshll.u32 %v2577, 16
      %v2813 = vrot.slane %v2811, 5
      %v2814 = vsel %vm405, %v2809, %v2813
      %v2816 = vshrl.u32 %v2578, 16
      %v2818 = vrot.slane %v2816, 4
      %v2819 = vshll.u32 %v2578, 16
      %v2821 = vrot.slane %v2819, 5
      %v2822 = vor.u32 %v2818, %v2821
      %v2823 = vrot.slane %v2822, 4
      %v2825 = vshll.u32 %v2579, 16
      %v2827 = vrot.slane %v2825, 5
      %v2828 = vsel %vm405, %v2823, %v2827
      %v2829 = vshrl.u32 %v2579, 16
      %v2831 = vrot.slane %v2829, 4
      %v2832 = vor.u32 %v2831, %v2827
      %v2833 = vrot.slane %v2832, 4
      %v2835 = vshll.u32 %v2580, 16
      %v2837 = vrot.slane %v2835, 5
      %v2838 = vsel %vm405, %v2833, %v2837
      %v2840 = vshrl.u32 %v2581, 16
      %v2842 = vrot.slane %v2840, 4
      %v2843 = vshll.u32 %v2581, 16
      %v2845 = vrot.slane %v2843, 5
      %v2846 = vor.u32 %v2842, %v2845
      %v2847 = vrot.slane %v2846, 4
      %v2849 = vshll.u32 %v2582, 16
      %v2851 = vrot.slane %v2849, 5
      %v2852 = vsel %vm405, %v2847, %v2851
      %v2853 = vshrl.u32 %v2582, 16
      %v2855 = vrot.slane %v2853, 4
      %v2856 = vor.u32 %v2855, %v2851
      %v2857 = vrot.slane %v2856, 4
      %v2859 = vshll.u32 %v2583, 16
      %v2861 = vrot.slane %v2859, 5
      %v2862 = vsel %vm405, %v2857, %v2861
      %v2864 = vshrl.u32 %v2584, 16
      %v2866 = vrot.slane %v2864, 4
      %v2867 = vshll.u32 %v2584, 16
      %v2869 = vrot.slane %v2867, 5
      %v2870 = vor.u32 %v2866, %v2869
      %v2871 = vrot.slane %v2870, 4
      %v2873 = vshll.u32 %v2585, 16
      %v2875 = vrot.slane %v2873, 5
      %v2876 = vsel %vm405, %v2871, %v2875
      %v2877 = vshrl.u32 %v2585, 16
      %v2879 = vrot.slane %v2877, 4
      %v2880 = vor.u32 %v2879, %v2875
      %v2881 = vrot.slane %v2880, 4
      %v2883 = vshll.u32 %v2586, 16
      %v2885 = vrot.slane %v2883, 5
      %v2886 = vsel %vm405, %v2881, %v2885
      %v2888 = vshrl.u32 %v2587, 16
      %v2890 = vrot.slane %v2888, 4
      %v2891 = vshll.u32 %v2587, 16
      %v2893 = vrot.slane %v2891, 5
      %v2894 = vor.u32 %v2890, %v2893
      %v2895 = vrot.slane %v2894, 4
      %v2897 = vshll.u32 %v2588, 16
      %v2899 = vrot.slane %v2897, 5
      %v2900 = vsel %vm405, %v2895, %v2899
      %v2901 = vshrl.u32 %v2588, 16
      %v2903 = vrot.slane %v2901, 4
      %v2904 = vor.u32 %v2903, %v2899
      %v2905 = vrot.slane %v2904, 4
      %v2907 = vshll.u32 %v2589, 16
      %v2909 = vrot.slane %v2907, 5
      %v2910 = vsel %vm405, %v2905, %v2909
      %v2912 = vshrl.u32 %v2590, 16
      %v2914 = vrot.slane %v2912, 4
      %v2915 = vshll.u32 %v2590, 16
      %v2917 = vrot.slane %v2915, 5
      %v2918 = vor.u32 %v2914, %v2917
      %v2919 = vrot.slane %v2918, 4
      %v2921 = vshll.u32 %v2591, 16
      %v2923 = vrot.slane %v2921, 5
      %v2924 = vsel %vm405, %v2919, %v2923
      %v2925 = vshrl.u32 %v2591, 16
      %v2927 = vrot.slane %v2925, 4
      %v2928 = vor.u32 %v2927, %v2923
      %v2929 = vrot.slane %v2928, 4
      %v2931 = vshll.u32 %v2592, 16
      %v2933 = vrot.slane %v2931, 5
      %v2934 = vsel %vm405, %v2929, %v2933
      %v2936 = vshrl.u32 %v2593, 16
      %v2938 = vrot.slane %v2936, 4
      %v2939 = vshll.u32 %v2593, 16
      %v2941 = vrot.slane %v2939, 5
      %v2942 = vor.u32 %v2938, %v2941
      %v2943 = vrot.slane %v2942, 4
      %v2945 = vshll.u32 %v2594, 16
      %v2947 = vrot.slane %v2945, 5
      %v2948 = vsel %vm405, %v2943, %v2947
      %v2949 = vshrl.u32 %v2594, 16
      %v2951 = vrot.slane %v2949, 4
      %v2952 = vor.u32 %v2951, %v2947
      %v2953 = vrot.slane %v2952, 4
      %v2955 = vshll.u32 %v2595, 16
      %v2957 = vrot.slane %v2955, 5
      %v2958 = vsel %vm405, %v2953, %v2957
      %v2960 = vshrl.u32 %v2596, 16
      %v2962 = vrot.slane %v2960, 4
      %v2963 = vshll.u32 %v2596, 16
      %v2965 = vrot.slane %v2963, 5
      %v2966 = vor.u32 %v2962, %v2965
      %v2967 = vrot.slane %v2966, 4
      %v2969 = vshll.u32 %v2597, 16
      %v2971 = vrot.slane %v2969, 5
      %v2972 = vsel %vm405, %v2967, %v2971
      %v2973 = vshrl.u32 %v2597, 16
      %v2975 = vrot.slane %v2973, 4
      %v2976 = vor.u32 %v2975, %v2971
      %v2977 = vrot.slane %v2976, 4
      %v2979 = vshll.u32 %v2598, 16
      %v2981 = vrot.slane %v2979, 5
      %v2982 = vsel %vm405, %v2977, %v2981
      %2983 = vrot.lane.b32.xlu0 %v2612, 56
      %v2984 = vpop.permute.xlu0 %2983
      %2985 = vrot.lane.b32.xlu0 %v2622, 56
      %v2986 = vpop.permute.xlu0 %2985
      %2987 = vrot.lane.b32.xlu0 %v2636, 56
      %v2988 = vpop.permute.xlu0 %2987
      %2989 = vrot.lane.b32.xlu0 %v2646, 56
      %v2990 = vpop.permute.xlu0 %2989
      %2991 = vrot.lane.b32.xlu0 %v2660, 56
      %v2992 = vpop.permute.xlu0 %2991
      %2993 = vrot.lane.b32.xlu0 %v2670, 56
      %v2994 = vpop.permute.xlu0 %2993
      %2995 = vrot.lane.b32.xlu0 %v2684, 56
      %v2996 = vpop.permute.xlu0 %2995
      %2997 = vrot.lane.b32.xlu0 %v2694, 56
      %v2998 = vpop.permute.xlu0 %2997
      %2999 = vrot.lane.b32.xlu0 %v2708, 56
      %v3000 = vpop.permute.xlu0 %2999
      %3001 = vrot.lane.b32.xlu0 %v2718, 56
      %v3002 = vpop.permute.xlu0 %3001
      %3003 = vrot.lane.b32.xlu0 %v2732, 56
      %v3004 = vpop.permute.xlu0 %3003
      %3005 = vrot.lane.b32.xlu0 %v2742, 56
      %v3006 = vpop.permute.xlu0 %3005
      %3007 = vrot.lane.b32.xlu0 %v2756, 56
      %v3008 = vpop.permute.xlu0 %3007
      %3009 = vrot.lane.b32.xlu0 %v2766, 56
      %v3010 = vpop.permute.xlu0 %3009
      %3011 = vrot.lane.b32.xlu0 %v2780, 56
      %v3012 = vpop.permute.xlu0 %3011
      %3013 = vrot.lane.b32.xlu0 %v2790, 56
      %v3014 = vpop.permute.xlu0 %3013
      %3015 = vrot.lane.b32.xlu0 %v2804, 56
      %v3016 = vpop.permute.xlu0 %3015
      %3017 = vrot.lane.b32.xlu0 %v2814, 56
      %v3018 = vpop.permute.xlu0 %3017
      %3019 = vrot.lane.b32.xlu0 %v2828, 56
      %v3020 = vpop.permute.xlu0 %3019
      %3021 = vrot.lane.b32.xlu0 %v2838, 56
      %v3022 = vpop.permute.xlu0 %3021
      %3023 = vrot.lane.b32.xlu0 %v2852, 56
      %v3024 = vpop.permute.xlu0 %3023
      %3025 = vrot.lane.b32.xlu0 %v2862, 56
      %v3026 = vpop.permute.xlu0 %3025
      %3027 = vrot.lane.b32.xlu0 %v2876, 56
      %v3028 = vpop.permute.xlu0 %3027
      %3029 = vrot.lane.b32.xlu0 %v2886, 56
      %v3030 = vpop.permute.xlu0 %3029
      %3031 = vrot.lane.b32.xlu0 %v2900, 56
      %v3032 = vpop.permute.xlu0 %3031
      %3033 = vrot.lane.b32.xlu0 %v2910, 56
      %v3034 = vpop.permute.xlu0 %3033
      %3035 = vrot.lane.b32.xlu0 %v2924, 56
      %v3036 = vpop.permute.xlu0 %3035
      %3037 = vrot.lane.b32.xlu0 %v2934, 56
      %v3038 = vpop.permute.xlu0 %3037
      %3039 = vrot.lane.b32.xlu0 %v2948, 56
      %v3040 = vpop.permute.xlu0 %3039
      %3041 = vrot.lane.b32.xlu0 %v2958, 56
      %v3042 = vpop.permute.xlu0 %3041
      %3043 = vrot.lane.b32.xlu0 %v2972, 56
      %v3044 = vpop.permute.xlu0 %3043
      %3045 = vrot.lane.b32.xlu0 %v2982, 56
      %v3046 = vpop.permute.xlu0 %3045
      %vm3079 = vcmask 519616
      %3080 = vst.msk [vmem:[#allocation2] sm:$0xf] %vm3079, %v2984
      %3081 = vst.msk [vmem:[#allocation2 + $0x4] sm:$0xf] %vm3079, %v2986
      %3082 = vst.msk [vmem:[#allocation2 + $0x8] sm:$0xf] %vm3079, %v2988
      %3083 = vst.msk [vmem:[#allocation2 + $0xc] sm:$0xf] %vm3079, %v2990
      %3084 = vst.msk [vmem:[#allocation2 + $0x10] sm:$0xf] %vm3079, %v2992
      %3085 = vst.msk [vmem:[#allocation2 + $0x14] sm:$0xf] %vm3079, %v2994
      %3086 = vst.msk [vmem:[#allocation2 + $0x18] sm:$0xf] %vm3079, %v2996
      %3087 = vst.msk [vmem:[#allocation2 + $0x1c] sm:$0xf] %vm3079, %v2998
      %3088 = vst.msk [vmem:[#allocation2 + $0x20] sm:$0xf] %vm3079, %v3000
      %3089 = vst.msk [vmem:[#allocation2 + $0x24] sm:$0xf] %vm3079, %v3002
      %3090 = vst.msk [vmem:[#allocation2 + $0x28] sm:$0xf] %vm3079, %v3004
      %3091 = vst.msk [vmem:[#allocation2 + $0x2c] sm:$0xf] %vm3079, %v3006
      %3092 = vst.msk [vmem:[#allocation2 + $0x30] sm:$0xf] %vm3079, %v3008
      %3093 = vst.msk [vmem:[#allocation2 + $0x34] sm:$0xf] %vm3079, %v3010
      %3094 = vst.msk [vmem:[#allocation2 + $0x38] sm:$0xf] %vm3079, %v3012
      %3095 = vst.msk [vmem:[#allocation2 + $0x3c] sm:$0xf] %vm3079, %v3014
      %3096 = vst.msk [vmem:[#allocation2 + $0x40] sm:$0xf] %vm3079, %v3016
      %3097 = vst.msk [vmem:[#allocation2 + $0x44] sm:$0xf] %vm3079, %v3018
      %3098 = vst.msk [vmem:[#allocation2 + $0x48] sm:$0xf] %vm3079, %v3020
      %3099 = vst.msk [vmem:[#allocation2 + $0x4c] sm:$0xf] %vm3079, %v3022
      %3100 = vst.msk [vmem:[#allocation2 + $0x50] sm:$0xf] %vm3079, %v3024
      %3101 = vst.msk [vmem:[#allocation2 + $0x54] sm:$0xf] %vm3079, %v3026
      %3102 = vst.msk [vmem:[#allocation2 + $0x58] sm:$0xf] %vm3079, %v3028
      %3103 = vst.msk [vmem:[#allocation2 + $0x5c] sm:$0xf] %vm3079, %v3030
      %3104 = vst.msk [vmem:[#allocation2 + $0x60] sm:$0xf] %vm3079, %v3032
      %3105 = vst.msk [vmem:[#allocation2 + $0x64] sm:$0xf] %vm3079, %v3034
      %3106 = vst.msk [vmem:[#allocation2 + $0x68] sm:$0xf] %vm3079, %v3036
      %3107 = vst.msk [vmem:[#allocation2 + $0x6c] sm:$0xf] %vm3079, %v3038
      %3108 = vst.msk [vmem:[#allocation2 + $0x70] sm:$0xf] %vm3079, %v3040
      %3109 = vst.msk [vmem:[#allocation2 + $0x74] sm:$0xf] %vm3079, %v3042
      %3110 = vst.msk [vmem:[#allocation2 + $0x78] sm:$0xf] %vm3079, %v3044
      %3111 = vst.msk [vmem:[#allocation2 + $0x7c] sm:$0xf] %vm3079, %v3046
      %v3112 = vld [vmem:[%s2357] sm:$0xe]
      %v3113 = vld [vmem:[%s2357 + $0x4] sm:$0xf]
      %v3114 = vld [vmem:[%s2357 + $0x8] sm:$0x1]
      %v3115 = vld [vmem:[%s2357 + $0xc] sm:$0xe]
      %v3116 = vld [vmem:[%s2357 + $0x10] sm:$0xf]
      %v3117 = vld [vmem:[%s2357 + $0x14] sm:$0x1]
      %v3118 = vld [vmem:[%s2357 + $0x18] sm:$0xe]
      %v3119 = vld [vmem:[%s2357 + $0x1c] sm:$0xf]
      %v3120 = vld [vmem:[%s2357 + $0x20] sm:$0x1]
      %v3121 = vld [vmem:[%s2357 + $0x24] sm:$0xe]
      %v3122 = vld [vmem:[%s2357 + $0x28] sm:$0xf]
      %v3123 = vld [vmem:[%s2357 + $0x2c] sm:$0x1]
      %v3124 = vld [vmem:[%s2357 + $0x30] sm:$0xe]
      %v3125 = vld [vmem:[%s2357 + $0x34] sm:$0xf]
      %v3126 = vld [vmem:[%s2357 + $0x38] sm:$0x1]
      %v3127 = vld [vmem:[%s2357 + $0x3c] sm:$0xe]
      %v3128 = vld [vmem:[%s2357 + $0x40] sm:$0xf]
      %v3129 = vld [vmem:[%s2357 + $0x44] sm:$0x1]
      %v3130 = vld [vmem:[%s2357 + $0x48] sm:$0xe]
      %v3131 = vld [vmem:[%s2357 + $0x4c] sm:$0xf]
      %v3132 = vld [vmem:[%s2357 + $0x50] sm:$0x1]
      %v3133 = vld [vmem:[%s2357 + $0x54] sm:$0xe]
      %v3134 = vld [vmem:[%s2357 + $0x58] sm:$0xf]
      %v3135 = vld [vmem:[%s2357 + $0x5c] sm:$0x1]
      %v3136 = vld [vmem:[%s2357 + $0x60] sm:$0xe]
      %v3137 = vld [vmem:[%s2357 + $0x64] sm:$0xf]
      %v3138 = vld [vmem:[%s2357 + $0x68] sm:$0x1]
      %v3139 = vld [vmem:[%s2357 + $0x6c] sm:$0xe]
      %v3140 = vld [vmem:[%s2357 + $0x70] sm:$0xf]
      %v3141 = vld [vmem:[%s2357 + $0x74] sm:$0x1]
      %v3142 = vld [vmem:[%s2357 + $0x78] sm:$0xe]
      %v3143 = vld [vmem:[%s2357 + $0x7c] sm:$0xf]
      %v3144 = vld [vmem:[%s2357 + $0x80] sm:$0x1]
      %v3145 = vld [vmem:[%s2357 + $0x84] sm:$0xe]
      %v3146 = vld [vmem:[%s2357 + $0x88] sm:$0xf]
      %v3147 = vld [vmem:[%s2357 + $0x8c] sm:$0x1]
      %v3148 = vld [vmem:[%s2357 + $0x90] sm:$0xe]
      %v3149 = vld [vmem:[%s2357 + $0x94] sm:$0xf]
      %v3150 = vld [vmem:[%s2357 + $0x98] sm:$0x1]
      %v3151 = vld [vmem:[%s2357 + $0x9c] sm:$0xe]
      %v3152 = vld [vmem:[%s2357 + $0xa0] sm:$0xf]
      %v3153 = vld [vmem:[%s2357 + $0xa4] sm:$0x1]
      %v3154 = vld [vmem:[%s2357 + $0xa8] sm:$0xe]
      %v3155 = vld [vmem:[%s2357 + $0xac] sm:$0xf]
      %v3156 = vld [vmem:[%s2357 + $0xb0] sm:$0x1]
      %v3157 = vld [vmem:[%s2357 + $0xb4] sm:$0xe]
      %v3158 = vld [vmem:[%s2357 + $0xb8] sm:$0xf]
      %v3159 = vld [vmem:[%s2357 + $0xbc] sm:$0x1]
      %v3208 = vrot.slane %v3112, 5
      %v3209 = vrot.slane %v3208, 4
      %v3210 = vrot.slane %v3113, 5
      %v3211 = vsel %vm1017, %v3209, %v3210
      %v3212 = vrot.slane %v3210, 4
      %v3213 = vrot.slane %v3114, 5
      %v3214 = vsel %vm1017, %v3212, %v3213
      %v3215 = vrot.slane %v3115, 5
      %v3216 = vrot.slane %v3215, 4
      %v3217 = vrot.slane %v3116, 5
      %v3218 = vsel %vm1017, %v3216, %v3217
      %v3219 = vrot.slane %v3217, 4
      %v3220 = vrot.slane %v3117, 5
      %v3221 = vsel %vm1017, %v3219, %v3220
      %v3222 = vrot.slane %v3118, 5
      %v3223 = vrot.slane %v3222, 4
      %v3224 = vrot.slane %v3119, 5
      %v3225 = vsel %vm1017, %v3223, %v3224
      %v3226 = vrot.slane %v3224, 4
      %v3227 = vrot.slane %v3120, 5
      %v3228 = vsel %vm1017, %v3226, %v3227
      %v3229 = vrot.slane %v3121, 5
      %v3230 = vrot.slane %v3229, 4
      %v3231 = vrot.slane %v3122, 5
      %v3232 = vsel %vm1017, %v3230, %v3231
      %v3233 = vrot.slane %v3231, 4
      %v3234 = vrot.slane %v3123, 5
      %v3235 = vsel %vm1017, %v3233, %v3234
      %v3236 = vrot.slane %v3124, 5
      %v3237 = vrot.slane %v3236, 4
      %v3238 = vrot.slane %v3125, 5
      %v3239 = vsel %vm1017, %v3237, %v3238
      %v3240 = vrot.slane %v3238, 4
      %v3241 = vrot.slane %v3126, 5
      %v3242 = vsel %vm1017, %v3240, %v3241
      %v3243 = vrot.slane %v3127, 5
      %v3244 = vrot.slane %v3243, 4
      %v3245 = vrot.slane %v3128, 5
      %v3246 = vsel %vm1017, %v3244, %v3245
      %v3247 = vrot.slane %v3245, 4
      %v3248 = vrot.slane %v3129, 5
      %v3249 = vsel %vm1017, %v3247, %v3248
      %v3250 = vrot.slane %v3130, 5
      %v3251 = vrot.slane %v3250, 4
      %v3252 = vrot.slane %v3131, 5
      %v3253 = vsel %vm1017, %v3251, %v3252
      %v3254 = vrot.slane %v3252, 4
      %v3255 = vrot.slane %v3132, 5
      %v3256 = vsel %vm1017, %v3254, %v3255
      %v3257 = vrot.slane %v3133, 5
      %v3258 = vrot.slane %v3257, 4
      %v3259 = vrot.slane %v3134, 5
      %v3260 = vsel %vm1017, %v3258, %v3259
      %v3261 = vrot.slane %v3259, 4
      %v3262 = vrot.slane %v3135, 5
      %v3263 = vsel %vm1017, %v3261, %v3262
      %v3264 = vrot.slane %v3136, 5
      %v3265 = vrot.slane %v3264, 4
      %v3266 = vrot.slane %v3137, 5
      %v3267 = vsel %vm1017, %v3265, %v3266
      %v3268 = vrot.slane %v3266, 4
      %v3269 = vrot.slane %v3138, 5
      %v3270 = vsel %vm1017, %v3268, %v3269
      %v3271 = vrot.slane %v3139, 5
      %v3272 = vrot.slane %v3271, 4
      %v3273 = vrot.slane %v3140, 5
      %v3274 = vsel %vm1017, %v3272, %v3273
      %v3275 = vrot.slane %v3273, 4
      %v3276 = vrot.slane %v3141, 5
      %v3277 = vsel %vm1017, %v3275, %v3276
      %v3278 = vrot.slane %v3142, 5
      %v3279 = vrot.slane %v3278, 4
      %v3280 = vrot.slane %v3143, 5
      %v3281 = vsel %vm1017, %v3279, %v3280
      %v3282 = vrot.slane %v3280, 4
      %v3283 = vrot.slane %v3144, 5
      %v3284 = vsel %vm1017, %v3282, %v3283
      %v3285 = vrot.slane %v3145, 5
      %v3286 = vrot.slane %v3285, 4
      %v3287 = vrot.slane %v3146, 5
      %v3288 = vsel %vm1017, %v3286, %v3287
      %v3289 = vrot.slane %v3287, 4
      %v3290 = vrot.slane %v3147, 5
      %v3291 = vsel %vm1017, %v3289, %v3290
      %v3292 = vrot.slane %v3148, 5
      %v3293 = vrot.slane %v3292, 4
      %v3294 = vrot.slane %v3149, 5
      %v3295 = vsel %vm1017, %v3293, %v3294
      %v3296 = vrot.slane %v3294, 4
      %v3297 = vrot.slane %v3150, 5
      %v3298 = vsel %vm1017, %v3296, %v3297
      %v3299 = vrot.slane %v3151, 5
      %v3300 = vrot.slane %v3299, 4
      %v3301 = vrot.slane %v3152, 5
      %v3302 = vsel %vm1017, %v3300, %v3301
      %v3303 = vrot.slane %v3301, 4
      %v3304 = vrot.slane %v3153, 5
      %v3305 = vsel %vm1017, %v3303, %v3304
      %v3306 = vrot.slane %v3154, 5
      %v3307 = vrot.slane %v3306, 4
      %v3308 = vrot.slane %v3155, 5
      %v3309 = vsel %vm1017, %v3307, %v3308
      %v3310 = vrot.slane %v3308, 4
      %v3311 = vrot.slane %v3156, 5
      %v3312 = vsel %vm1017, %v3310, %v3311
      %v3313 = vrot.slane %v3157, 5
      %v3314 = vrot.slane %v3313, 4
      %v3315 = vrot.slane %v3158, 5
      %v3316 = vsel %vm1017, %v3314, %v3315
      %v3317 = vrot.slane %v3315, 4
      %v3318 = vrot.slane %v3159, 5
      %v3319 = vsel %vm1017, %v3317, %v3318
      %3320 = vrot.lane.b32.xlu0 %v3211, 64
      %v3321 = vpop.permute.xlu0 %3320
      %3322 = vrot.lane.b32.xlu0 %v3214, 64
      %v3323 = vpop.permute.xlu0 %3322
      %3324 = vrot.lane.b32.xlu0 %v3218, 64
      %v3325 = vpop.permute.xlu0 %3324
      %3326 = vrot.lane.b32.xlu0 %v3221, 64
      %v3327 = vpop.permute.xlu0 %3326
      %3328 = vrot.lane.b32.xlu0 %v3225, 64
      %v3329 = vpop.permute.xlu0 %3328
      %3330 = vrot.lane.b32.xlu0 %v3228, 64
      %v3331 = vpop.permute.xlu0 %3330
      %3332 = vrot.lane.b32.xlu0 %v3232, 64
      %v3333 = vpop.permute.xlu0 %3332
      %3334 = vrot.lane.b32.xlu0 %v3235, 64
      %v3335 = vpop.permute.xlu0 %3334
      %3336 = vrot.lane.b32.xlu0 %v3239, 64
      %v3337 = vpop.permute.xlu0 %3336
      %3338 = vrot.lane.b32.xlu0 %v3242, 64
      %v3339 = vpop.permute.xlu0 %3338
      %3340 = vrot.lane.b32.xlu0 %v3246, 64
      %v3341 = vpop.permute.xlu0 %3340
      %3342 = vrot.lane.b32.xlu0 %v3249, 64
      %v3343 = vpop.permute.xlu0 %3342
      %3344 = vrot.lane.b32.xlu0 %v3253, 64
      %v3345 = vpop.permute.xlu0 %3344
      %3346 = vrot.lane.b32.xlu0 %v3256, 64
      %v3347 = vpop.permute.xlu0 %3346
      %3348 = vrot.lane.b32.xlu0 %v3260, 64
      %v3349 = vpop.permute.xlu0 %3348
      %3350 = vrot.lane.b32.xlu0 %v3263, 64
      %v3351 = vpop.permute.xlu0 %3350
      %3352 = vrot.lane.b32.xlu0 %v3267, 64
      %v3353 = vpop.permute.xlu0 %3352
      %3354 = vrot.lane.b32.xlu0 %v3270, 64
      %v3355 = vpop.permute.xlu0 %3354
      %3356 = vrot.lane.b32.xlu0 %v3274, 64
      %v3357 = vpop.permute.xlu0 %3356
      %3358 = vrot.lane.b32.xlu0 %v3277, 64
      %v3359 = vpop.permute.xlu0 %3358
      %3360 = vrot.lane.b32.xlu0 %v3281, 64
      %v3361 = vpop.permute.xlu0 %3360
      %3362 = vrot.lane.b32.xlu0 %v3284, 64
      %v3363 = vpop.permute.xlu0 %3362
      %3364 = vrot.lane.b32.xlu0 %v3288, 64
      %v3365 = vpop.permute.xlu0 %3364
      %3366 = vrot.lane.b32.xlu0 %v3291, 64
      %v3367 = vpop.permute.xlu0 %3366
      %3368 = vrot.lane.b32.xlu0 %v3295, 64
      %v3369 = vpop.permute.xlu0 %3368
      %3370 = vrot.lane.b32.xlu0 %v3298, 64
      %v3371 = vpop.permute.xlu0 %3370
      %3372 = vrot.lane.b32.xlu0 %v3302, 64
      %v3373 = vpop.permute.xlu0 %3372
      %3374 = vrot.lane.b32.xlu0 %v3305, 64
      %v3375 = vpop.permute.xlu0 %3374
      %3376 = vrot.lane.b32.xlu0 %v3309, 64
      %v3377 = vpop.permute.xlu0 %3376
      %3378 = vrot.lane.b32.xlu0 %v3312, 64
      %v3379 = vpop.permute.xlu0 %3378
      %3380 = vrot.lane.b32.xlu0 %v3316, 64
      %v3381 = vpop.permute.xlu0 %3380
      %3382 = vrot.lane.b32.xlu0 %v3319, 64
      %v3383 = vpop.permute.xlu0 %3382
      %vm3416 = vcmask 585216
      %3417 = vst.msk [vmem:[#allocation2] sm:$0xf] %vm3416, %v3321
      %3418 = vst.msk [vmem:[#allocation2 + $0x4] sm:$0xf] %vm3416, %v3323
      %3419 = vst.msk [vmem:[#allocation2 + $0x8] sm:$0xf] %vm3416, %v3325
      %3420 = vst.msk [vmem:[#allocation2 + $0xc] sm:$0xf] %vm3416, %v3327
      %3421 = vst.msk [vmem:[#allocation2 + $0x10] sm:$0xf] %vm3416, %v3329
      %3422 = vst.msk [vmem:[#allocation2 + $0x14] sm:$0xf] %vm3416, %v3331
      %3423 = vst.msk [vmem:[#allocation2 + $0x18] sm:$0xf] %vm3416, %v3333
      %3424 = vst.msk [vmem:[#allocation2 + $0x1c] sm:$0xf] %vm3416, %v3335
      %3425 = vst.msk [vmem:[#allocation2 + $0x20] sm:$0xf] %vm3416, %v3337
      %3426 = vst.msk [vmem:[#allocation2 + $0x24] sm:$0xf] %vm3416, %v3339
      %3427 = vst.msk [vmem:[#allocation2 + $0x28] sm:$0xf] %vm3416, %v3341
      %3428 = vst.msk [vmem:[#allocation2 + $0x2c] sm:$0xf] %vm3416, %v3343
      %3429 = vst.msk [vmem:[#allocation2 + $0x30] sm:$0xf] %vm3416, %v3345
      %3430 = vst.msk [vmem:[#allocation2 + $0x34] sm:$0xf] %vm3416, %v3347
      %3431 = vst.msk [vmem:[#allocation2 + $0x38] sm:$0xf] %vm3416, %v3349
      %3432 = vst.msk [vmem:[#allocation2 + $0x3c] sm:$0xf] %vm3416, %v3351
      %3433 = vst.msk [vmem:[#allocation2 + $0x40] sm:$0xf] %vm3416, %v3353
      %3434 = vst.msk [vmem:[#allocation2 + $0x44] sm:$0xf] %vm3416, %v3355
      %3435 = vst.msk [vmem:[#allocation2 + $0x48] sm:$0xf] %vm3416, %v3357
      %3436 = vst.msk [vmem:[#allocation2 + $0x4c] sm:$0xf] %vm3416, %v3359
      %3437 = vst.msk [vmem:[#allocation2 + $0x50] sm:$0xf] %vm3416, %v3361
      %3438 = vst.msk [vmem:[#allocation2 + $0x54] sm:$0xf] %vm3416, %v3363
      %3439 = vst.msk [vmem:[#allocation2 + $0x58] sm:$0xf] %vm3416, %v3365
      %3440 = vst.msk [vmem:[#allocation2 + $0x5c] sm:$0xf] %vm3416, %v3367
      %3441 = vst.msk [vmem:[#allocation2 + $0x60] sm:$0xf] %vm3416, %v3369
      %3442 = vst.msk [vmem:[#allocation2 + $0x64] sm:$0xf] %vm3416, %v3371
      %3443 = vst.msk [vmem:[#allocation2 + $0x68] sm:$0xf] %vm3416, %v3373
      %3444 = vst.msk [vmem:[#allocation2 + $0x6c] sm:$0xf] %vm3416, %v3375
      %3445 = vst.msk [vmem:[#allocation2 + $0x70] sm:$0xf] %vm3416, %v3377
      %3446 = vst.msk [vmem:[#allocation2 + $0x74] sm:$0xf] %vm3416, %v3379
      %3447 = vst.msk [vmem:[#allocation2 + $0x78] sm:$0xf] %vm3416, %v3381
      %3448 = vst.msk [vmem:[#allocation2 + $0x7c] sm:$0xf] %vm3416, %v3383
      %v3449 = vld [vmem:[%s258] sm:$0xf]
      %v3450 = vld [vmem:[%s258 + $0x4] sm:$0xf]
      %v3451 = vld [vmem:[#allocation2] sm:$0xf]
      %v3452 = vld [vmem:[#allocation2 + $0x4] sm:$0xf]
      %v3453 = vld [vmem:[#allocation2 + $0x8] sm:$0xf]
      %v3454 = vld [vmem:[#allocation2 + $0xc] sm:$0xf]
      %v3455 = vld [vmem:[#allocation2 + $0x10] sm:$0xf]
      %v3456 = vld [vmem:[#allocation2 + $0x14] sm:$0xf]
      %v3457 = vld [vmem:[#allocation2 + $0x18] sm:$0xf]
      %v3458 = vld [vmem:[#allocation2 + $0x1c] sm:$0xf]
      %v3459 = vld [vmem:[#allocation2 + $0x20] sm:$0xf]
      %v3460 = vld [vmem:[#allocation2 + $0x24] sm:$0xf]
      %v3461 = vld [vmem:[#allocation2 + $0x28] sm:$0xf]
      %v3462 = vld [vmem:[#allocation2 + $0x2c] sm:$0xf]
      %v3463 = vld [vmem:[#allocation2 + $0x30] sm:$0xf]
      %v3464 = vld [vmem:[#allocation2 + $0x34] sm:$0xf]
      %v3465 = vld [vmem:[#allocation2 + $0x38] sm:$0xf]
      %v3466 = vld [vmem:[#allocation2 + $0x3c] sm:$0xf]
      %v3467 = vld [vmem:[#allocation2 + $0x40] sm:$0xf]
      %v3468 = vld [vmem:[#allocation2 + $0x44] sm:$0xf]
      %v3469 = vld [vmem:[#allocation2 + $0x48] sm:$0xf]
      %v3470 = vld [vmem:[#allocation2 + $0x4c] sm:$0xf]
      %v3471 = vld [vmem:[#allocation2 + $0x50] sm:$0xf]
      %v3472 = vld [vmem:[#allocation2 + $0x54] sm:$0xf]
      %v3473 = vld [vmem:[#allocation2 + $0x58] sm:$0xf]
      %v3474 = vld [vmem:[#allocation2 + $0x5c] sm:$0xf]
      %v3475 = vld [vmem:[#allocation2 + $0x60] sm:$0xf]
      %v3476 = vld [vmem:[#allocation2 + $0x64] sm:$0xf]
      %v3477 = vld [vmem:[#allocation2 + $0x68] sm:$0xf]
      %v3478 = vld [vmem:[#allocation2 + $0x6c] sm:$0xf]
      %v3479 = vld [vmem:[#allocation2 + $0x70] sm:$0xf]
      %v3480 = vld [vmem:[#allocation2 + $0x74] sm:$0xf]
      %v3481 = vld [vmem:[#allocation2 + $0x78] sm:$0xf]
      %v3482 = vld [vmem:[#allocation2 + $0x7c] sm:$0xf]
      %v3483 = vld [vmem:[%s268] sm:$0xff]
      %v3484 = vld [vmem:[%s268 + $0x8] sm:$0xff]
      %3486 = vset.pattern.permute.xlu0 0
      %3487 = vperm.xlu0 %3486, %v3483
      %v3488 = vpop.permute.xlu0 %3487
      %3491 = vset.pattern.permute.xlu0 0
      %3492 = vperm.xlu0 %3491, %v3484
      %v3493 = vpop.permute.xlu0 %3492
      %v3497 = vunpack.c.l.b16 %v3449
      %v3498 = vunpack.c.l.b16 %v3450
      %v3499 = vpack.c.b16 %v3498, %v3497
      %v3532 = vunpack.c.l.b16 %v3451
      %v3533 = vunpack.c.l.b16 %v3452
      %v3534 = vunpack.c.l.b16 %v3453
      %v3535 = vunpack.c.l.b16 %v3454
      %v3536 = vunpack.c.l.b16 %v3455
      %v3537 = vunpack.c.l.b16 %v3456
      %v3538 = vunpack.c.l.b16 %v3457
      %v3539 = vunpack.c.l.b16 %v3458
      %v3540 = vunpack.c.l.b16 %v3459
      %v3541 = vunpack.c.l.b16 %v3460
      %v3542 = vunpack.c.l.b16 %v3461
      %v3543 = vunpack.c.l.b16 %v3462
      %v3544 = vunpack.c.l.b16 %v3463
      %v3545 = vunpack.c.l.b16 %v3464
      %v3546 = vunpack.c.l.b16 %v3465
      %v3547 = vunpack.c.l.b16 %v3466
      %v3548 = vunpack.c.l.b16 %v3467
      %v3549 = vunpack.c.l.b16 %v3468
      %v3550 = vunpack.c.l.b16 %v3469
      %v3551 = vunpack.c.l.b16 %v3470
      %v3552 = vunpack.c.l.b16 %v3471
      %v3553 = vunpack.c.l.b16 %v3472
      %v3554 = vunpack.c.l.b16 %v3473
      %v3555 = vunpack.c.l.b16 %v3474
      %v3556 = vunpack.c.l.b16 %v3475
      %v3557 = vunpack.c.l.b16 %v3476
      %v3558 = vunpack.c.l.b16 %v3477
      %v3559 = vunpack.c.l.b16 %v3478
      %v3560 = vunpack.c.l.b16 %v3479
      %v3561 = vunpack.c.l.b16 %v3480
      %v3562 = vunpack.c.l.b16 %v3481
      %v3563 = vunpack.c.l.b16 %v3482
      %v3564 = vpack.c.b16 %v3533, %v3532
      %v3565 = vpack.c.b16 %v3535, %v3534
      %v3566 = vpack.c.b16 %v3537, %v3536
      %v3567 = vpack.c.b16 %v3539, %v3538
      %v3568 = vpack.c.b16 %v3541, %v3540
      %v3569 = vpack.c.b16 %v3543, %v3542
      %v3570 = vpack.c.b16 %v3545, %v3544
      %v3571 = vpack.c.b16 %v3547, %v3546
      %v3572 = vpack.c.b16 %v3549, %v3548
      %v3573 = vpack.c.b16 %v3551, %v3550
      %v3574 = vpack.c.b16 %v3553, %v3552
      %v3575 = vpack.c.b16 %v3555, %v3554
      %v3576 = vpack.c.b16 %v3557, %v3556
      %v3577 = vpack.c.b16 %v3559, %v3558
      %v3578 = vpack.c.b16 %v3561, %v3560
      %v3579 = vpack.c.b16 %v3563, %v3562
      %vm3580 = vcmask 588800
      %v3582 = vsel %vm3580, %v3499, 0
      %v3585 = vsel %vm3580, %v3564, 0
      %v3588 = vsel %vm3580, %v3565, 0
      %v3591 = vsel %vm3580, %v3566, 0
      %v3594 = vsel %vm3580, %v3567, 0
      %v3597 = vsel %vm3580, %v3568, 0
      %v3600 = vsel %vm3580, %v3569, 0
      %v3603 = vsel %vm3580, %v3570, 0
      %v3606 = vsel %vm3580, %v3571, 0
      %v3609 = vsel %vm3580, %v3572, 0
      %v3612 = vsel %vm3580, %v3573, 0
      %v3615 = vsel %vm3580, %v3574, 0
      %v3618 = vsel %vm3580, %v3575, 0
      %v3621 = vsel %vm3580, %v3576, 0
      %v3624 = vsel %vm3580, %v3577, 0
      %v3627 = vsel %vm3580, %v3578, 0
      %v3630 = vsel %vm3580, %v3579, 0
      %3632 = vmatpush.bf16.xpose.msra.mxu0 %v3606
      %3633 = vmatpush.bf16.xpose.msra.mxu0 %v3603
      %3634 = vmatpush.bf16.xpose.msra.mxu0 %v3600
      %3635 = vmatpush.bf16.xpose.msra.mxu0 %v3597
      %3636 = vmatpush.bf16.xpose.msra.mxu0 %v3594
      %3637 = vmatpush.bf16.xpose.msra.mxu0 %v3591
      %3638 = vmatpush.bf16.xpose.msra.mxu0 %v3588
      %3639 = vmatpush.bf16.xpose.msra.mxu0 %v3585
      %3640 = vmatmul.bf16.gmra.mxu0 %v3582
      %v3641 = vpop.f32.mrf.mxu0
      %v3642 = vadd.f32 %v3488, %v3641
      %v3643 = vpop.f32.mrf.mxu0
      %v3644 = vadd.f32 %v3493, %v3643
      %3645 = vdwg.mxu0
      %3646 = vmatpush.bf16.xpose.msra.mxu0 %v3630
      %3647 = vmatpush.bf16.xpose.msra.mxu0 %v3627
      %3648 = vmatpush.bf16.xpose.msra.mxu0 %v3624
      %3649 = vmatpush.bf16.xpose.msra.mxu0 %v3621
      %3650 = vmatpush.bf16.xpose.msra.mxu0 %v3618
      %3651 = vmatpush.bf16.xpose.msra.mxu0 %v3615
      %3652 = vmatpush.bf16.xpose.msra.mxu0 %v3612
      %3653 = vmatpush.bf16.xpose.msra.mxu0 %v3609
      %3654 = vmatmul.bf16.gmra.mxu0 %v3582
      %v3655 = vpop.f32.mrf.mxu0
      %v3656 = vadd.f32 %v3488, %v3655
      %v3657 = vpop.f32.mrf.mxu0
      %v3658 = vadd.f32 %v3493, %v3657
      %3659 = vdwg.mxu0
      %3660 = vst [vmem:[%s283] sm:$0xff] %v3642
      %3661 = vst [vmem:[%s283 + $0x8] sm:$0xff] %v3656
      %3662 = vst [vmem:[%s283 + $0x10] sm:$0xff] %v3644
      %3663 = vst [vmem:[%s283 + $0x18] sm:$0xff] %v3658
      %s3664 = smul.u32 2, %s20
      %s3665 = smul.u32 2, %s21
      %p3666 = scmp.lt.s32.totalorder %s19, 1
      %s3667 = scalar_select %p3666, %s19, 1
      %p3668 = scmp.lt.s32.totalorder %s3664, 1
      %s3669 = scalar_select %p3668, %s3664, 1
      %p3670 = scmp.lt.s32.totalorder %s3665, 1
      %s3671 = scalar_select %p3670, %s3665, 1
      %s3672 = smul.addr %s3669, 2
      %s3673 = sadd.s32 %s3671, %s3672
      %s3674 = smul.addr %s3667, 4
      %s3675 = sadd.s32 %s3673, %s3674
      %s3676 = smul.addr %s3675, 8
      %s3677 = scalar_lea.vmem %s3, %s3676
      // Predicated region
      $region33: #{forward.3} parent=31 // pred_check
        %p3678 = pneg %p137
      $region34: #{forward.3} parent=31 // pred_check_branch
        %3680 = sbr.rel (%p3678) target = $region36
      $region35: #{forward.3} parent=31 // pred_region
        %s3681 = smul.u32 2, %s20
        %s3682 = smul.u32 2, %s21
      $region36: #{forward.3} parent=31 // pred_fallthru
        _
    $region32: #{forward.3} parent=5 // pred_fallthru
      _
    %p3683 = scmp.le.s32.totalorder 2, %s9
    // Predicated region
    $region37: #{forward.3} parent=5 // pred_check
      %p3684 = pneg %p3683
    $region38: #{forward.3} parent=5 // pred_check_branch
      %3686 = sbr.rel (%p3684) target = $region40
    $region39: #{forward.3} parent=5 // pred_region
      %s3687 = ssub.s32 %s9, 2
      // Predicated region
      $region41: #{forward.3} parent=39 // pred_check
        %p3688 = pneg %p143
      $region42: #{forward.3} parent=39 // pred_check_branch
        %3690 = sbr.rel (%p3688) target = $region44
      $region43: #{forward.3} parent=39 // pred_region
        %s3691 = smul.u32 2, %s23
        %s3692 = smul.u32 2, %s24
        %p3693 = scmp.lt.s32.totalorder %s22, 1
        %s3694 = scalar_select %p3693, %s22, 1
        %p3695 = scmp.lt.s32.totalorder %s3691, 1
        %s3696 = scalar_select %p3695, %s3691, 1
        %p3697 = scmp.lt.s32.totalorder %s3692, 1
        %s3698 = scalar_select %p3697, %s3692, 1
        %s3699 = smul.addr %s3696, 2
        %s3700 = sadd.s32 %s3698, %s3699
        %s3701 = smul.addr %s3694, 4
        %s3702 = sadd.s32 %s3700, %s3701
        %s3703 = smul.addr %s3702, 8
        %s3704 = scalar_lea.vmem %s3, %s3703
      $region44: #{forward.3} parent=39 // pred_fallthru
        _
    $region40: #{forward.3} parent=5 // pred_fallthru
      _
  $region6: #{forward.3} parent=0 // loop_footer
    %s13 = sadd.s32 1, %s9
  $region7: #{forward.3} parent=0 // loop_footer_branch
    %8 = sbr.rel target = $region3
  $region8: #{forward.3} parent=0 // loop_exit
    _

</llo_original>
